<compile_context>
chip_gen: v7x
topology: tpu7x:2x2x1
jax: 0.10.0
libtpu: 0.0.40
codegen_flags: <defaults>
</compile_context>

<pallas_src>
import functools
import math

import jax
import jax.numpy as jnp
import numpy as np
from jax.experimental import pallas as pl
from jax.experimental.pallas import tpu as pltpu


# ---------------------------------------------------------------------------
# Fused Pallas kernel: Q/K/V proj -> per-frequency channel attention ->
#                      output 1x1 conv -> residual           (all in VMEM)
# ---------------------------------------------------------------------------
def _freq_sa_kernel(x_ref, wqkv_ref, baqkv_ref, wo_ref, bao_ref, o_ref, *,
                    heads, ch, inv_scale):
    fb, t, c = x_ref.shape                      # block: [Fb, T, C]  (m squeezed)
    x = x_ref[...]                              # f32
    xm = x.reshape(fb * t, c)                   # [Fb*T, C]

    # Fused Q/K/V projections for all heads: (folded conv+BN) matmul + bias + PReLU.
    proj = jnp.dot(xm, wqkv_ref[...], preferred_element_type=jnp.float32)
    proj = proj + baqkv_ref[0:1, :]                          # folded bias row
    proj = jnp.where(proj >= 0.0, proj, baqkv_ref[1:2, :] * proj)   # PReLU
    proj = proj.reshape(fb, t, 3 * heads * ch)

    head_outs = []
    for h in range(heads):
        q = proj[:, :, h * ch:(h + 1) * ch]                              # [Fb,T,Ch]
        k = proj[:, :, (heads + h) * ch:(heads + h + 1) * ch]            # [Fb,T,Ch]
        v = proj[:, :, (2 * heads + h) * ch:(2 * heads + h + 1) * ch]    # [Fb,T,Ch]

        # S[f,a,b] = sum_t Q[f,t,a] K[f,t,b]   (channel attention per frequency bin)
        qt = jnp.swapaxes(q, 1, 2)                                       # [Fb,Ch,T]
        s = jnp.einsum('fat,ftb->fab', qt, k,
                       preferred_element_type=jnp.float32) * inv_scale   # [Fb,Ch,Ch]
        s = s - jnp.max(s, axis=-1, keepdims=True)                       # stable softmax
        e = jnp.exp(s)
        p = e / jnp.sum(e, axis=-1, keepdims=True)

        # SA^T[f,t,d] = sum_e V[f,t,e] P[f,d,e]
        head_outs.append(jnp.einsum('fte,fde->ftd', v, p,
                                    preferred_element_type=jnp.float32))  # [Fb,T,Ch]

    cat = head_outs[0] if heads == 1 else jnp.concatenate(head_outs, axis=-1)
    cat2 = cat.reshape(fb * t, heads * ch)

    # Output 1x1 conv (+ folded BN) + PReLU, then residual with the input block.
    y = jnp.dot(cat2, wo_ref[...], preferred_element_type=jnp.float32)
    y = y + bao_ref[0:1, :]
    y = jnp.where(y >= 0.0, y, bao_ref[1:2, :] * y)
    o_ref[...] = (x + y.reshape(fb, t, c)).astype(o_ref.dtype)


# ---------------------------------------------------------------------------
# Wrapper: parameter folding, layout plumbing, pallas_call
# ---------------------------------------------------------------------------
def _fold_conv_bn(w, b, gamma, beta, mean, var, alpha, eps=1e-5):
    """Fold BatchNorm (eval) + conv bias into the 1x1-conv weight / bias."""
    scale = gamma / jnp.sqrt(var + eps)
    wf = w * scale[:, None]
    bf = b * scale + beta - mean * scale
    return wf, bf, alpha


def _pick_fb(F, T, C, max_bytes=2 * 1024 * 1024):
    """Largest divisor of F whose activation block fits a small VMEM budget."""
    best = 1
    for fb in range(1, F + 1):
        if F % fb == 0 and fb * T * C * 4 <= max_bytes:
            best = fb
    return best


def freq_self_attention_forward(Fres, params, multi_heads=1, strides=1):
    assert strides == 1, "only strides=1 supported (residual requires matching shapes)"
    M, C, T, F = Fres.shape
    assert C % 2 == 0
    Ch = C // 2
    H = multi_heads

    # --- fold BN into weights and pack Q/K/V of all heads into one operand ---
    w_cols, b_cols, a_cols = [], [], []
    for typ in ('q', 'k', 'v'):
        for h in range(H):
            wf, bf, al = _fold_conv_bn(*params[typ][h])
            w_cols.append(wf.T)                                   # [C, Ch]
            b_cols.append(bf)                                     # [Ch]
            a_cols.append(jnp.full((Ch,), al, jnp.float32))       # scalar PReLU alpha
    w_qkv = jnp.concatenate(w_cols, axis=1).astype(jnp.float32)   # [C, 3*H*Ch]
    ba_qkv = jnp.stack([jnp.concatenate(b_cols),
                        jnp.concatenate(a_cols)]).astype(jnp.float32)  # [2, 3*H*Ch]

    wfo, bfo, alo = _fold_conv_bn(*params['o'])
    w_o = wfo.T.astype(jnp.float32)                               # [H*Ch, C]
    ba_o = jnp.stack([bfo, jnp.full((C,), alo, jnp.float32)]).astype(jnp.float32)

    # --- layout: [M, C, T, F] -> [M, F, T, C] so attention is batch-leading ---
    x_t = jnp.transpose(Fres, (0, 3, 2, 1)).astype(jnp.float32)

    Fb = _pick_fb(F, T, C)
    inv_scale = 1.0 / math.sqrt(Ch * F)   # torch: divide by sqrt((C//2) * F)

    kernel = functools.partial(_freq_sa_kernel, heads=H, ch=Ch, inv_scale=inv_scale)
    out_t = pl.pallas_call(
        kernel,
        out_shape=jax.ShapeDtypeStruct((M, F, T, C), jnp.float32),
        grid=(M, F // Fb),
        in_specs=[
            pl.BlockSpec((None, Fb, T, C), lambda m, f: (m, f, 0, 0)),
            pl.BlockSpec((C, 3 * H * Ch), lambda m, f: (0, 0)),
            pl.BlockSpec((2, 3 * H * Ch), lambda m, f: (0, 0)),
            pl.BlockSpec((H * Ch, C), lambda m, f: (0, 0)),
            pl.BlockSpec((2, C), lambda m, f: (0, 0)),
        ],
        out_specs=pl.BlockSpec((None, Fb, T, C), lambda m, f: (m, f, 0, 0)),
        compiler_params=pltpu.CompilerParams(
            dimension_semantics=("parallel", "parallel")),
    )(x_t, w_qkv, ba_qkv, w_o, ba_o)

    return jnp.transpose(out_t, (0, 3, 2, 1))                     # back to [M, C, T, F]


# ---------------------------------------------------------------------------
# Parameter init (deterministic) — mirrors the torch module's parameters
# ---------------------------------------------------------------------------
def init_params(key, input_channels, multi_heads):
    C = input_channels
    Ch = C // 2

    def make_block(k, cin, cout):
        ks = jax.random.split(k, 7)
        w = 0.1 * jax.random.normal(ks[0], (cout, cin), jnp.float32)   # 1x1 conv weight
        b = 0.1 * jax.random.normal(ks[1], (cout,), jnp.float32)       # conv bias
        gamma = 1.0 + 0.1 * jax.random.normal(ks[2], (cout,), jnp.float32)
        beta = 0.1 * jax.random.normal(ks[3], (cout,), jnp.float32)
        mean = 0.1 * jax.random.normal(ks[4], (cout,), jnp.float32)
        var = 0.5 + jax.random.uniform(ks[5], (cout,), jnp.float32)
        alpha = 0.1 + 0.4 * jax.random.uniform(ks[6], (), jnp.float32)  # nn.PReLU scalar
        return (w, b, gamma, beta, mean, var, alpha)

    params = {'q': [], 'k': [], 'v': []}
    for i, typ in enumerate(('q', 'k', 'v')):
        for h in range(multi_heads):
            params[typ].append(make_block(jax.random.fold_in(key, i * multi_heads + h),
                                          C, Ch))
    params['o'] = make_block(jax.random.fold_in(key, 1000), Ch * multi_heads, C)
    return params


# ---------------------------------------------------------------------------
# Pure-JAX reference (mirrors the torch forward) for validation
# ---------------------------------------------------------------------------
def _ref_forward(Fres, params, multi_heads, eps=1e-5):
    M, C, T, F = Fres.shape
    Ch = C // 2

    def block(x, w, b, gamma, beta, mean, var, alpha):
        y = jnp.einsum('oc,mctf->motf', w, x) + b[None, :, None, None]
        scale = gamma / jnp.sqrt(var + eps)
        y = y * scale[None, :, None, None] + (beta - mean * scale)[None, :, None, None]
        return jnp.where(y >= 0, y, alpha * y)

    heads_out = []
    for h in range(multi_heads):
        q = jnp.transpose(block(Fres, *params['q'][h]), (0, 3, 1, 2))  # [M,F,Ch,T]
        k = jnp.transpose(block(Fres, *params['k'][h]), (0, 3, 1, 2))
        v = jnp.transpose(block(Fres, *params['v'][h]), (0, 3, 1, 2))
        s = jnp.matmul(q, jnp.swapaxes(k, -1, -2)) / np.sqrt(Ch * F)
        p = jax.nn.softmax(s, axis=-1)
        sa = jnp.matmul(p, v)                                          # [M,F,Ch,T]
        heads_out.append(jnp.transpose(sa, (0, 2, 3, 1)))              # [M,Ch,T,F]
    cat = jnp.concatenate(heads_out, axis=1)
    return Fres + block(cat, *params['o'])


if __name__ == "__main__":
    input_channels = 32      # C  (must be even)
    multi_heads = 2
    M, T, F = 2, 16, 8       # Fres: [M, C, T, F]

    key = jax.random.PRNGKey(0)
    k_x, k_p = jax.random.split(key)
    Fres = jax.random.normal(k_x, (M, input_channels, T, F), jnp.float32)
    params = init_params(k_p, input_channels, multi_heads)

    out = jax.block_until_ready(
        freq_self_attention_forward(Fres, params, multi_heads=multi_heads))
    assert out.shape == Fres.shape, out.shape

    ref = _ref_forward(Fres, params, multi_heads)
    np.testing.assert_allclose(np.asarray(out), np.asarray(ref), rtol=2e-4, atol=2e-4)

    print("KERNEL_OK")
</pallas_src>

<mosaic_0001>
module attributes {stable_mosaic.version = 11 : i64} {
  func.func @_freq_sa_kernel(%arg0: i32, %arg1: i32, %arg2: memref<1x8x16x32xf32, #tpu.memory_space<vmem>>, %arg3: memref<32x96xf32, #tpu.memory_space<vmem>>, %arg4: memref<2x96xf32, #tpu.memory_space<vmem>>, %arg5: memref<32x32xf32, #tpu.memory_space<vmem>>, %arg6: memref<2x32xf32, #tpu.memory_space<vmem>>, %arg7: memref<1x8x16x32xf32, #tpu.memory_space<vmem>>) attributes {dimension_semantics = [#tpu.dimension_semantics<parallel>, #tpu.dimension_semantics<parallel>], iteration_bounds = array<i64: 2, 1>, scalar_prefetch = 0 : i64, scratch_operands = 0 : i64, tpu.core_type = #tpu.core_type<tc>, window_params = [{transform_indices = @transform_0, window_bounds = array<i64: 1, 8, 16, 32>}, {pipeline_mode = #tpu.pipeline_mode<synchronous>, transform_indices = @transform_1, window_bounds = array<i64: 32, 96>}, {pipeline_mode = #tpu.pipeline_mode<synchronous>, transform_indices = @transform_2, window_bounds = array<i64: 2, 96>}, {pipeline_mode = #tpu.pipeline_mode<synchronous>, transform_indices = @transform_3, window_bounds = array<i64: 32, 32>}, {pipeline_mode = #tpu.pipeline_mode<synchronous>, transform_indices = @transform_4, window_bounds = array<i64: 2, 32>}, {transform_indices = @transform_5, window_bounds = array<i64: 1, 8, 16, 32>}]} {
    %c0 = arith.constant 0 : index
    %c0_0 = arith.constant 0 : index
    %c0_1 = arith.constant 0 : index
    %c0_2 = arith.constant 0 : index
    %0 = vector.load %arg2[%c0, %c0_0, %c0_1, %c0_2] : memref<1x8x16x32xf32, #tpu.memory_space<vmem>>, vector<1x8x16x32xf32>
    %1 = vector.shape_cast %0 : vector<1x8x16x32xf32> to vector<8x16x32xf32>
    %2 = vector.shape_cast %1 : vector<8x16x32xf32> to vector<128x32xf32>
    %c0_3 = arith.constant 0 : index
    %c0_4 = arith.constant 0 : index
    %3 = vector.load %arg3[%c0_3, %c0_4] : memref<32x96xf32, #tpu.memory_space<vmem>>, vector<32x96xf32>
    %cst = arith.constant dense<0.000000e+00> : vector<128x96xf32>
    %4 = tpu.matmul %2, %3, %cst {dimension_numbers = #tpu.dot_dimension_numbers<[1], [0], [0], [1], [0, 0, 1, 1], [], []>} : vector<128x32xf32>, vector<32x96xf32>, vector<128x96xf32> -> vector<128x96xf32>
    %c0_5 = arith.constant 0 : index
    %c0_6 = arith.constant 0 : index
    %5 = vector.load %arg4[%c0_5, %c0_6] : memref<2x96xf32, #tpu.memory_space<vmem>>, vector<1x96xf32>
    %6 = vector.broadcast %5 : vector<1x96xf32> to vector<128x96xf32>
    %7 = arith.addf %4, %6 : vector<128x96xf32>
    %cst_7 = arith.constant 0.000000e+00 : f32
    %8 = vector.broadcast %cst_7 : f32 to vector<128x96xf32>
    %9 = arith.cmpf oge, %7, %8 : vector<128x96xf32>
    %c1 = arith.constant 1 : index
    %c0_8 = arith.constant 0 : index
    %10 = vector.load %arg4[%c1, %c0_8] : memref<2x96xf32, #tpu.memory_space<vmem>>, vector<1x96xf32>
    %11 = vector.broadcast %10 : vector<1x96xf32> to vector<128x96xf32>
    %12 = arith.mulf %11, %7 : vector<128x96xf32>
    %13 = arith.select %9, %7, %12 : vector<128x96xi1>, vector<128x96xf32>
    %14 = vector.shape_cast %13 : vector<128x96xf32> to vector<8x16x96xf32>
    %15 = vector.extract_strided_slice %14 {offsets = [0, 0, 0], sizes = [8, 16, 16], strides = [1, 1, 1]} : vector<8x16x96xf32> to vector<8x16x16xf32>
    %16 = vector.extract_strided_slice %14 {offsets = [0, 0, 32], sizes = [8, 16, 16], strides = [1, 1, 1]} : vector<8x16x96xf32> to vector<8x16x16xf32>
    %17 = vector.extract_strided_slice %14 {offsets = [0, 0, 64], sizes = [8, 16, 16], strides = [1, 1, 1]} : vector<8x16x96xf32> to vector<8x16x16xf32>
    %18 = tpu.transpose %15, [0, 2, 1] : vector<8x16x16xf32> -> vector<8x16x16xf32>
    "tpu.trace_start"() <{level = 10 : i32, message = "fat,ftb->fab"}> : () -> ()
    %cst_9 = arith.constant dense<0.000000e+00> : vector<8x16x16xf32>
    %19 = tpu.matmul %18, %16, %cst_9 {dimension_numbers = #tpu.dot_dimension_numbers<[2], [1], [1], [2], [0, 0, 0, 1, 1, 2], [0], [0]>} : vector<8x16x16xf32>, vector<8x16x16xf32>, vector<8x16x16xf32> -> vector<8x16x16xf32>
    "tpu.trace_stop"() : () -> ()
    %cst_10 = arith.constant 0.0883883461 : f32
    %20 = vector.broadcast %cst_10 : f32 to vector<8x16x16xf32>
    %21 = arith.mulf %19, %20 : vector<8x16x16xf32>
    %cst_11 = arith.constant dense<0xFF800000> : vector<8x16xf32>
    %22 = vector.multi_reduction <maximumf>, %21, %cst_11 [2] : vector<8x16x16xf32> to vector<8x16xf32>
    %23 = vector.shape_cast %22 : vector<8x16xf32> to vector<8x16x1xf32>
    %24 = vector.broadcast %23 : vector<8x16x1xf32> to vector<8x16x16xf32>
    %25 = arith.subf %21, %24 : vector<8x16x16xf32>
    %26 = math.exp %25 : vector<8x16x16xf32>
    %cst_12 = arith.constant dense<0.000000e+00> : vector<8x16xf32>
    %27 = vector.multi_reduction <add>, %26, %cst_12 [2] : vector<8x16x16xf32> to vector<8x16xf32>
    %28 = vector.shape_cast %27 : vector<8x16xf32> to vector<8x16x1xf32>
    %29 = vector.broadcast %28 : vector<8x16x1xf32> to vector<8x16x16xf32>
    %30 = arith.divf %26, %29 : vector<8x16x16xf32>
    "tpu.trace_start"() <{level = 10 : i32, message = "fte,fde->ftd"}> : () -> ()
    %cst_13 = arith.constant dense<0.000000e+00> : vector<8x16x16xf32>
    %31 = tpu.matmul %17, %30, %cst_13 {dimension_numbers = #tpu.dot_dimension_numbers<[2], [2], [1], [1], [0, 0, 0, 1, 1, 1], [0], [0]>} : vector<8x16x16xf32>, vector<8x16x16xf32>, vector<8x16x16xf32> -> vector<8x16x16xf32>
    "tpu.trace_stop"() : () -> ()
    %32 = vector.extract_strided_slice %14 {offsets = [0, 0, 16], sizes = [8, 16, 16], strides = [1, 1, 1]} : vector<8x16x96xf32> to vector<8x16x16xf32>
    %33 = vector.extract_strided_slice %14 {offsets = [0, 0, 48], sizes = [8, 16, 16], strides = [1, 1, 1]} : vector<8x16x96xf32> to vector<8x16x16xf32>
    %34 = vector.extract_strided_slice %14 {offsets = [0, 0, 80], sizes = [8, 16, 16], strides = [1, 1, 1]} : vector<8x16x96xf32> to vector<8x16x16xf32>
    %35 = tpu.transpose %32, [0, 2, 1] : vector<8x16x16xf32> -> vector<8x16x16xf32>
    "tpu.trace_start"() <{level = 10 : i32, message = "fat,ftb->fab"}> : () -> ()
    %cst_14 = arith.constant dense<0.000000e+00> : vector<8x16x16xf32>
    %36 = tpu.matmul %35, %33, %cst_14 {dimension_numbers = #tpu.dot_dimension_numbers<[2], [1], [1], [2], [0, 0, 0, 1, 1, 2], [0], [0]>} : vector<8x16x16xf32>, vector<8x16x16xf32>, vector<8x16x16xf32> -> vector<8x16x16xf32>
    "tpu.trace_stop"() : () -> ()
    %cst_15 = arith.constant 0.0883883461 : f32
    %37 = vector.broadcast %cst_15 : f32 to vector<8x16x16xf32>
    %38 = arith.mulf %36, %37 : vector<8x16x16xf32>
    %cst_16 = arith.constant dense<0xFF800000> : vector<8x16xf32>
    %39 = vector.multi_reduction <maximumf>, %38, %cst_16 [2] : vector<8x16x16xf32> to vector<8x16xf32>
    %40 = vector.shape_cast %39 : vector<8x16xf32> to vector<8x16x1xf32>
    %41 = vector.broadcast %40 : vector<8x16x1xf32> to vector<8x16x16xf32>
    %42 = arith.subf %38, %41 : vector<8x16x16xf32>
    %43 = math.exp %42 : vector<8x16x16xf32>
    %cst_17 = arith.constant dense<0.000000e+00> : vector<8x16xf32>
    %44 = vector.multi_reduction <add>, %43, %cst_17 [2] : vector<8x16x16xf32> to vector<8x16xf32>
    %45 = vector.shape_cast %44 : vector<8x16xf32> to vector<8x16x1xf32>
    %46 = vector.broadcast %45 : vector<8x16x1xf32> to vector<8x16x16xf32>
    %47 = arith.divf %43, %46 : vector<8x16x16xf32>
    "tpu.trace_start"() <{level = 10 : i32, message = "fte,fde->ftd"}> : () -> ()
    %cst_18 = arith.constant dense<0.000000e+00> : vector<8x16x16xf32>
    %48 = tpu.matmul %34, %47, %cst_18 {dimension_numbers = #tpu.dot_dimension_numbers<[2], [2], [1], [1], [0, 0, 0, 1, 1, 1], [0], [0]>} : vector<8x16x16xf32>, vector<8x16x16xf32>, vector<8x16x16xf32> -> vector<8x16x16xf32>
    "tpu.trace_stop"() : () -> ()
    %49 = tpu.concatenate %31, %48 in 2 : vector<8x16x16xf32>, vector<8x16x16xf32> -> vector<8x16x32xf32>
    %50 = vector.shape_cast %49 : vector<8x16x32xf32> to vector<128x32xf32>
    %c0_19 = arith.constant 0 : index
    %c0_20 = arith.constant 0 : index
    %51 = vector.load %arg5[%c0_19, %c0_20] : memref<32x32xf32, #tpu.memory_space<vmem>>, vector<32x32xf32>
    %cst_21 = arith.constant dense<0.000000e+00> : vector<128x32xf32>
    %52 = tpu.matmul %50, %51, %cst_21 {dimension_numbers = #tpu.dot_dimension_numbers<[1], [0], [0], [1], [0, 0, 1, 1], [], []>} : vector<128x32xf32>, vector<32x32xf32>, vector<128x32xf32> -> vector<128x32xf32>
    %c0_22 = arith.constant 0 : index
    %c0_23 = arith.constant 0 : index
    %53 = vector.load %arg6[%c0_22, %c0_23] : memref<2x32xf32, #tpu.memory_space<vmem>>, vector<1x32xf32>
    %54 = vector.broadcast %53 : vector<1x32xf32> to vector<128x32xf32>
    %55 = arith.addf %52, %54 : vector<128x32xf32>
    %cst_24 = arith.constant 0.000000e+00 : f32
    %56 = vector.broadcast %cst_24 : f32 to vector<128x32xf32>
    %57 = arith.cmpf oge, %55, %56 : vector<128x32xf32>
    %c1_25 = arith.constant 1 : index
    %c0_26 = arith.constant 0 : index
    %58 = vector.load %arg6[%c1_25, %c0_26] : memref<2x32xf32, #tpu.memory_space<vmem>>, vector<1x32xf32>
    %59 = vector.broadcast %58 : vector<1x32xf32> to vector<128x32xf32>
    %60 = arith.mulf %59, %55 : vector<128x32xf32>
    %61 = arith.select %57, %55, %60 : vector<128x32xi1>, vector<128x32xf32>
    %62 = vector.shape_cast %61 : vector<128x32xf32> to vector<8x16x32xf32>
    %63 = arith.addf %1, %62 : vector<8x16x32xf32>
    %c0_27 = arith.constant 0 : index
    %c0_28 = arith.constant 0 : index
    %c0_29 = arith.constant 0 : index
    %c0_30 = arith.constant 0 : index
    %64 = vector.load %arg7[%c0_27, %c0_28, %c0_29, %c0_30] : memref<1x8x16x32xf32, #tpu.memory_space<vmem>>, vector<1x8x16x32xf32>
    %65 = vector.shape_cast %64 : vector<1x8x16x32xf32> to vector<8x16x32xf32>
    %66 = vector.shape_cast %63 : vector<8x16x32xf32> to vector<1x8x16x32xf32>
    tpu.vector_store %arg7[%c0_27, %c0_28, %c0_29, %c0_30], %66 {strides = array<i32>} : memref<1x8x16x32xf32, #tpu.memory_space<vmem>>, vector<1x8x16x32xf32>,
    return
  }
  func.func @transform_0(%arg0: i32, %arg1: i32) -> (i32, i32, i32, i32) {
    %c0_i32 = arith.constant 0 : i32
    %c0_i32_0 = arith.constant 0 : i32
    %c0_i32_1 = arith.constant 0 : i32
    return %arg0, %arg1, %c0_i32, %c0_i32_0 : i32, i32, i32, i32
  }
  func.func @transform_1(%arg0: i32, %arg1: i32) -> (i32, i32) {
    %c0_i32 = arith.constant 0 : i32
    %c0_i32_0 = arith.constant 0 : i32
    %c0_i32_1 = arith.constant 0 : i32
    return %c0_i32, %c0_i32_0 : i32, i32
  }
  func.func @transform_2(%arg0: i32, %arg1: i32) -> (i32, i32) {
    %c0_i32 = arith.constant 0 : i32
    %c0_i32_0 = arith.constant 0 : i32
    %c0_i32_1 = arith.constant 0 : i32
    return %c0_i32, %c0_i32_0 : i32, i32
  }
  func.func @transform_3(%arg0: i32, %arg1: i32) -> (i32, i32) {
    %c0_i32 = arith.constant 0 : i32
    %c0_i32_0 = arith.constant 0 : i32
    %c0_i32_1 = arith.constant 0 : i32
    return %c0_i32, %c0_i32_0 : i32, i32
  }
  func.func @transform_4(%arg0: i32, %arg1: i32) -> (i32, i32) {
    %c0_i32 = arith.constant 0 : i32
    %c0_i32_0 = arith.constant 0 : i32
    %c0_i32_1 = arith.constant 0 : i32
    return %c0_i32, %c0_i32_0 : i32, i32
  }
  func.func @transform_5(%arg0: i32, %arg1: i32) -> (i32, i32, i32, i32) {
    %c0_i32 = arith.constant 0 : i32
    %c0_i32_0 = arith.constant 0 : i32
    %c0_i32_1 = arith.constant 0 : i32
    return %arg0, %arg1, %c0_i32, %c0_i32_0 : i32, i32, i32, i32
  }
}

</mosaic_0001>

<llo_original>
// kernel: tpu_custom_call.1
$region0: #{tpu_custom_call.1}
  #allocation0 [shape = 'u32[]', space=smem, size = 0x4, offset = 0x4, fixed_abs, tag = 'smem constant byte address 0x4 - core index']
  #allocation1 [shape = 'u32[144,128]{1,0:T(1,128)}', space=vmem, size = 0x12000, scoped, tag = 'internal scratch']
  %s0 = inlined_call_operand.hbm [shape: f32[2,8,16,32], index: 0, kind: input, shape index: {}]
  %s1 = inlined_call_operand.hbm [shape: f32[32,96], index: 1, kind: input, shape index: {}]
  %s2 = inlined_call_operand.vmem [shape: f32[2,96], index: 2, kind: input, shape index: {}]
  %s3 = inlined_call_operand.hbm [shape: f32[32,32], index: 3, kind: input, shape index: {}]
  %s4 = inlined_call_operand.vmem [shape: f32[2,32], index: 4, kind: input, shape index: {}]
  %s5 = inlined_call_operand.hbm [shape: f32[2,8,16,32], index: 5, kind: output, shape index: {}]
  %s6 = sld [smem:[#allocation0]]
  $region65: #{tpu_custom_call.1} parent=0
    _
  %s8 = ssub.s32 1, %s6
  %s9 = scalar_select 0, %s8, %s6
  $region1: #{tpu_custom_call.1} parent=0
    #allocation2 [shape = 'u8[131072]{0}', space=vmem, size = 0x20000, scoped, tag = 'input window, operand 0']
    #allocation3 [shape = 's32[2]{0}', space=sflag, size = 0x8, scoped, tag = 'scoped memory for tpu_custom_call.1']
    #allocation4 [shape = 's32[2]{0}', space=sflag, size = 0x8, scoped, tag = 'scoped memory for tpu_custom_call.1']
    #allocation5 [shape = 'u8[16384]{0}', space=vmem, size = 0x4000, scoped, tag = 'input window, operand 1, single buffered']
    #allocation6 [shape = 's32[1]{0}', space=sflag, size = 0x4, scoped, tag = 'scoped memory for tpu_custom_call.1']
    #allocation7 [shape = 'u8[16384]{0}', space=vmem, size = 0x4000, scoped, tag = 'input window, operand 3, single buffered']
    #allocation8 [shape = 'u8[131072]{0}', space=vmem, size = 0x20000, scoped, tag = 'output window, operand 0']
    %10 = vsyncpa [#allocation3], 0
    %s11 = scalar_lea.sflag [#allocation3], 1
    %12 = vsyncpa %s11, 0
    %13 = vsyncpa [#allocation6], 0
    %14 = vsyncpa [#allocation4], 0
    %s15 = scalar_lea.sflag [#allocation4], 1
    %16 = vsyncpa %s15, 0
    loop: start=0, step=1, limit=4
    $region2: #{tpu_custom_call.1} parent=1 // loop_pre_header
      _
    $region3: #{tpu_custom_call.1} parent=1 // loop_header
      %s18 = sphi 0, %s22
      %p19 = scmp.ge.s32.totalorder %s18, 4
      %s25 = sphi 0, %s37
      %s26 = sphi 0, %s33
      %s27 = sphi 0, %s25
      %s28 = sphi 0, %s26
      %s29 = sphi 0, %s27
      %s30 = sphi 0, %s28
      %s42 = sphi 0, %s44
      %s45 = sphi 0, %s42
      %s46 = sphi 0, %s45
      %s62 = sphi 0, %s46
      %s66 = sphi 0, %s66
      %s68 = sphi 0, %s66
      %s69 = sphi 0, %s68
      %s83 = sphi 0, %s69
      %s87 = sphi 0, %s87
      %s89 = sphi 0, %s87
      %s90 = sphi 0, %s89
      %s104 = sphi 0, %s90
      %s108 = sphi 0, %s108
      %s110 = sphi 0, %s108
      %s111 = sphi 0, %s110
      %s125 = sphi 0, %s111
      %s129 = sphi 0, %s129
      %s131 = sphi 0, %s129
      %s132 = sphi 0, %s131
      %s146 = sphi 0, %s132
      %s154 = sphi 0, %s156
      %s157 = sphi 0, %s154
      %s158 = sphi 0, %s157
      %s174 = sphi 0, %s158
    $region4: #{tpu_custom_call.1} parent=1 // loop_header_branch
      %21 = sbr.rel (%p19) target = $region8
    $region5: #{tpu_custom_call.1} parent=1 // loop_body
      %s23 = ssub.s32 %s18, 1
      %s24 = ssub.s32 %s18, 2
      %s31 = sadd.s32 1, %s26
      %p32 = scmp.ge.s32.totalorder %s31, 1
      %s33 = scalar_select %p32, 0, %s31
      %s34 = sadd.s32 1, %s25
      %s35 = scalar_select %p32, %s34, %s25
      %p36 = scmp.ge.s32.totalorder %s35, 2
      %s37 = scalar_select %p36, 0, %s35
      %s38 = ssub.s32 %s25, %s37
      %s39 = ssub.s32 %s26, %s33
      %s40 = sor.u32 %s38, %s39
      %p41 = scmp.eq.s32.totalorder %s40, 0
      %s43 = sadd.s32 %s42, 1
      %s44 = scalar_select %p41, %s42, %s43
      %p47 = pneg %p41
      %p48 = scmp.eq.s32.totalorder %s18, 1
      %p49 = por %p47, %p48
      %p50 = scmp.ne.s32.totalorder %s42, %s45
      %p51 = scmp.eq.s32.totalorder %s18, 0
      %p52 = por %p50, %p51
      %p53 = scmp.ne.s32.totalorder %s42, %s45
      %p54 = scmp.eq.s32.totalorder %s23, 1
      %p55 = por %p53, %p54
      %p56 = scmp.ne.s32.totalorder %s45, %s46
      %p57 = scmp.eq.s32.totalorder %s23, 0
      %p58 = por %p56, %p57
      %p59 = scmp.ne.s32.totalorder %s45, %s46
      %p60 = scmp.eq.s32.totalorder %s24, 1
      %p61 = por %p59, %p60
      %p63 = scmp.ne.s32.totalorder %s46, %s62
      %p64 = scmp.eq.s32.totalorder %s24, 0
      %p65 = por %p63, %p64
      %s67 = sadd.s32 %s66, 1
      %p70 = scmp.eq.s32.totalorder %s18, 1
      %p71 = scmp.ne.s32.totalorder %s66, %s68
      %p72 = scmp.eq.s32.totalorder %s18, 0
      %p73 = por %p71, %p72
      %p74 = scmp.ne.s32.totalorder %s66, %s68
      %p75 = scmp.eq.s32.totalorder %s23, 1
      %p76 = por %p74, %p75
      %p77 = scmp.ne.s32.totalorder %s68, %s69
      %p78 = scmp.eq.s32.totalorder %s23, 0
      %p79 = por %p77, %p78
      %p80 = scmp.ne.s32.totalorder %s68, %s69
      %p81 = scmp.eq.s32.totalorder %s24, 1
      %p82 = por %p80, %p81
      %p84 = scmp.ne.s32.totalorder %s69, %s83
      %p85 = scmp.eq.s32.totalorder %s24, 0
      %p86 = por %p84, %p85
      %s88 = sadd.s32 %s87, 1
      %p91 = scmp.eq.s32.totalorder %s18, 1
      %p92 = scmp.ne.s32.totalorder %s87, %s89
      %p93 = scmp.eq.s32.totalorder %s18, 0
      %p94 = por %p92, %p93
      %p95 = scmp.ne.s32.totalorder %s87, %s89
      %p96 = scmp.eq.s32.totalorder %s23, 1
      %p97 = por %p95, %p96
      %p98 = scmp.ne.s32.totalorder %s89, %s90
      %p99 = scmp.eq.s32.totalorder %s23, 0
      %p100 = por %p98, %p99
      %p101 = scmp.ne.s32.totalorder %s89, %s90
      %p102 = scmp.eq.s32.totalorder %s24, 1
      %p103 = por %p101, %p102
      %p105 = scmp.ne.s32.totalorder %s90, %s104
      %p106 = scmp.eq.s32.totalorder %s24, 0
      %p107 = por %p105, %p106
      %s109 = sadd.s32 %s108, 1
      %p112 = scmp.eq.s32.totalorder %s18, 1
      %p113 = scmp.ne.s32.totalorder %s108, %s110
      %p114 = scmp.eq.s32.totalorder %s18, 0
      %p115 = por %p113, %p114
      %p116 = scmp.ne.s32.totalorder %s108, %s110
      %p117 = scmp.eq.s32.totalorder %s23, 1
      %p118 = por %p116, %p117
      %p119 = scmp.ne.s32.totalorder %s110, %s111
      %p120 = scmp.eq.s32.totalorder %s23, 0
      %p121 = por %p119, %p120
      %p122 = scmp.ne.s32.totalorder %s110, %s111
      %p123 = scmp.eq.s32.totalorder %s24, 1
      %p124 = por %p122, %p123
      %p126 = scmp.ne.s32.totalorder %s111, %s125
      %p127 = scmp.eq.s32.totalorder %s24, 0
      %p128 = por %p126, %p127
      %s130 = sadd.s32 %s129, 1
      %p133 = scmp.eq.s32.totalorder %s18, 1
      %p134 = scmp.ne.s32.totalorder %s129, %s131
      %p135 = scmp.eq.s32.totalorder %s18, 0
      %p136 = por %p134, %p135
      %p137 = scmp.ne.s32.totalorder %s129, %s131
      %p138 = scmp.eq.s32.totalorder %s23, 1
      %p139 = por %p137, %p138
      %p140 = scmp.ne.s32.totalorder %s131, %s132
      %p141 = scmp.eq.s32.totalorder %s23, 0
      %p142 = por %p140, %p141
      %p143 = scmp.ne.s32.totalorder %s131, %s132
      %p144 = scmp.eq.s32.totalorder %s24, 1
      %p145 = por %p143, %p144
      %p147 = scmp.ne.s32.totalorder %s132, %s146
      %p148 = scmp.eq.s32.totalorder %s24, 0
      %p149 = por %p147, %p148
      %s150 = ssub.s32 %s25, %s37
      %s151 = ssub.s32 %s26, %s33
      %s152 = sor.u32 %s150, %s151
      %p153 = scmp.eq.s32.totalorder %s152, 0
      %s155 = sadd.s32 %s154, 1
      %s156 = scalar_select %p153, %s154, %s155
      %p159 = pneg %p153
      %p160 = scmp.eq.s32.totalorder %s18, 1
      %p161 = por %p159, %p160
      %p162 = scmp.ne.s32.totalorder %s154, %s157
      %p163 = scmp.eq.s32.totalorder %s18, 0
      %p164 = por %p162, %p163
      %p165 = scmp.ne.s32.totalorder %s154, %s157
      %p166 = scmp.eq.s32.totalorder %s23, 1
      %p167 = por %p165, %p166
      %p168 = scmp.ne.s32.totalorder %s157, %s158
      %p169 = scmp.eq.s32.totalorder %s23, 0
      %p170 = por %p168, %p169
      %p171 = scmp.ne.s32.totalorder %s157, %s158
      %p172 = scmp.eq.s32.totalorder %s24, 1
      %p173 = por %p171, %p172
      %p175 = scmp.ne.s32.totalorder %s158, %s174
      %p176 = scmp.eq.s32.totalorder %s24, 0
      %p177 = por %p175, %p176
      %p178 = scmp.le.s32.totalorder 1, %s18
      %p179 = scmp.lt.s32.totalorder %s18, 3
      %p180 = pnand %p178, %p179
      %p181 = pneg %p180
      // Predicated region
      $region9: #{tpu_custom_call.1} parent=5 // pred_check
        _
      $region10: #{tpu_custom_call.1} parent=5 // pred_check_branch
        %183 = sbr.rel (%p180) target = $region12
      $region11: #{tpu_custom_call.1} parent=5 // pred_region
        %s184 = ssub.s32 %s18, 1
        // Predicated region
        $region13: #{tpu_custom_call.1} parent=11 // pred_check
          %p185 = pneg %p79
        $region14: #{tpu_custom_call.1} parent=11 // pred_check_branch
          %187 = sbr.rel (%p185) target = $region16
        $region15: #{tpu_custom_call.1} parent=11 // pred_region
          %s189 = ssub.s32 512, 512
          %190 = vsyncadd [#allocation6], %s189
          %s191 = sshll.u32 [#allocation5], 4
          %s192 = int_to_ptr.vmem [resolvable:$true] %s191
          %197 = dma.hbm_to_vmem [thread:$0]  %s1, 512, %s192, [#allocation6], 128, 128, 8
        $region16: #{tpu_custom_call.1} parent=11 // pred_fallthru
          _
        // Predicated region
        $region17: #{tpu_custom_call.1} parent=11 // pred_check
          %p198 = pneg %p100
        $region18: #{tpu_custom_call.1} parent=11 // pred_check_branch
          %200 = sbr.rel (%p198) target = $region20
        $region19: #{tpu_custom_call.1} parent=11 // pred_region
          _
        $region20: #{tpu_custom_call.1} parent=11 // pred_fallthru
          _
        // Predicated region
        $region21: #{tpu_custom_call.1} parent=11 // pred_check
          %p201 = pneg %p121
        $region22: #{tpu_custom_call.1} parent=11 // pred_check_branch
          %203 = sbr.rel (%p201) target = $region24
        $region23: #{tpu_custom_call.1} parent=11 // pred_region
          %s205 = ssub.s32 512, 512
          %206 = vsyncadd [#allocation6], %s205
          %s207 = sshll.u32 [#allocation7], 4
          %s208 = int_to_ptr.vmem [resolvable:$true] %s207
          %213 = dma.hbm_to_vmem [thread:$0]  %s3, 512, %s208, [#allocation6], 128, 128, 8
        $region24: #{tpu_custom_call.1} parent=11 // pred_fallthru
          _
        // Predicated region
        $region25: #{tpu_custom_call.1} parent=11 // pred_check
          %p214 = pneg %p142
        $region26: #{tpu_custom_call.1} parent=11 // pred_check_branch
          %216 = sbr.rel (%p214) target = $region28
        $region27: #{tpu_custom_call.1} parent=11 // pred_region
          _
        $region28: #{tpu_custom_call.1} parent=11 // pred_fallthru
          _
      $region12: #{tpu_custom_call.1} parent=5 // pred_fallthru
        _
      %p217 = scmp.lt.s32.totalorder %s18, 2
      // Predicated region
      $region29: #{tpu_custom_call.1} parent=5 // pred_check
        %p218 = pneg %p217
      $region30: #{tpu_custom_call.1} parent=5 // pred_check_branch
        %220 = sbr.rel (%p218) target = $region32
      $region31: #{tpu_custom_call.1} parent=5 // pred_region
        // Predicated region
        $region33: #{tpu_custom_call.1} parent=31 // pred_check
          %p221 = pneg %p52
        $region34: #{tpu_custom_call.1} parent=31 // pred_check_branch
          %223 = sbr.rel (%p221) target = $region36
        $region35: #{tpu_custom_call.1} parent=31 // pred_region
          %s224 = sand.u32 %s42, 1
          %s225 = scalar_lea.sflag [#allocation3], %s224
          %s226 = sand.u32 %s42, 1
          %s227 = smul.addr %s226, 128
          %s228 = scalar_lea.vmem [#allocation2], %s227
          %s229 = smul.u32 8, %s26
          %s231 = ssub.s32 2048, 2048
          %232 = vsyncadd %s225, %s231
          %s233 = smul.addr %s229, 2
          %s234 = smul.addr %s25, 16
          %s235 = sadd.s32 %s233, %s234
          %s236 = smul.addr %s235, 128
          %s237 = scalar_lea.hbm %s0, %s236
          %s238 = sshll.u32 %s228, 4
          %s239 = int_to_ptr.vmem [resolvable:$true] %s238
          %244 = dma.hbm_to_vmem [thread:$0]  %s237, 2048, %s239, %s225, 128, 128, 8
        $region36: #{tpu_custom_call.1} parent=31 // pred_fallthru
          _
      $region32: #{tpu_custom_call.1} parent=5 // pred_fallthru
        _
      %p245 = scmp.le.s32.totalorder 1, %s18
      %p246 = scmp.lt.s32.totalorder %s18, 3
      %p247 = pnand %p245, %p246
      %p248 = pneg %p247
      // Predicated region
      $region37: #{tpu_custom_call.1} parent=5 // pred_check
        _
      $region38: #{tpu_custom_call.1} parent=5 // pred_check_branch
        %250 = sbr.rel (%p247) target = $region40
      $region39: #{tpu_custom_call.1} parent=5 // pred_region
        %s251 = ssub.s32 %s18, 1
        %s252 = sand.u32 %s45, 1
        %s253 = scalar_lea.sflag [#allocation3], %s252
        %s254 = sand.u32 %s45, 1
        %s255 = smul.addr %s254, 128
        %s256 = scalar_lea.vmem [#allocation2], %s255
        // Predicated region
        $region41: #{tpu_custom_call.1} parent=39 // pred_check
          %p257 = pneg %p58
        $region42: #{tpu_custom_call.1} parent=39 // pred_check_branch
          %259 = sbr.rel (%p257) target = $region44
        $region43: #{tpu_custom_call.1} parent=39 // pred_region
          %260 = dma.done %s253, 2048
        $region44: #{tpu_custom_call.1} parent=39 // pred_fallthru
          _
        // Predicated region
        $region45: #{tpu_custom_call.1} parent=39 // pred_check
          %p261 = pneg %p79
        $region46: #{tpu_custom_call.1} parent=39 // pred_check_branch
          %263 = sbr.rel (%p261) target = $region48
        $region47: #{tpu_custom_call.1} parent=39 // pred_region
          %264 = dma.done [#allocation6], 512
        $region48: #{tpu_custom_call.1} parent=39 // pred_fallthru
          _
        // Predicated region
        $region49: #{tpu_custom_call.1} parent=39 // pred_check
          %p265 = pneg %p121
        $region50: #{tpu_custom_call.1} parent=39 // pred_check_branch
          %267 = sbr.rel (%p265) target = $region52
        $region51: #{tpu_custom_call.1} parent=39 // pred_region
          %268 = dma.done [#allocation6], 512
        $region52: #{tpu_custom_call.1} parent=39 // pred_fallthru
          _
        %s269 = sand.u32 %s45, 1
        %s270 = scalar_lea.sflag [#allocation3], %s269
        %s271 = sand.u32 %s45, 1
        %s272 = smul.addr %s271, 128
        %s273 = scalar_lea.vmem [#allocation2], %s272
        %p274 = pneg %p58
        %p275 = pneg %p55
        %p276 = pneg %p79
        %p277 = pneg %p76
        %p278 = pneg %p100
        %p279 = pneg %p97
        %p280 = pneg %p121
        %p281 = pneg %p118
        %p282 = pneg %p142
        %p283 = pneg %p139
        %p284 = pneg %p170
        %p285 = pneg %p167
        %s286 = sand.u32 %s157, 1
        %s287 = scalar_lea.sflag [#allocation4], %s286
        %s288 = sand.u32 %s157, 1
        %s289 = smul.addr %s288, 128
        %s290 = scalar_lea.vmem [#allocation8], %s289
        %s291 = smul.u32 8, %s28
        %s292 = smul.u32 8, %s28
        %v293 = vld [vmem:[%s256] sm:$0xff]
        %v294 = vld [vmem:[%s256 + $0x8] sm:$0xff]
        %v295 = vld [vmem:[%s256 + $0x10] sm:$0xff]
        %v296 = vld [vmem:[%s256 + $0x18] sm:$0xff]
        %v297 = vld [vmem:[%s256 + $0x20] sm:$0xff]
        %v298 = vld [vmem:[%s256 + $0x28] sm:$0xff]
        %v299 = vld [vmem:[%s256 + $0x30] sm:$0xff]
        %v300 = vld [vmem:[%s256 + $0x38] sm:$0xff]
        %v301 = vld [vmem:[%s256 + $0x40] sm:$0xff]
        %v302 = vld [vmem:[%s256 + $0x48] sm:$0xff]
        %v303 = vld [vmem:[%s256 + $0x50] sm:$0xff]
        %v304 = vld [vmem:[%s256 + $0x58] sm:$0xff]
        %v305 = vld [vmem:[%s256 + $0x60] sm:$0xff]
        %v306 = vld [vmem:[%s256 + $0x68] sm:$0xff]
        %v307 = vld [vmem:[%s256 + $0x70] sm:$0xff]
        %v308 = vld [vmem:[%s256 + $0x78] sm:$0xff]
        %v309 = vld [vmem:[#allocation5] sm:$0xff]
        %v310 = vld [vmem:[#allocation5 + $0x8] sm:$0xff]
        %v311 = vld [vmem:[#allocation5 + $0x10] sm:$0xff]
        %v312 = vld [vmem:[#allocation5 + $0x18] sm:$0xff]
        %v313 = vld [vmem:[%s2] sm:$0x1]
        %v314 = vlaneseq
        %v315 = vshrl.u32 %v314, 7
        %v316 = vsub.s32 0, %v315
        %v317 = vrot.slane %v313, %v316
        %vm318 = vcmask 261120
        %v320 = vsel %vm318, %v293, 0
        %v323 = vsel %vm318, %v294, 0
        %v326 = vsel %vm318, %v295, 0
        %v329 = vsel %vm318, %v296, 0
        %v332 = vsel %vm318, %v297, 0
        %v335 = vsel %vm318, %v298, 0
        %v338 = vsel %vm318, %v299, 0
        %v341 = vsel %vm318, %v300, 0
        %v344 = vsel %vm318, %v301, 0
        %v347 = vsel %vm318, %v302, 0
        %v350 = vsel %vm318, %v303, 0
        %v353 = vsel %vm318, %v304, 0
        %v356 = vsel %vm318, %v305, 0
        %v359 = vsel %vm318, %v306, 0
        %v362 = vsel %vm318, %v307, 0
        %v365 = vsel %vm318, %v308, 0
        %367 = vmatprep.subr.mxu0 0.0
        %368 = vmatpush1.msra.mxu0 %v309
        %369 = vmatprep.subr.mxu0 0.0
        %370 = vmatpush1.msra.mxu0 %v310
        %371 = vmatprep.subr.mxu0 0.0
        %372 = vmatpush1.msra.mxu0 %v311
        %373 = vmatprep.subr.mxu0 0.0
        %374 = vmatpush1.msra.mxu0 %v312
        %375 = vmatprep.subr.mxu0 0.0
        %376 = vmatpush1.msra.mxu0 0.0
        %377 = vmatprep.subr.mxu0 0.0
        %378 = vmatpush1.msra.mxu0 0.0
        %379 = vmatprep.subr.mxu0 0.0
        %380 = vmatpush1.msra.mxu0 0.0
        %381 = vmatprep.subr.mxu0 0.0
        %382 = vmatpush1.msra.mxu0 0.0
        %383 = vmatprep.subr.mxu0 0.0
        %384 = vmatpush1.msra.mxu0 0.0
        %385 = vmatprep.subr.mxu0 0.0
        %386 = vmatpush1.msra.mxu0 0.0
        %387 = vmatprep.subr.mxu0 0.0
        %388 = vmatpush1.msra.mxu0 0.0
        %389 = vmatprep.subr.mxu0 0.0
        %390 = vmatpush1.msra.mxu0 0.0
        %391 = vmatprep.subr.mxu0 0.0
        %392 = vmatpush1.msra.mxu0 0.0
        %393 = vmatprep.subr.mxu0 0.0
        %394 = vmatpush1.msra.mxu0 0.0
        %395 = vmatprep.subr.mxu0 0.0
        %396 = vmatpush1.msra.mxu0 0.0
        %397 = vmatprep.subr.mxu0 0.0
        %398 = vmatpush1.msra.mxu0 0.0
        %399 = vmatprep.subr.mxu0 0.0
        %400 = vmatpush1.msra.mxu0 0.0
        %401 = vmatprep.subr.mxu0 0.0
        %402 = vmatpush1.msra.mxu0 0.0
        %403 = vmatprep.subr.mxu0 0.0
        %404 = vmatpush1.msra.mxu0 0.0
        %405 = vmatprep.subr.mxu0 0.0
        %406 = vmatpush1.msra.mxu0 0.0
        %407 = vmatprep.subr.mxu0 0.0
        %408 = vmatpush1.msra.mxu0 0.0
        %409 = vmatprep.subr.mxu0 0.0
        %410 = vmatpush1.msra.mxu0 0.0
        %411 = vmatprep.subr.mxu0 0.0
        %412 = vmatpush1.msra.mxu0 0.0
        %413 = vmatprep.subr.mxu0 0.0
        %414 = vmatpush1.msra.mxu0 0.0
        %415 = vmatprep.subr.mxu0 0.0
        %416 = vmatpush1.msra.mxu0 0.0
        %417 = vmatprep.subr.mxu0 0.0
        %418 = vmatpush1.msra.mxu0 0.0
        %419 = vmatprep.subr.mxu0 0.0
        %420 = vmatpush1.msra.mxu0 0.0
        %421 = vmatprep.subr.mxu0 0.0
        %422 = vmatpush1.msra.mxu0 0.0
        %423 = vmatprep.subr.mxu0 0.0
        %424 = vmatpush1.msra.mxu0 0.0
        %425 = vmatprep.subr.mxu0 0.0
        %426 = vmatpush1.msra.mxu0 0.0
        %427 = vmatprep.subr.mxu0 0.0
        %428 = vmatpush1.msra.mxu0 0.0
        %429 = vmatprep.subr.mxu0 0.0
        %430 = vmatpush1.msra.mxu0 0.0
        %431 = vmatprep.mubr.f32.mxu0 0.0
        %432 = vmatmul.mubr.f32.gmra.mrb[0].mxu0 %v320
        %v433 = vpop.f32.mrb[0].mxu0
        %v434 = vadd.f32 %v317, %v433
        %v435 = vpop.f32.mrb[0].mxu0
        %436 = vmatprep.mubr.f32.mxu0 0.0
        %437 = vmatmul.mubr.f32.gmra.mrb[0].mxu0 %v323
        %v438 = vpop.f32.mrb[0].mxu0
        %v439 = vadd.f32 %v317, %v438
        %v440 = vpop.f32.mrb[0].mxu0
        %441 = vmatprep.mubr.f32.mxu0 0.0
        %442 = vmatmul.mubr.f32.gmra.mrb[0].mxu0 %v326
        %v443 = vpop.f32.mrb[0].mxu0
        %v444 = vadd.f32 %v317, %v443
        %v445 = vpop.f32.mrb[0].mxu0
        %446 = vmatprep.mubr.f32.mxu0 0.0
        %447 = vmatmul.mubr.f32.gmra.mrb[0].mxu0 %v329
        %v448 = vpop.f32.mrb[0].mxu0
        %v449 = vadd.f32 %v317, %v448
        %v450 = vpop.f32.mrb[0].mxu0
        %451 = vmatprep.mubr.f32.mxu0 0.0
        %452 = vmatmul.mubr.f32.gmra.mrb[0].mxu0 %v332
        %v453 = vpop.f32.mrb[0].mxu0
        %v454 = vadd.f32 %v317, %v453
        %v455 = vpop.f32.mrb[0].mxu0
        %456 = vmatprep.mubr.f32.mxu0 0.0
        %457 = vmatmul.mubr.f32.gmra.mrb[0].mxu0 %v335
        %v458 = vpop.f32.mrb[0].mxu0
        %v459 = vadd.f32 %v317, %v458
        %v460 = vpop.f32.mrb[0].mxu0
        %461 = vmatprep.mubr.f32.mxu0 0.0
        %462 = vmatmul.mubr.f32.gmra.mrb[0].mxu0 %v338
        %v463 = vpop.f32.mrb[0].mxu0
        %v464 = vadd.f32 %v317, %v463
        %v465 = vpop.f32.mrb[0].mxu0
        %466 = vmatprep.mubr.f32.mxu0 0.0
        %467 = vmatmul.mubr.f32.gmra.mrb[0].mxu0 %v341
        %v468 = vpop.f32.mrb[0].mxu0
        %v469 = vadd.f32 %v317, %v468
        %v470 = vpop.f32.mrb[0].mxu0
        %471 = vmatprep.mubr.f32.mxu0 0.0
        %472 = vmatmul.mubr.f32.gmra.mrb[0].mxu0 %v344
        %v473 = vpop.f32.mrb[0].mxu0
        %v474 = vadd.f32 %v317, %v473
        %v475 = vpop.f32.mrb[0].mxu0
        %476 = vmatprep.mubr.f32.mxu0 0.0
        %477 = vmatmul.mubr.f32.gmra.mrb[0].mxu0 %v347
        %v478 = vpop.f32.mrb[0].mxu0
        %v479 = vadd.f32 %v317, %v478
        %v480 = vpop.f32.mrb[0].mxu0
        %481 = vmatprep.mubr.f32.mxu0 0.0
        %482 = vmatmul.mubr.f32.gmra.mrb[0].mxu0 %v350
        %v483 = vpop.f32.mrb[0].mxu0
        %v484 = vadd.f32 %v317, %v483
        %v485 = vpop.f32.mrb[0].mxu0
        %486 = vmatprep.mubr.f32.mxu0 0.0
        %487 = vmatmul.mubr.f32.gmra.mrb[0].mxu0 %v353
        %v488 = vpop.f32.mrb[0].mxu0
        %v489 = vadd.f32 %v317, %v488
        %v490 = vpop.f32.mrb[0].mxu0
        %491 = vmatprep.mubr.f32.mxu0 0.0
        %492 = vmatmul.mubr.f32.gmra.mrb[0].mxu0 %v356
        %v493 = vpop.f32.mrb[0].mxu0
        %v494 = vadd.f32 %v317, %v493
        %v495 = vpop.f32.mrb[0].mxu0
        %496 = vmatprep.mubr.f32.mxu0 0.0
        %497 = vmatmul.mubr.f32.gmra.mrb[0].mxu0 %v359
        %v498 = vpop.f32.mrb[0].mxu0
        %v499 = vadd.f32 %v317, %v498
        %v500 = vpop.f32.mrb[0].mxu0
        %501 = vmatprep.mubr.f32.mxu0 0.0
        %502 = vmatmul.mubr.f32.gmra.mrb[0].mxu0 %v362
        %v503 = vpop.f32.mrb[0].mxu0
        %v504 = vadd.f32 %v317, %v503
        %v505 = vpop.f32.mrb[0].mxu0
        %506 = vmatprep.mubr.f32.mxu0 0.0
        %507 = vmatmul.mubr.f32.gmra.mrb[0].mxu0 %v365
        %v508 = vpop.f32.mrb[0].mxu0
        %v509 = vadd.f32 %v317, %v508
        %v510 = vpop.f32.mrb[0].mxu0
        %511 = vdwg.mxu0
        %vm512 = vcmp.ge.f32.partialorder %v434, 0.0
        %vm513 = vcmp.ge.f32.partialorder %v439, 0.0
        %vm514 = vcmp.ge.f32.partialorder %v444, 0.0
        %vm515 = vcmp.ge.f32.partialorder %v449, 0.0
        %vm516 = vcmp.ge.f32.partialorder %v454, 0.0
        %vm517 = vcmp.ge.f32.partialorder %v459, 0.0
        %vm518 = vcmp.ge.f32.partialorder %v464, 0.0
        %vm519 = vcmp.ge.f32.partialorder %v469, 0.0
        %vm520 = vcmp.ge.f32.partialorder %v474, 0.0
        %vm521 = vcmp.ge.f32.partialorder %v479, 0.0
        %vm522 = vcmp.ge.f32.partialorder %v484, 0.0
        %vm523 = vcmp.ge.f32.partialorder %v489, 0.0
        %vm524 = vcmp.ge.f32.partialorder %v494, 0.0
        %vm525 = vcmp.ge.f32.partialorder %v499, 0.0
        %vm526 = vcmp.ge.f32.partialorder %v504, 0.0
        %vm527 = vcmp.ge.f32.partialorder %v509, 0.0
        %v528 = vld [vmem:[%s2 + $0x1] sm:$0x1]
        %v529 = vlaneseq
        %v530 = vshrl.u32 %v529, 7
        %v531 = vsub.s32 0, %v530
        %v532 = vrot.slane %v528, %v531
        %v533 = vmul.f32 %v532, %v434
        %v534 = vmul.f32 %v532, %v439
        %v535 = vmul.f32 %v532, %v444
        %v536 = vmul.f32 %v532, %v449
        %v537 = vmul.f32 %v532, %v454
        %v538 = vmul.f32 %v532, %v459
        %v539 = vmul.f32 %v532, %v464
        %v540 = vmul.f32 %v532, %v469
        %v541 = vmul.f32 %v532, %v474
        %v542 = vmul.f32 %v532, %v479
        %v543 = vmul.f32 %v532, %v484
        %v544 = vmul.f32 %v532, %v489
        %v545 = vmul.f32 %v532, %v494
        %v546 = vmul.f32 %v532, %v499
        %v547 = vmul.f32 %v532, %v504
        %v548 = vmul.f32 %v532, %v509
        %v549 = vsel %vm512, %v434, %v533
        %v550 = vsel %vm513, %v439, %v534
        %v551 = vsel %vm514, %v444, %v535
        %v552 = vsel %vm515, %v449, %v536
        %v553 = vsel %vm516, %v454, %v537
        %v554 = vsel %vm517, %v459, %v538
        %v555 = vsel %vm518, %v464, %v539
        %v556 = vsel %vm519, %v469, %v540
        %v557 = vsel %vm520, %v474, %v541
        %v558 = vsel %vm521, %v479, %v542
        %v559 = vsel %vm522, %v484, %v543
        %v560 = vsel %vm523, %v489, %v544
        %v561 = vsel %vm524, %v494, %v545
        %v562 = vsel %vm525, %v499, %v546
        %v563 = vsel %vm526, %v504, %v547
        %v564 = vsel %vm527, %v509, %v548
        %565 = vxpose.xlu0.b32.start [1/16] %v549, 128
        %566 = vxpose.xlu0.b32.cont [2/16] %v550, 128
        %567 = vxpose.xlu0.b32.cont [3/16] 0.0, 128
        %568 = vxpose.xlu0.b32.cont [4/16] 0.0, 128
        %569 = vxpose.xlu0.b32.cont [5/16] 0.0, 128
        %570 = vxpose.xlu0.b32.cont [6/16] 0.0, 128
        %571 = vxpose.xlu0.b32.cont [7/16] 0.0, 128
        %572 = vxpose.xlu0.b32.cont [8/16] 0.0, 128
        %573 = vxpose.xlu0.b32.cont [9/16] 0.0, 128
        %574 = vxpose.xlu0.b32.cont [10/16] 0.0, 128
        %575 = vxpose.xlu0.b32.cont [11/16] 0.0, 128
        %576 = vxpose.xlu0.b32.cont [12/16] 0.0, 128
        %577 = vxpose.xlu0.b32.cont [13/16] 0.0, 128
        %578 = vxpose.xlu0.b32.cont [14/16] 0.0, 128
        %579 = vxpose.xlu0.b32.cont [15/16] 0.0, 128
        %580 = vxpose.xlu0.b32.end [16/16] 0.0, 128
        %v581 = vpop.trf.xlu0
        %v582 = vpop.trf.xlu0
        %v583 = vpop.trf.xlu0
        %v584 = vpop.trf.xlu0
        %v585 = vpop.trf.xlu0
        %v586 = vpop.trf.xlu0
        %v587 = vpop.trf.xlu0
        %v588 = vpop.trf.xlu0
        %v589 = vpop.trf.xlu0
        %v590 = vpop.trf.xlu0
        %v591 = vpop.trf.xlu0
        %v592 = vpop.trf.xlu0
        %v593 = vpop.trf.xlu0
        %v594 = vpop.trf.xlu0
        %v595 = vpop.trf.xlu0
        %v596 = vpop.trf.xlu0
        %597 = vxpose.xlu0.b32.start [1/16] %v551, 128
        %598 = vxpose.xlu0.b32.cont [2/16] %v552, 128
        %599 = vxpose.xlu0.b32.cont [3/16] 0.0, 128
        %600 = vxpose.xlu0.b32.cont [4/16] 0.0, 128
        %601 = vxpose.xlu0.b32.cont [5/16] 0.0, 128
        %602 = vxpose.xlu0.b32.cont [6/16] 0.0, 128
        %603 = vxpose.xlu0.b32.cont [7/16] 0.0, 128
        %604 = vxpose.xlu0.b32.cont [8/16] 0.0, 128
        %605 = vxpose.xlu0.b32.cont [9/16] 0.0, 128
        %606 = vxpose.xlu0.b32.cont [10/16] 0.0, 128
        %607 = vxpose.xlu0.b32.cont [11/16] 0.0, 128
        %608 = vxpose.xlu0.b32.cont [12/16] 0.0, 128
        %609 = vxpose.xlu0.b32.cont [13/16] 0.0, 128
        %610 = vxpose.xlu0.b32.cont [14/16] 0.0, 128
        %611 = vxpose.xlu0.b32.cont [15/16] 0.0, 128
        %612 = vxpose.xlu0.b32.end [16/16] 0.0, 128
        %v613 = vpop.trf.xlu0
        %v614 = vpop.trf.xlu0
        %v615 = vpop.trf.xlu0
        %v616 = vpop.trf.xlu0
        %v617 = vpop.trf.xlu0
        %v618 = vpop.trf.xlu0
        %v619 = vpop.trf.xlu0
        %v620 = vpop.trf.xlu0
        %v621 = vpop.trf.xlu0
        %v622 = vpop.trf.xlu0
        %v623 = vpop.trf.xlu0
        %v624 = vpop.trf.xlu0
        %v625 = vpop.trf.xlu0
        %v626 = vpop.trf.xlu0
        %v627 = vpop.trf.xlu0
        %v628 = vpop.trf.xlu0
        %629 = vxpose.xlu0.b32.start [1/16] %v553, 128
        %630 = vxpose.xlu0.b32.cont [2/16] %v554, 128
        %631 = vxpose.xlu0.b32.cont [3/16] 0.0, 128
        %632 = vxpose.xlu0.b32.cont [4/16] 0.0, 128
        %633 = vxpose.xlu0.b32.cont [5/16] 0.0, 128
        %634 = vxpose.xlu0.b32.cont [6/16] 0.0, 128
        %635 = vxpose.xlu0.b32.cont [7/16] 0.0, 128
        %636 = vxpose.xlu0.b32.cont [8/16] 0.0, 128
        %637 = vxpose.xlu0.b32.cont [9/16] 0.0, 128
        %638 = vxpose.xlu0.b32.cont [10/16] 0.0, 128
        %639 = vxpose.xlu0.b32.cont [11/16] 0.0, 128
        %640 = vxpose.xlu0.b32.cont [12/16] 0.0, 128
        %641 = vxpose.xlu0.b32.cont [13/16] 0.0, 128
        %642 = vxpose.xlu0.b32.cont [14/16] 0.0, 128
        %643 = vxpose.xlu0.b32.cont [15/16] 0.0, 128
        %644 = vxpose.xlu0.b32.end [16/16] 0.0, 128
        %v645 = vpop.trf.xlu0
        %v646 = vpop.trf.xlu0
        %v647 = vpop.trf.xlu0
        %v648 = vpop.trf.xlu0
        %v649 = vpop.trf.xlu0
        %v650 = vpop.trf.xlu0
        %v651 = vpop.trf.xlu0
        %v652 = vpop.trf.xlu0
        %v653 = vpop.trf.xlu0
        %v654 = vpop.trf.xlu0
        %v655 = vpop.trf.xlu0
        %v656 = vpop.trf.xlu0
        %v657 = vpop.trf.xlu0
        %v658 = vpop.trf.xlu0
        %v659 = vpop.trf.xlu0
        %v660 = vpop.trf.xlu0
        %661 = vxpose.xlu0.b32.start [1/16] %v555, 128
        %662 = vxpose.xlu0.b32.cont [2/16] %v556, 128
        %663 = vxpose.xlu0.b32.cont [3/16] 0.0, 128
        %664 = vxpose.xlu0.b32.cont [4/16] 0.0, 128
        %665 = vxpose.xlu0.b32.cont [5/16] 0.0, 128
        %666 = vxpose.xlu0.b32.cont [6/16] 0.0, 128
        %667 = vxpose.xlu0.b32.cont [7/16] 0.0, 128
        %668 = vxpose.xlu0.b32.cont [8/16] 0.0, 128
        %669 = vxpose.xlu0.b32.cont [9/16] 0.0, 128
        %670 = vxpose.xlu0.b32.cont [10/16] 0.0, 128
        %671 = vxpose.xlu0.b32.cont [11/16] 0.0, 128
        %672 = vxpose.xlu0.b32.cont [12/16] 0.0, 128
        %673 = vxpose.xlu0.b32.cont [13/16] 0.0, 128
        %674 = vxpose.xlu0.b32.cont [14/16] 0.0, 128
        %675 = vxpose.xlu0.b32.cont [15/16] 0.0, 128
        %676 = vxpose.xlu0.b32.end [16/16] 0.0, 128
        %v677 = vpop.trf.xlu0
        %v678 = vpop.trf.xlu0
        %v679 = vpop.trf.xlu0
        %v680 = vpop.trf.xlu0
        %v681 = vpop.trf.xlu0
        %v682 = vpop.trf.xlu0
        %v683 = vpop.trf.xlu0
        %v684 = vpop.trf.xlu0
        %v685 = vpop.trf.xlu0
        %v686 = vpop.trf.xlu0
        %v687 = vpop.trf.xlu0
        %v688 = vpop.trf.xlu0
        %v689 = vpop.trf.xlu0
        %v690 = vpop.trf.xlu0
        %v691 = vpop.trf.xlu0
        %v692 = vpop.trf.xlu0
        %693 = vxpose.xlu0.b32.start [1/16] %v557, 128
        %694 = vxpose.xlu0.b32.cont [2/16] %v558, 128
        %695 = vxpose.xlu0.b32.cont [3/16] 0.0, 128
        %696 = vxpose.xlu0.b32.cont [4/16] 0.0, 128
        %697 = vxpose.xlu0.b32.cont [5/16] 0.0, 128
        %698 = vxpose.xlu0.b32.cont [6/16] 0.0, 128
        %699 = vxpose.xlu0.b32.cont [7/16] 0.0, 128
        %700 = vxpose.xlu0.b32.cont [8/16] 0.0, 128
        %701 = vxpose.xlu0.b32.cont [9/16] 0.0, 128
        %702 = vxpose.xlu0.b32.cont [10/16] 0.0, 128
        %703 = vxpose.xlu0.b32.cont [11/16] 0.0, 128
        %704 = vxpose.xlu0.b32.cont [12/16] 0.0, 128
        %705 = vxpose.xlu0.b32.cont [13/16] 0.0, 128
        %706 = vxpose.xlu0.b32.cont [14/16] 0.0, 128
        %707 = vxpose.xlu0.b32.cont [15/16] 0.0, 128
        %708 = vxpose.xlu0.b32.end [16/16] 0.0, 128
        %v709 = vpop.trf.xlu0
        %v710 = vpop.trf.xlu0
        %v711 = vpop.trf.xlu0
        %v712 = vpop.trf.xlu0
        %v713 = vpop.trf.xlu0
        %v714 = vpop.trf.xlu0
        %v715 = vpop.trf.xlu0
        %v716 = vpop.trf.xlu0
        %v717 = vpop.trf.xlu0
        %v718 = vpop.trf.xlu0
        %v719 = vpop.trf.xlu0
        %v720 = vpop.trf.xlu0
        %v721 = vpop.trf.xlu0
        %v722 = vpop.trf.xlu0
        %v723 = vpop.trf.xlu0
        %v724 = vpop.trf.xlu0
        %725 = vxpose.xlu0.b32.start [1/16] %v559, 128
        %726 = vxpose.xlu0.b32.cont [2/16] %v560, 128
        %727 = vxpose.xlu0.b32.cont [3/16] 0.0, 128
        %728 = vxpose.xlu0.b32.cont [4/16] 0.0, 128
        %729 = vxpose.xlu0.b32.cont [5/16] 0.0, 128
        %730 = vxpose.xlu0.b32.cont [6/16] 0.0, 128
        %731 = vxpose.xlu0.b32.cont [7/16] 0.0, 128
        %732 = vxpose.xlu0.b32.cont [8/16] 0.0, 128
        %733 = vxpose.xlu0.b32.cont [9/16] 0.0, 128
        %734 = vxpose.xlu0.b32.cont [10/16] 0.0, 128
        %735 = vxpose.xlu0.b32.cont [11/16] 0.0, 128
        %736 = vxpose.xlu0.b32.cont [12/16] 0.0, 128
        %737 = vxpose.xlu0.b32.cont [13/16] 0.0, 128
        %738 = vxpose.xlu0.b32.cont [14/16] 0.0, 128
        %739 = vxpose.xlu0.b32.cont [15/16] 0.0, 128
        %740 = vxpose.xlu0.b32.end [16/16] 0.0, 128
        %v741 = vpop.trf.xlu0
        %v742 = vpop.trf.xlu0
        %v743 = vpop.trf.xlu0
        %v744 = vpop.trf.xlu0
        %v745 = vpop.trf.xlu0
        %v746 = vpop.trf.xlu0
        %v747 = vpop.trf.xlu0
        %v748 = vpop.trf.xlu0
        %v749 = vpop.trf.xlu0
        %v750 = vpop.trf.xlu0
        %v751 = vpop.trf.xlu0
        %v752 = vpop.trf.xlu0
        %v753 = vpop.trf.xlu0
        %v754 = vpop.trf.xlu0
        %v755 = vpop.trf.xlu0
        %v756 = vpop.trf.xlu0
        %757 = vxpose.xlu0.b32.start [1/16] %v561, 128
        %758 = vxpose.xlu0.b32.cont [2/16] %v562, 128
        %759 = vxpose.xlu0.b32.cont [3/16] 0.0, 128
        %760 = vxpose.xlu0.b32.cont [4/16] 0.0, 128
        %761 = vxpose.xlu0.b32.cont [5/16] 0.0, 128
        %762 = vxpose.xlu0.b32.cont [6/16] 0.0, 128
        %763 = vxpose.xlu0.b32.cont [7/16] 0.0, 128
        %764 = vxpose.xlu0.b32.cont [8/16] 0.0, 128
        %765 = vxpose.xlu0.b32.cont [9/16] 0.0, 128
        %766 = vxpose.xlu0.b32.cont [10/16] 0.0, 128
        %767 = vxpose.xlu0.b32.cont [11/16] 0.0, 128
        %768 = vxpose.xlu0.b32.cont [12/16] 0.0, 128
        %769 = vxpose.xlu0.b32.cont [13/16] 0.0, 128
        %770 = vxpose.xlu0.b32.cont [14/16] 0.0, 128
        %771 = vxpose.xlu0.b32.cont [15/16] 0.0, 128
        %772 = vxpose.xlu0.b32.end [16/16] 0.0, 128
        %v773 = vpop.trf.xlu0
        %v774 = vpop.trf.xlu0
        %v775 = vpop.trf.xlu0
        %v776 = vpop.trf.xlu0
        %v777 = vpop.trf.xlu0
        %v778 = vpop.trf.xlu0
        %v779 = vpop.trf.xlu0
        %v780 = vpop.trf.xlu0
        %v781 = vpop.trf.xlu0
        %v782 = vpop.trf.xlu0
        %v783 = vpop.trf.xlu0
        %v784 = vpop.trf.xlu0
        %v785 = vpop.trf.xlu0
        %v786 = vpop.trf.xlu0
        %v787 = vpop.trf.xlu0
        %v788 = vpop.trf.xlu0
        %789 = vxpose.xlu0.b32.start [1/16] %v563, 128
        %790 = vxpose.xlu0.b32.cont [2/16] %v564, 128
        %791 = vxpose.xlu0.b32.cont [3/16] 0.0, 128
        %792 = vxpose.xlu0.b32.cont [4/16] 0.0, 128
        %793 = vxpose.xlu0.b32.cont [5/16] 0.0, 128
        %794 = vxpose.xlu0.b32.cont [6/16] 0.0, 128
        %795 = vxpose.xlu0.b32.cont [7/16] 0.0, 128
        %796 = vxpose.xlu0.b32.cont [8/16] 0.0, 128
        %797 = vxpose.xlu0.b32.cont [9/16] 0.0, 128
        %798 = vxpose.xlu0.b32.cont [10/16] 0.0, 128
        %799 = vxpose.xlu0.b32.cont [11/16] 0.0, 128
        %800 = vxpose.xlu0.b32.cont [12/16] 0.0, 128
        %801 = vxpose.xlu0.b32.cont [13/16] 0.0, 128
        %802 = vxpose.xlu0.b32.cont [14/16] 0.0, 128
        %803 = vxpose.xlu0.b32.cont [15/16] 0.0, 128
        %804 = vxpose.xlu0.b32.end [16/16] 0.0, 128
        %v805 = vpop.trf.xlu0
        %v806 = vpop.trf.xlu0
        %v807 = vpop.trf.xlu0
        %v808 = vpop.trf.xlu0
        %v809 = vpop.trf.xlu0
        %v810 = vpop.trf.xlu0
        %v811 = vpop.trf.xlu0
        %v812 = vpop.trf.xlu0
        %v813 = vpop.trf.xlu0
        %v814 = vpop.trf.xlu0
        %v815 = vpop.trf.xlu0
        %v816 = vpop.trf.xlu0
        %v817 = vpop.trf.xlu0
        %v818 = vpop.trf.xlu0
        %v819 = vpop.trf.xlu0
        %v820 = vpop.trf.xlu0
        %823 = vrot.lane.b32.xlu0 %v549, 96
        %v824 = vpop.permute.xlu0 %823
        %825 = vrot.lane.b32.xlu0 %v550, 96
        %v826 = vpop.permute.xlu0 %825
        %vm829 = vcmask 130048
        %v831 = vsel %vm829, %v581, 0
        %v834 = vsel %vm829, %v582, 0
        %836 = vmatprep.subr.mxu0 0.0
        %837 = vmatpush1.msra.mxu0 %v824
        %838 = vmatprep.subr.mxu0 0.0
        %839 = vmatpush1.msra.mxu0 %v826
        %840 = vmatprep.subr.mxu0 0.0
        %841 = vmatpush1.msra.mxu0 0.0
        %842 = vmatprep.subr.mxu0 0.0
        %843 = vmatpush1.msra.mxu0 0.0
        %844 = vmatprep.subr.mxu0 0.0
        %845 = vmatpush1.msra.mxu0 0.0
        %846 = vmatprep.subr.mxu0 0.0
        %847 = vmatpush1.msra.mxu0 0.0
        %848 = vmatprep.subr.mxu0 0.0
        %849 = vmatpush1.msra.mxu0 0.0
        %850 = vmatprep.subr.mxu0 0.0
        %851 = vmatpush1.msra.mxu0 0.0
        %852 = vmatprep.subr.mxu0 0.0
        %853 = vmatpush1.msra.mxu0 0.0
        %854 = vmatprep.subr.mxu0 0.0
        %855 = vmatpush1.msra.mxu0 0.0
        %856 = vmatprep.subr.mxu0 0.0
        %857 = vmatpush1.msra.mxu0 0.0
        %858 = vmatprep.subr.mxu0 0.0
        %859 = vmatpush1.msra.mxu0 0.0
        %860 = vmatprep.subr.mxu0 0.0
        %861 = vmatpush1.msra.mxu0 0.0
        %862 = vmatprep.subr.mxu0 0.0
        %863 = vmatpush1.msra.mxu0 0.0
        %864 = vmatprep.subr.mxu0 0.0
        %865 = vmatpush1.msra.mxu0 0.0
        %866 = vmatprep.subr.mxu0 0.0
        %867 = vmatpush1.msra.mxu0 0.0
        %868 = vmatprep.subr.mxu0 0.0
        %869 = vmatpush1.msra.mxu0 0.0
        %870 = vmatprep.subr.mxu0 0.0
        %871 = vmatpush1.msra.mxu0 0.0
        %872 = vmatprep.subr.mxu0 0.0
        %873 = vmatpush1.msra.mxu0 0.0
        %874 = vmatprep.subr.mxu0 0.0
        %875 = vmatpush1.msra.mxu0 0.0
        %876 = vmatprep.subr.mxu0 0.0
        %877 = vmatpush1.msra.mxu0 0.0
        %878 = vmatprep.subr.mxu0 0.0
        %879 = vmatpush1.msra.mxu0 0.0
        %880 = vmatprep.subr.mxu0 0.0
        %881 = vmatpush1.msra.mxu0 0.0
        %882 = vmatprep.subr.mxu0 0.0
        %883 = vmatpush1.msra.mxu0 0.0
        %884 = vmatprep.subr.mxu0 0.0
        %885 = vmatpush1.msra.mxu0 0.0
        %886 = vmatprep.subr.mxu0 0.0
        %887 = vmatpush1.msra.mxu0 0.0
        %888 = vmatprep.subr.mxu0 0.0
        %889 = vmatpush1.msra.mxu0 0.0
        %890 = vmatprep.subr.mxu0 0.0
        %891 = vmatpush1.msra.mxu0 0.0
        %892 = vmatprep.subr.mxu0 0.0
        %893 = vmatpush1.msra.mxu0 0.0
        %894 = vmatprep.subr.mxu0 0.0
        %895 = vmatpush1.msra.mxu0 0.0
        %896 = vmatprep.subr.mxu0 0.0
        %897 = vmatpush1.msra.mxu0 0.0
        %898 = vmatprep.subr.mxu0 0.0
        %899 = vmatpush1.msra.mxu0 0.0
        %900 = vmatprep.mubr.f32.mxu0 0.0
        %901 = vmatmul.mubr.f32.gmra.mrb[0].mxu0 %v831
        %v902 = vpop.f32.mrb[0].mxu0
        %v903 = vadd.f32 0.0, %v902
        %v904 = vpop.f32.mrb[0].mxu0
        %905 = vmatprep.mubr.f32.mxu0 0.0
        %906 = vmatmul.mubr.f32.gmra.mrb[0].mxu0 %v834
        %v907 = vpop.f32.mrb[0].mxu0
        %v908 = vadd.f32 0.0, %v907
        %v909 = vpop.f32.mrb[0].mxu0
        %910 = vdwg.mxu0
        %913 = vrot.lane.b32.xlu0 %v551, 96
        %v914 = vpop.permute.xlu0 %913
        %915 = vrot.lane.b32.xlu0 %v552, 96
        %v916 = vpop.permute.xlu0 %915
        %v920 = vsel %vm829, %v613, 0
        %v923 = vsel %vm829, %v614, 0
        %925 = vmatprep.subr.mxu0 0.0
        %926 = vmatpush1.msra.mxu0 %v914
        %927 = vmatprep.subr.mxu0 0.0
        %928 = vmatpush1.msra.mxu0 %v916
        %929 = vmatprep.subr.mxu0 0.0
        %930 = vmatpush1.msra.mxu0 0.0
        %931 = vmatprep.subr.mxu0 0.0
        %932 = vmatpush1.msra.mxu0 0.0
        %933 = vmatprep.subr.mxu0 0.0
        %934 = vmatpush1.msra.mxu0 0.0
        %935 = vmatprep.subr.mxu0 0.0
        %936 = vmatpush1.msra.mxu0 0.0
        %937 = vmatprep.subr.mxu0 0.0
        %938 = vmatpush1.msra.mxu0 0.0
        %939 = vmatprep.subr.mxu0 0.0
        %940 = vmatpush1.msra.mxu0 0.0
        %941 = vmatprep.subr.mxu0 0.0
        %942 = vmatpush1.msra.mxu0 0.0
        %943 = vmatprep.subr.mxu0 0.0
        %944 = vmatpush1.msra.mxu0 0.0
        %945 = vmatprep.subr.mxu0 0.0
        %946 = vmatpush1.msra.mxu0 0.0
        %947 = vmatprep.subr.mxu0 0.0
        %948 = vmatpush1.msra.mxu0 0.0
        %949 = vmatprep.subr.mxu0 0.0
        %950 = vmatpush1.msra.mxu0 0.0
        %951 = vmatprep.subr.mxu0 0.0
        %952 = vmatpush1.msra.mxu0 0.0
        %953 = vmatprep.subr.mxu0 0.0
        %954 = vmatpush1.msra.mxu0 0.0
        %955 = vmatprep.subr.mxu0 0.0
        %956 = vmatpush1.msra.mxu0 0.0
        %957 = vmatprep.subr.mxu0 0.0
        %958 = vmatpush1.msra.mxu0 0.0
        %959 = vmatprep.subr.mxu0 0.0
        %960 = vmatpush1.msra.mxu0 0.0
        %961 = vmatprep.subr.mxu0 0.0
        %962 = vmatpush1.msra.mxu0 0.0
        %963 = vmatprep.subr.mxu0 0.0
        %964 = vmatpush1.msra.mxu0 0.0
        %965 = vmatprep.subr.mxu0 0.0
        %966 = vmatpush1.msra.mxu0 0.0
        %967 = vmatprep.subr.mxu0 0.0
        %968 = vmatpush1.msra.mxu0 0.0
        %969 = vmatprep.subr.mxu0 0.0
        %970 = vmatpush1.msra.mxu0 0.0
        %971 = vmatprep.subr.mxu0 0.0
        %972 = vmatpush1.msra.mxu0 0.0
        %973 = vmatprep.subr.mxu0 0.0
        %974 = vmatpush1.msra.mxu0 0.0
        %975 = vmatprep.subr.mxu0 0.0
        %976 = vmatpush1.msra.mxu0 0.0
        %977 = vmatprep.subr.mxu0 0.0
        %978 = vmatpush1.msra.mxu0 0.0
        %979 = vmatprep.subr.mxu0 0.0
        %980 = vmatpush1.msra.mxu0 0.0
        %981 = vmatprep.subr.mxu0 0.0
        %982 = vmatpush1.msra.mxu0 0.0
        %983 = vmatprep.subr.mxu0 0.0
        %984 = vmatpush1.msra.mxu0 0.0
        %985 = vmatprep.subr.mxu0 0.0
        %986 = vmatpush1.msra.mxu0 0.0
        %987 = vmatprep.subr.mxu0 0.0
        %988 = vmatpush1.msra.mxu0 0.0
        %989 = vmatprep.mubr.f32.mxu0 0.0
        %990 = vmatmul.mubr.f32.gmra.mrb[0].mxu0 %v920
        %v991 = vpop.f32.mrb[0].mxu0
        %v992 = vadd.f32 0.0, %v991
        %v993 = vpop.f32.mrb[0].mxu0
        %994 = vmatprep.mubr.f32.mxu0 0.0
        %995 = vmatmul.mubr.f32.gmra.mrb[0].mxu0 %v923
        %v996 = vpop.f32.mrb[0].mxu0
        %v997 = vadd.f32 0.0, %v996
        %v998 = vpop.f32.mrb[0].mxu0
        %999 = vdwg.mxu0
        %1002 = vrot.lane.b32.xlu0 %v553, 96
        %v1003 = vpop.permute.xlu0 %1002
        %1004 = vrot.lane.b32.xlu0 %v554, 96
        %v1005 = vpop.permute.xlu0 %1004
        %v1009 = vsel %vm829, %v645, 0
        %v1012 = vsel %vm829, %v646, 0
        %1014 = vmatprep.subr.mxu0 0.0
        %1015 = vmatpush1.msra.mxu0 %v1003
        %1016 = vmatprep.subr.mxu0 0.0
        %1017 = vmatpush1.msra.mxu0 %v1005
        %1018 = vmatprep.subr.mxu0 0.0
        %1019 = vmatpush1.msra.mxu0 0.0
        %1020 = vmatprep.subr.mxu0 0.0
        %1021 = vmatpush1.msra.mxu0 0.0
        %1022 = vmatprep.subr.mxu0 0.0
        %1023 = vmatpush1.msra.mxu0 0.0
        %1024 = vmatprep.subr.mxu0 0.0
        %1025 = vmatpush1.msra.mxu0 0.0
        %1026 = vmatprep.subr.mxu0 0.0
        %1027 = vmatpush1.msra.mxu0 0.0
        %1028 = vmatprep.subr.mxu0 0.0
        %1029 = vmatpush1.msra.mxu0 0.0
        %1030 = vmatprep.subr.mxu0 0.0
        %1031 = vmatpush1.msra.mxu0 0.0
        %1032 = vmatprep.subr.mxu0 0.0
        %1033 = vmatpush1.msra.mxu0 0.0
        %1034 = vmatprep.subr.mxu0 0.0
        %1035 = vmatpush1.msra.mxu0 0.0
        %1036 = vmatprep.subr.mxu0 0.0
        %1037 = vmatpush1.msra.mxu0 0.0
        %1038 = vmatprep.subr.mxu0 0.0
        %1039 = vmatpush1.msra.mxu0 0.0
        %1040 = vmatprep.subr.mxu0 0.0
        %1041 = vmatpush1.msra.mxu0 0.0
        %1042 = vmatprep.subr.mxu0 0.0
        %1043 = vmatpush1.msra.mxu0 0.0
        %1044 = vmatprep.subr.mxu0 0.0
        %1045 = vmatpush1.msra.mxu0 0.0
        %1046 = vmatprep.subr.mxu0 0.0
        %1047 = vmatpush1.msra.mxu0 0.0
        %1048 = vmatprep.subr.mxu0 0.0
        %1049 = vmatpush1.msra.mxu0 0.0
        %1050 = vmatprep.subr.mxu0 0.0
        %1051 = vmatpush1.msra.mxu0 0.0
        %1052 = vmatprep.subr.mxu0 0.0
        %1053 = vmatpush1.msra.mxu0 0.0
        %1054 = vmatprep.subr.mxu0 0.0
        %1055 = vmatpush1.msra.mxu0 0.0
        %1056 = vmatprep.subr.mxu0 0.0
        %1057 = vmatpush1.msra.mxu0 0.0
        %1058 = vmatprep.subr.mxu0 0.0
        %1059 = vmatpush1.msra.mxu0 0.0
        %1060 = vmatprep.subr.mxu0 0.0
        %1061 = vmatpush1.msra.mxu0 0.0
        %1062 = vmatprep.subr.mxu0 0.0
        %1063 = vmatpush1.msra.mxu0 0.0
        %1064 = vmatprep.subr.mxu0 0.0
        %1065 = vmatpush1.msra.mxu0 0.0
        %1066 = vmatprep.subr.mxu0 0.0
        %1067 = vmatpush1.msra.mxu0 0.0
        %1068 = vmatprep.subr.mxu0 0.0
        %1069 = vmatpush1.msra.mxu0 0.0
        %1070 = vmatprep.subr.mxu0 0.0
        %1071 = vmatpush1.msra.mxu0 0.0
        %1072 = vmatprep.subr.mxu0 0.0
        %1073 = vmatpush1.msra.mxu0 0.0
        %1074 = vmatprep.subr.mxu0 0.0
        %1075 = vmatpush1.msra.mxu0 0.0
        %1076 = vmatprep.subr.mxu0 0.0
        %1077 = vmatpush1.msra.mxu0 0.0
        %1078 = vmatprep.mubr.f32.mxu0 0.0
        %1079 = vmatmul.mubr.f32.gmra.mrb[0].mxu0 %v1009
        %v1080 = vpop.f32.mrb[0].mxu0
        %v1081 = vadd.f32 0.0, %v1080
        %v1082 = vpop.f32.mrb[0].mxu0
        %1083 = vmatprep.mubr.f32.mxu0 0.0
        %1084 = vmatmul.mubr.f32.gmra.mrb[0].mxu0 %v1012
        %v1085 = vpop.f32.mrb[0].mxu0
        %v1086 = vadd.f32 0.0, %v1085
        %v1087 = vpop.f32.mrb[0].mxu0
        %1088 = vdwg.mxu0
        %1091 = vrot.lane.b32.xlu0 %v555, 96
        %v1092 = vpop.permute.xlu0 %1091
        %1093 = vrot.lane.b32.xlu0 %v556, 96
        %v1094 = vpop.permute.xlu0 %1093
        %v1098 = vsel %vm829, %v677, 0
        %v1101 = vsel %vm829, %v678, 0
        %1103 = vmatprep.subr.mxu0 0.0
        %1104 = vmatpush1.msra.mxu0 %v1092
        %1105 = vmatprep.subr.mxu0 0.0
        %1106 = vmatpush1.msra.mxu0 %v1094
        %1107 = vmatprep.subr.mxu0 0.0
        %1108 = vmatpush1.msra.mxu0 0.0
        %1109 = vmatprep.subr.mxu0 0.0
        %1110 = vmatpush1.msra.mxu0 0.0
        %1111 = vmatprep.subr.mxu0 0.0
        %1112 = vmatpush1.msra.mxu0 0.0
        %1113 = vmatprep.subr.mxu0 0.0
        %1114 = vmatpush1.msra.mxu0 0.0
        %1115 = vmatprep.subr.mxu0 0.0
        %1116 = vmatpush1.msra.mxu0 0.0
        %1117 = vmatprep.subr.mxu0 0.0
        %1118 = vmatpush1.msra.mxu0 0.0
        %1119 = vmatprep.subr.mxu0 0.0
        %1120 = vmatpush1.msra.mxu0 0.0
        %1121 = vmatprep.subr.mxu0 0.0
        %1122 = vmatpush1.msra.mxu0 0.0
        %1123 = vmatprep.subr.mxu0 0.0
        %1124 = vmatpush1.msra.mxu0 0.0
        %1125 = vmatprep.subr.mxu0 0.0
        %1126 = vmatpush1.msra.mxu0 0.0
        %1127 = vmatprep.subr.mxu0 0.0
        %1128 = vmatpush1.msra.mxu0 0.0
        %1129 = vmatprep.subr.mxu0 0.0
        %1130 = vmatpush1.msra.mxu0 0.0
        %1131 = vmatprep.subr.mxu0 0.0
        %1132 = vmatpush1.msra.mxu0 0.0
        %1133 = vmatprep.subr.mxu0 0.0
        %1134 = vmatpush1.msra.mxu0 0.0
        %1135 = vmatprep.subr.mxu0 0.0
        %1136 = vmatpush1.msra.mxu0 0.0
        %1137 = vmatprep.subr.mxu0 0.0
        %1138 = vmatpush1.msra.mxu0 0.0
        %1139 = vmatprep.subr.mxu0 0.0
        %1140 = vmatpush1.msra.mxu0 0.0
        %1141 = vmatprep.subr.mxu0 0.0
        %1142 = vmatpush1.msra.mxu0 0.0
        %1143 = vmatprep.subr.mxu0 0.0
        %1144 = vmatpush1.msra.mxu0 0.0
        %1145 = vmatprep.subr.mxu0 0.0
        %1146 = vmatpush1.msra.mxu0 0.0
        %1147 = vmatprep.subr.mxu0 0.0
        %1148 = vmatpush1.msra.mxu0 0.0
        %1149 = vmatprep.subr.mxu0 0.0
        %1150 = vmatpush1.msra.mxu0 0.0
        %1151 = vmatprep.subr.mxu0 0.0
        %1152 = vmatpush1.msra.mxu0 0.0
        %1153 = vmatprep.subr.mxu0 0.0
        %1154 = vmatpush1.msra.mxu0 0.0
        %1155 = vmatprep.subr.mxu0 0.0
        %1156 = vmatpush1.msra.mxu0 0.0
        %1157 = vmatprep.subr.mxu0 0.0
        %1158 = vmatpush1.msra.mxu0 0.0
        %1159 = vmatprep.subr.mxu0 0.0
        %1160 = vmatpush1.msra.mxu0 0.0
        %1161 = vmatprep.subr.mxu0 0.0
        %1162 = vmatpush1.msra.mxu0 0.0
        %1163 = vmatprep.subr.mxu0 0.0
        %1164 = vmatpush1.msra.mxu0 0.0
        %1165 = vmatprep.subr.mxu0 0.0
        %1166 = vmatpush1.msra.mxu0 0.0
        %1167 = vmatprep.mubr.f32.mxu0 0.0
        %1168 = vmatmul.mubr.f32.gmra.mrb[0].mxu0 %v1098
        %v1169 = vpop.f32.mrb[0].mxu0
        %v1170 = vadd.f32 0.0, %v1169
        %v1171 = vpop.f32.mrb[0].mxu0
        %1172 = vmatprep.mubr.f32.mxu0 0.0
        %1173 = vmatmul.mubr.f32.gmra.mrb[0].mxu0 %v1101
        %v1174 = vpop.f32.mrb[0].mxu0
        %v1175 = vadd.f32 0.0, %v1174
        %v1176 = vpop.f32.mrb[0].mxu0
        %1177 = vdwg.mxu0
        %1180 = vrot.lane.b32.xlu0 %v557, 96
        %v1181 = vpop.permute.xlu0 %1180
        %1182 = vrot.lane.b32.xlu0 %v558, 96
        %v1183 = vpop.permute.xlu0 %1182
        %v1187 = vsel %vm829, %v709, 0
        %v1190 = vsel %vm829, %v710, 0
        %1192 = vmatprep.subr.mxu0 0.0
        %1193 = vmatpush1.msra.mxu0 %v1181
        %1194 = vmatprep.subr.mxu0 0.0
        %1195 = vmatpush1.msra.mxu0 %v1183
        %1196 = vmatprep.subr.mxu0 0.0
        %1197 = vmatpush1.msra.mxu0 0.0
        %1198 = vmatprep.subr.mxu0 0.0
        %1199 = vmatpush1.msra.mxu0 0.0
        %1200 = vmatprep.subr.mxu0 0.0
        %1201 = vmatpush1.msra.mxu0 0.0
        %1202 = vmatprep.subr.mxu0 0.0
        %1203 = vmatpush1.msra.mxu0 0.0
        %1204 = vmatprep.subr.mxu0 0.0
        %1205 = vmatpush1.msra.mxu0 0.0
        %1206 = vmatprep.subr.mxu0 0.0
        %1207 = vmatpush1.msra.mxu0 0.0
        %1208 = vmatprep.subr.mxu0 0.0
        %1209 = vmatpush1.msra.mxu0 0.0
        %1210 = vmatprep.subr.mxu0 0.0
        %1211 = vmatpush1.msra.mxu0 0.0
        %1212 = vmatprep.subr.mxu0 0.0
        %1213 = vmatpush1.msra.mxu0 0.0
        %1214 = vmatprep.subr.mxu0 0.0
        %1215 = vmatpush1.msra.mxu0 0.0
        %1216 = vmatprep.subr.mxu0 0.0
        %1217 = vmatpush1.msra.mxu0 0.0
        %1218 = vmatprep.subr.mxu0 0.0
        %1219 = vmatpush1.msra.mxu0 0.0
        %1220 = vmatprep.subr.mxu0 0.0
        %1221 = vmatpush1.msra.mxu0 0.0
        %1222 = vmatprep.subr.mxu0 0.0
        %1223 = vmatpush1.msra.mxu0 0.0
        %1224 = vmatprep.subr.mxu0 0.0
        %1225 = vmatpush1.msra.mxu0 0.0
        %1226 = vmatprep.subr.mxu0 0.0
        %1227 = vmatpush1.msra.mxu0 0.0
        %1228 = vmatprep.subr.mxu0 0.0
        %1229 = vmatpush1.msra.mxu0 0.0
        %1230 = vmatprep.subr.mxu0 0.0
        %1231 = vmatpush1.msra.mxu0 0.0
        %1232 = vmatprep.subr.mxu0 0.0
        %1233 = vmatpush1.msra.mxu0 0.0
        %1234 = vmatprep.subr.mxu0 0.0
        %1235 = vmatpush1.msra.mxu0 0.0
        %1236 = vmatprep.subr.mxu0 0.0
        %1237 = vmatpush1.msra.mxu0 0.0
        %1238 = vmatprep.subr.mxu0 0.0
        %1239 = vmatpush1.msra.mxu0 0.0
        %1240 = vmatprep.subr.mxu0 0.0
        %1241 = vmatpush1.msra.mxu0 0.0
        %1242 = vmatprep.subr.mxu0 0.0
        %1243 = vmatpush1.msra.mxu0 0.0
        %1244 = vmatprep.subr.mxu0 0.0
        %1245 = vmatpush1.msra.mxu0 0.0
        %1246 = vmatprep.subr.mxu0 0.0
        %1247 = vmatpush1.msra.mxu0 0.0
        %1248 = vmatprep.subr.mxu0 0.0
        %1249 = vmatpush1.msra.mxu0 0.0
        %1250 = vmatprep.subr.mxu0 0.0
        %1251 = vmatpush1.msra.mxu0 0.0
        %1252 = vmatprep.subr.mxu0 0.0
        %1253 = vmatpush1.msra.mxu0 0.0
        %1254 = vmatprep.subr.mxu0 0.0
        %1255 = vmatpush1.msra.mxu0 0.0
        %1256 = vmatprep.mubr.f32.mxu0 0.0
        %1257 = vmatmul.mubr.f32.gmra.mrb[0].mxu0 %v1187
        %v1258 = vpop.f32.mrb[0].mxu0
        %v1259 = vadd.f32 0.0, %v1258
        %v1260 = vpop.f32.mrb[0].mxu0
        %1261 = vmatprep.mubr.f32.mxu0 0.0
        %1262 = vmatmul.mubr.f32.gmra.mrb[0].mxu0 %v1190
        %v1263 = vpop.f32.mrb[0].mxu0
        %v1264 = vadd.f32 0.0, %v1263
        %v1265 = vpop.f32.mrb[0].mxu0
        %1266 = vdwg.mxu0
        %1269 = vrot.lane.b32.xlu0 %v559, 96
        %v1270 = vpop.permute.xlu0 %1269
        %1271 = vrot.lane.b32.xlu0 %v560, 96
        %v1272 = vpop.permute.xlu0 %1271
        %v1276 = vsel %vm829, %v741, 0
        %v1279 = vsel %vm829, %v742, 0
        %1281 = vmatprep.subr.mxu0 0.0
        %1282 = vmatpush1.msra.mxu0 %v1270
        %1283 = vmatprep.subr.mxu0 0.0
        %1284 = vmatpush1.msra.mxu0 %v1272
        %1285 = vmatprep.subr.mxu0 0.0
        %1286 = vmatpush1.msra.mxu0 0.0
        %1287 = vmatprep.subr.mxu0 0.0
        %1288 = vmatpush1.msra.mxu0 0.0
        %1289 = vmatprep.subr.mxu0 0.0
        %1290 = vmatpush1.msra.mxu0 0.0
        %1291 = vmatprep.subr.mxu0 0.0
        %1292 = vmatpush1.msra.mxu0 0.0
        %1293 = vmatprep.subr.mxu0 0.0
        %1294 = vmatpush1.msra.mxu0 0.0
        %1295 = vmatprep.subr.mxu0 0.0
        %1296 = vmatpush1.msra.mxu0 0.0
        %1297 = vmatprep.subr.mxu0 0.0
        %1298 = vmatpush1.msra.mxu0 0.0
        %1299 = vmatprep.subr.mxu0 0.0
        %1300 = vmatpush1.msra.mxu0 0.0
        %1301 = vmatprep.subr.mxu0 0.0
        %1302 = vmatpush1.msra.mxu0 0.0
        %1303 = vmatprep.subr.mxu0 0.0
        %1304 = vmatpush1.msra.mxu0 0.0
        %1305 = vmatprep.subr.mxu0 0.0
        %1306 = vmatpush1.msra.mxu0 0.0
        %1307 = vmatprep.subr.mxu0 0.0
        %1308 = vmatpush1.msra.mxu0 0.0
        %1309 = vmatprep.subr.mxu0 0.0
        %1310 = vmatpush1.msra.mxu0 0.0
        %1311 = vmatprep.subr.mxu0 0.0
        %1312 = vmatpush1.msra.mxu0 0.0
        %1313 = vmatprep.subr.mxu0 0.0
        %1314 = vmatpush1.msra.mxu0 0.0
        %1315 = vmatprep.subr.mxu0 0.0
        %1316 = vmatpush1.msra.mxu0 0.0
        %1317 = vmatprep.subr.mxu0 0.0
        %1318 = vmatpush1.msra.mxu0 0.0
        %1319 = vmatprep.subr.mxu0 0.0
        %1320 = vmatpush1.msra.mxu0 0.0
        %1321 = vmatprep.subr.mxu0 0.0
        %1322 = vmatpush1.msra.mxu0 0.0
        %1323 = vmatprep.subr.mxu0 0.0
        %1324 = vmatpush1.msra.mxu0 0.0
        %1325 = vmatprep.subr.mxu0 0.0
        %1326 = vmatpush1.msra.mxu0 0.0
        %1327 = vmatprep.subr.mxu0 0.0
        %1328 = vmatpush1.msra.mxu0 0.0
        %1329 = vmatprep.subr.mxu0 0.0
        %1330 = vmatpush1.msra.mxu0 0.0
        %1331 = vmatprep.subr.mxu0 0.0
        %1332 = vmatpush1.msra.mxu0 0.0
        %1333 = vmatprep.subr.mxu0 0.0
        %1334 = vmatpush1.msra.mxu0 0.0
        %1335 = vmatprep.subr.mxu0 0.0
        %1336 = vmatpush1.msra.mxu0 0.0
        %1337 = vmatprep.subr.mxu0 0.0
        %1338 = vmatpush1.msra.mxu0 0.0
        %1339 = vmatprep.subr.mxu0 0.0
        %1340 = vmatpush1.msra.mxu0 0.0
        %1341 = vmatprep.subr.mxu0 0.0
        %1342 = vmatpush1.msra.mxu0 0.0
        %1343 = vmatprep.subr.mxu0 0.0
        %1344 = vmatpush1.msra.mxu0 0.0
        %1345 = vmatprep.mubr.f32.mxu0 0.0
        %1346 = vmatmul.mubr.f32.gmra.mrb[0].mxu0 %v1276
        %v1347 = vpop.f32.mrb[0].mxu0
        %v1348 = vadd.f32 0.0, %v1347
        %v1349 = vpop.f32.mrb[0].mxu0
        %1350 = vmatprep.mubr.f32.mxu0 0.0
        %1351 = vmatmul.mubr.f32.gmra.mrb[0].mxu0 %v1279
        %v1352 = vpop.f32.mrb[0].mxu0
        %v1353 = vadd.f32 0.0, %v1352
        %v1354 = vpop.f32.mrb[0].mxu0
        %1355 = vdwg.mxu0
        %1358 = vrot.lane.b32.xlu0 %v561, 96
        %v1359 = vpop.permute.xlu0 %1358
        %1360 = vrot.lane.b32.xlu0 %v562, 96
        %v1361 = vpop.permute.xlu0 %1360
        %v1365 = vsel %vm829, %v773, 0
        %v1368 = vsel %vm829, %v774, 0
        %1370 = vmatprep.subr.mxu0 0.0
        %1371 = vmatpush1.msra.mxu0 %v1359
        %1372 = vmatprep.subr.mxu0 0.0
        %1373 = vmatpush1.msra.mxu0 %v1361
        %1374 = vmatprep.subr.mxu0 0.0
        %1375 = vmatpush1.msra.mxu0 0.0
        %1376 = vmatprep.subr.mxu0 0.0
        %1377 = vmatpush1.msra.mxu0 0.0
        %1378 = vmatprep.subr.mxu0 0.0
        %1379 = vmatpush1.msra.mxu0 0.0
        %1380 = vmatprep.subr.mxu0 0.0
        %1381 = vmatpush1.msra.mxu0 0.0
        %1382 = vmatprep.subr.mxu0 0.0
        %1383 = vmatpush1.msra.mxu0 0.0
        %1384 = vmatprep.subr.mxu0 0.0
        %1385 = vmatpush1.msra.mxu0 0.0
        %1386 = vmatprep.subr.mxu0 0.0
        %1387 = vmatpush1.msra.mxu0 0.0
        %1388 = vmatprep.subr.mxu0 0.0
        %1389 = vmatpush1.msra.mxu0 0.0
        %1390 = vmatprep.subr.mxu0 0.0
        %1391 = vmatpush1.msra.mxu0 0.0
        %1392 = vmatprep.subr.mxu0 0.0
        %1393 = vmatpush1.msra.mxu0 0.0
        %1394 = vmatprep.subr.mxu0 0.0
        %1395 = vmatpush1.msra.mxu0 0.0
        %1396 = vmatprep.subr.mxu0 0.0
        %1397 = vmatpush1.msra.mxu0 0.0
        %1398 = vmatprep.subr.mxu0 0.0
        %1399 = vmatpush1.msra.mxu0 0.0
        %1400 = vmatprep.subr.mxu0 0.0
        %1401 = vmatpush1.msra.mxu0 0.0
        %1402 = vmatprep.subr.mxu0 0.0
        %1403 = vmatpush1.msra.mxu0 0.0
        %1404 = vmatprep.subr.mxu0 0.0
        %1405 = vmatpush1.msra.mxu0 0.0
        %1406 = vmatprep.subr.mxu0 0.0
        %1407 = vmatpush1.msra.mxu0 0.0
        %1408 = vmatprep.subr.mxu0 0.0
        %1409 = vmatpush1.msra.mxu0 0.0
        %1410 = vmatprep.subr.mxu0 0.0
        %1411 = vmatpush1.msra.mxu0 0.0
        %1412 = vmatprep.subr.mxu0 0.0
        %1413 = vmatpush1.msra.mxu0 0.0
        %1414 = vmatprep.subr.mxu0 0.0
        %1415 = vmatpush1.msra.mxu0 0.0
        %1416 = vmatprep.subr.mxu0 0.0
        %1417 = vmatpush1.msra.mxu0 0.0
        %1418 = vmatprep.subr.mxu0 0.0
        %1419 = vmatpush1.msra.mxu0 0.0
        %1420 = vmatprep.subr.mxu0 0.0
        %1421 = vmatpush1.msra.mxu0 0.0
        %1422 = vmatprep.subr.mxu0 0.0
        %1423 = vmatpush1.msra.mxu0 0.0
        %1424 = vmatprep.subr.mxu0 0.0
        %1425 = vmatpush1.msra.mxu0 0.0
        %1426 = vmatprep.subr.mxu0 0.0
        %1427 = vmatpush1.msra.mxu0 0.0
        %1428 = vmatprep.subr.mxu0 0.0
        %1429 = vmatpush1.msra.mxu0 0.0
        %1430 = vmatprep.subr.mxu0 0.0
        %1431 = vmatpush1.msra.mxu0 0.0
        %1432 = vmatprep.subr.mxu0 0.0
        %1433 = vmatpush1.msra.mxu0 0.0
        %1434 = vmatprep.mubr.f32.mxu0 0.0
        %1435 = vmatmul.mubr.f32.gmra.mrb[0].mxu0 %v1365
        %v1436 = vpop.f32.mrb[0].mxu0
        %v1437 = vadd.f32 0.0, %v1436
        %v1438 = vpop.f32.mrb[0].mxu0
        %1439 = vmatprep.mubr.f32.mxu0 0.0
        %1440 = vmatmul.mubr.f32.gmra.mrb[0].mxu0 %v1368
        %v1441 = vpop.f32.mrb[0].mxu0
        %v1442 = vadd.f32 0.0, %v1441
        %v1443 = vpop.f32.mrb[0].mxu0
        %1444 = vdwg.mxu0
        %1447 = vrot.lane.b32.xlu0 %v563, 96
        %v1448 = vpop.permute.xlu0 %1447
        %1449 = vrot.lane.b32.xlu0 %v564, 96
        %v1450 = vpop.permute.xlu0 %1449
        %v1454 = vsel %vm829, %v805, 0
        %v1457 = vsel %vm829, %v806, 0
        %1459 = vmatprep.subr.mxu0 0.0
        %1460 = vmatpush1.msra.mxu0 %v1448
        %1461 = vmatprep.subr.mxu0 0.0
        %1462 = vmatpush1.msra.mxu0 %v1450
        %1463 = vmatprep.subr.mxu0 0.0
        %1464 = vmatpush1.msra.mxu0 0.0
        %1465 = vmatprep.subr.mxu0 0.0
        %1466 = vmatpush1.msra.mxu0 0.0
        %1467 = vmatprep.subr.mxu0 0.0
        %1468 = vmatpush1.msra.mxu0 0.0
        %1469 = vmatprep.subr.mxu0 0.0
        %1470 = vmatpush1.msra.mxu0 0.0
        %1471 = vmatprep.subr.mxu0 0.0
        %1472 = vmatpush1.msra.mxu0 0.0
        %1473 = vmatprep.subr.mxu0 0.0
        %1474 = vmatpush1.msra.mxu0 0.0
        %1475 = vmatprep.subr.mxu0 0.0
        %1476 = vmatpush1.msra.mxu0 0.0
        %1477 = vmatprep.subr.mxu0 0.0
        %1478 = vmatpush1.msra.mxu0 0.0
        %1479 = vmatprep.subr.mxu0 0.0
        %1480 = vmatpush1.msra.mxu0 0.0
        %1481 = vmatprep.subr.mxu0 0.0
        %1482 = vmatpush1.msra.mxu0 0.0
        %1483 = vmatprep.subr.mxu0 0.0
        %1484 = vmatpush1.msra.mxu0 0.0
        %1485 = vmatprep.subr.mxu0 0.0
        %1486 = vmatpush1.msra.mxu0 0.0
        %1487 = vmatprep.subr.mxu0 0.0
        %1488 = vmatpush1.msra.mxu0 0.0
        %1489 = vmatprep.subr.mxu0 0.0
        %1490 = vmatpush1.msra.mxu0 0.0
        %1491 = vmatprep.subr.mxu0 0.0
        %1492 = vmatpush1.msra.mxu0 0.0
        %1493 = vmatprep.subr.mxu0 0.0
        %1494 = vmatpush1.msra.mxu0 0.0
        %1495 = vmatprep.subr.mxu0 0.0
        %1496 = vmatpush1.msra.mxu0 0.0
        %1497 = vmatprep.subr.mxu0 0.0
        %1498 = vmatpush1.msra.mxu0 0.0
        %1499 = vmatprep.subr.mxu0 0.0
        %1500 = vmatpush1.msra.mxu0 0.0
        %1501 = vmatprep.subr.mxu0 0.0
        %1502 = vmatpush1.msra.mxu0 0.0
        %1503 = vmatprep.subr.mxu0 0.0
        %1504 = vmatpush1.msra.mxu0 0.0
        %1505 = vmatprep.subr.mxu0 0.0
        %1506 = vmatpush1.msra.mxu0 0.0
        %1507 = vmatprep.subr.mxu0 0.0
        %1508 = vmatpush1.msra.mxu0 0.0
        %1509 = vmatprep.subr.mxu0 0.0
        %1510 = vmatpush1.msra.mxu0 0.0
        %1511 = vmatprep.subr.mxu0 0.0
        %1512 = vmatpush1.msra.mxu0 0.0
        %1513 = vmatprep.subr.mxu0 0.0
        %1514 = vmatpush1.msra.mxu0 0.0
        %1515 = vmatprep.subr.mxu0 0.0
        %1516 = vmatpush1.msra.mxu0 0.0
        %1517 = vmatprep.subr.mxu0 0.0
        %1518 = vmatpush1.msra.mxu0 0.0
        %1519 = vmatprep.subr.mxu0 0.0
        %1520 = vmatpush1.msra.mxu0 0.0
        %1521 = vmatprep.subr.mxu0 0.0
        %1522 = vmatpush1.msra.mxu0 0.0
        %1523 = vmatprep.mubr.f32.mxu0 0.0
        %1524 = vmatmul.mubr.f32.gmra.mrb[0].mxu0 %v1454
        %v1525 = vpop.f32.mrb[0].mxu0
        %v1526 = vadd.f32 0.0, %v1525
        %v1527 = vpop.f32.mrb[0].mxu0
        %1528 = vmatprep.mubr.f32.mxu0 0.0
        %1529 = vmatmul.mubr.f32.gmra.mrb[0].mxu0 %v1457
        %v1530 = vpop.f32.mrb[0].mxu0
        %v1531 = vadd.f32 0.0, %v1530
        %v1532 = vpop.f32.mrb[0].mxu0
        %1533 = vdwg.mxu0
        %v1534 = vmul.f32 %v903, 0.088388346
        %v1535 = vmul.f32 %v908, 0.088388346
        %v1536 = vmul.f32 %v992, 0.088388346
        %v1537 = vmul.f32 %v997, 0.088388346
        %v1538 = vmul.f32 %v1081, 0.088388346
        %v1539 = vmul.f32 %v1086, 0.088388346
        %v1540 = vmul.f32 %v1170, 0.088388346
        %v1541 = vmul.f32 %v1175, 0.088388346
        %v1542 = vmul.f32 %v1259, 0.088388346
        %v1543 = vmul.f32 %v1264, 0.088388346
        %v1544 = vmul.f32 %v1348, 0.088388346
        %v1545 = vmul.f32 %v1353, 0.088388346
        %v1546 = vmul.f32 %v1437, 0.088388346
        %v1547 = vmul.f32 %v1442, 0.088388346
        %v1548 = vmul.f32 %v1526, 0.088388346
        %v1549 = vmul.f32 %v1531, 0.088388346
        %v1550 = vsel %vm829, %v1534, -inf
        %1551 = vmax.xlane.f32.xlu0 %v1550
        %v1552 = vpop.xlane.xlu0 %1551
        %v1553 = vsel %vm829, %v1535, -inf
        %1554 = vmax.xlane.f32.xlu0 %v1553
        %v1555 = vpop.xlane.xlu0 %1554
        %v1556 = vsel %vm829, %v1536, -inf
        %1557 = vmax.xlane.f32.xlu0 %v1556
        %v1558 = vpop.xlane.xlu0 %1557
        %v1559 = vsel %vm829, %v1537, -inf
        %1560 = vmax.xlane.f32.xlu0 %v1559
        %v1561 = vpop.xlane.xlu0 %1560
        %v1562 = vsel %vm829, %v1538, -inf
        %1563 = vmax.xlane.f32.xlu0 %v1562
        %v1564 = vpop.xlane.xlu0 %1563
        %v1565 = vsel %vm829, %v1539, -inf
        %1566 = vmax.xlane.f32.xlu0 %v1565
        %v1567 = vpop.xlane.xlu0 %1566
        %v1568 = vsel %vm829, %v1540, -inf
        %1569 = vmax.xlane.f32.xlu0 %v1568
        %v1570 = vpop.xlane.xlu0 %1569
        %v1571 = vsel %vm829, %v1541, -inf
        %1572 = vmax.xlane.f32.xlu0 %v1571
        %v1573 = vpop.xlane.xlu0 %1572
        %v1574 = vsel %vm829, %v1542, -inf
        %1575 = vmax.xlane.f32.xlu0 %v1574
        %v1576 = vpop.xlane.xlu0 %1575
        %v1577 = vsel %vm829, %v1543, -inf
        %1578 = vmax.xlane.f32.xlu0 %v1577
        %v1579 = vpop.xlane.xlu0 %1578
        %v1580 = vsel %vm829, %v1544, -inf
        %1581 = vmax.xlane.f32.xlu0 %v1580
        %v1582 = vpop.xlane.xlu0 %1581
        %v1583 = vsel %vm829, %v1545, -inf
        %1584 = vmax.xlane.f32.xlu0 %v1583
        %v1585 = vpop.xlane.xlu0 %1584
        %v1586 = vsel %vm829, %v1546, -inf
        %1587 = vmax.xlane.f32.xlu0 %v1586
        %v1588 = vpop.xlane.xlu0 %1587
        %v1589 = vsel %vm829, %v1547, -inf
        %1590 = vmax.xlane.f32.xlu0 %v1589
        %v1591 = vpop.xlane.xlu0 %1590
        %v1592 = vsel %vm829, %v1548, -inf
        %1593 = vmax.xlane.f32.xlu0 %v1592
        %v1594 = vpop.xlane.xlu0 %1593
        %v1595 = vsel %vm829, %v1549, -inf
        %1596 = vmax.xlane.f32.xlu0 %v1595
        %v1597 = vpop.xlane.xlu0 %1596
        %v1598 = vsub.f32 %v1534, %v1552
        %v1599 = vsub.f32 %v1535, %v1555
        %v1600 = vsub.f32 %v1536, %v1558
        %v1601 = vsub.f32 %v1537, %v1561
        %v1602 = vsub.f32 %v1538, %v1564
        %v1603 = vsub.f32 %v1539, %v1567
        %v1604 = vsub.f32 %v1540, %v1570
        %v1605 = vsub.f32 %v1541, %v1573
        %v1606 = vsub.f32 %v1542, %v1576
        %v1607 = vsub.f32 %v1543, %v1579
        %v1608 = vsub.f32 %v1544, %v1582
        %v1609 = vsub.f32 %v1545, %v1585
        %v1610 = vsub.f32 %v1546, %v1588
        %v1611 = vsub.f32 %v1547, %v1591
        %v1612 = vsub.f32 %v1548, %v1594
        %v1613 = vsub.f32 %v1549, %v1597
        %v1614 = vmul.f32 %v1598, 1.442695
        %v1615 = vpow.pop %v1614
        %v1616 = vmul.f32 %v1599, 1.442695
        %v1617 = vpow.pop %v1616
        %v1618 = vmul.f32 %v1600, 1.442695
        %v1619 = vpow.pop %v1618
        %v1620 = vmul.f32 %v1601, 1.442695
        %v1621 = vpow.pop %v1620
        %v1622 = vmul.f32 %v1602, 1.442695
        %v1623 = vpow.pop %v1622
        %v1624 = vmul.f32 %v1603, 1.442695
        %v1625 = vpow.pop %v1624
        %v1626 = vmul.f32 %v1604, 1.442695
        %v1627 = vpow.pop %v1626
        %v1628 = vmul.f32 %v1605, 1.442695
        %v1629 = vpow.pop %v1628
        %v1630 = vmul.f32 %v1606, 1.442695
        %v1631 = vpow.pop %v1630
        %v1632 = vmul.f32 %v1607, 1.442695
        %v1633 = vpow.pop %v1632
        %v1634 = vmul.f32 %v1608, 1.442695
        %v1635 = vpow.pop %v1634
        %v1636 = vmul.f32 %v1609, 1.442695
        %v1637 = vpow.pop %v1636
        %v1638 = vmul.f32 %v1610, 1.442695
        %v1639 = vpow.pop %v1638
        %v1640 = vmul.f32 %v1611, 1.442695
        %v1641 = vpow.pop %v1640
        %v1642 = vmul.f32 %v1612, 1.442695
        %v1643 = vpow.pop %v1642
        %v1644 = vmul.f32 %v1613, 1.442695
        %v1645 = vpow.pop %v1644
        %v1646 = vsel %vm829, %v1615, 0.0
        %1647 = vadd.xlane.f32.xlu0 %v1646
        %v1648 = vpop.xlane.xlu0 %1647
        %v1649 = vsel %vm829, %v1617, 0.0
        %1650 = vadd.xlane.f32.xlu0 %v1649
        %v1651 = vpop.xlane.xlu0 %1650
        %v1652 = vsel %vm829, %v1619, 0.0
        %1653 = vadd.xlane.f32.xlu0 %v1652
        %v1654 = vpop.xlane.xlu0 %1653
        %v1655 = vsel %vm829, %v1621, 0.0
        %1656 = vadd.xlane.f32.xlu0 %v1655
        %v1657 = vpop.xlane.xlu0 %1656
        %v1658 = vsel %vm829, %v1623, 0.0
        %1659 = vadd.xlane.f32.xlu0 %v1658
        %v1660 = vpop.xlane.xlu0 %1659
        %v1661 = vsel %vm829, %v1625, 0.0
        %1662 = vadd.xlane.f32.xlu0 %v1661
        %v1663 = vpop.xlane.xlu0 %1662
        %v1664 = vsel %vm829, %v1627, 0.0
        %1665 = vadd.xlane.f32.xlu0 %v1664
        %v1666 = vpop.xlane.xlu0 %1665
        %v1667 = vsel %vm829, %v1629, 0.0
        %1668 = vadd.xlane.f32.xlu0 %v1667
        %v1669 = vpop.xlane.xlu0 %1668
        %v1670 = vsel %vm829, %v1631, 0.0
        %1671 = vadd.xlane.f32.xlu0 %v1670
        %v1672 = vpop.xlane.xlu0 %1671
        %v1673 = vsel %vm829, %v1633, 0.0
        %1674 = vadd.xlane.f32.xlu0 %v1673
        %v1675 = vpop.xlane.xlu0 %1674
        %v1676 = vsel %vm829, %v1635, 0.0
        %1677 = vadd.xlane.f32.xlu0 %v1676
        %v1678 = vpop.xlane.xlu0 %1677
        %v1679 = vsel %vm829, %v1637, 0.0
        %1680 = vadd.xlane.f32.xlu0 %v1679
        %v1681 = vpop.xlane.xlu0 %1680
        %v1682 = vsel %vm829, %v1639, 0.0
        %1683 = vadd.xlane.f32.xlu0 %v1682
        %v1684 = vpop.xlane.xlu0 %1683
        %v1685 = vsel %vm829, %v1641, 0.0
        %1686 = vadd.xlane.f32.xlu0 %v1685
        %v1687 = vpop.xlane.xlu0 %1686
        %v1688 = vsel %vm829, %v1643, 0.0
        %1689 = vadd.xlane.f32.xlu0 %v1688
        %v1690 = vpop.xlane.xlu0 %1689
        %v1691 = vsel %vm829, %v1645, 0.0
        %1692 = vadd.xlane.f32.xlu0 %v1691
        %v1693 = vpop.xlane.xlu0 %1692
        %v1694 = vrcp.pop %v1648
        %v1695 = vmul.f32 %v1615, %v1694
        %v1696 = vrcp.pop %v1651
        %v1697 = vmul.f32 %v1617, %v1696
        %v1698 = vrcp.pop %v1654
        %v1699 = vmul.f32 %v1619, %v1698
        %v1700 = vrcp.pop %v1657
        %v1701 = vmul.f32 %v1621, %v1700
        %v1702 = vrcp.pop %v1660
        %v1703 = vmul.f32 %v1623, %v1702
        %v1704 = vrcp.pop %v1663
        %v1705 = vmul.f32 %v1625, %v1704
        %v1706 = vrcp.pop %v1666
        %v1707 = vmul.f32 %v1627, %v1706
        %v1708 = vrcp.pop %v1669
        %v1709 = vmul.f32 %v1629, %v1708
        %v1710 = vrcp.pop %v1672
        %v1711 = vmul.f32 %v1631, %v1710
        %v1712 = vrcp.pop %v1675
        %v1713 = vmul.f32 %v1633, %v1712
        %v1714 = vrcp.pop %v1678
        %v1715 = vmul.f32 %v1635, %v1714
        %v1716 = vrcp.pop %v1681
        %v1717 = vmul.f32 %v1637, %v1716
        %v1718 = vrcp.pop %v1684
        %v1719 = vmul.f32 %v1639, %v1718
        %v1720 = vrcp.pop %v1687
        %v1721 = vmul.f32 %v1641, %v1720
        %v1722 = vrcp.pop %v1690
        %v1723 = vmul.f32 %v1643, %v1722
        %v1724 = vrcp.pop %v1693
        %v1725 = vmul.f32 %v1645, %v1724
        %1726 = vrot.lane.b32.xlu0 %v549, 64
        %v1727 = vpop.permute.xlu0 %1726
        %1728 = vrot.lane.b32.xlu0 %v550, 64
        %v1729 = vpop.permute.xlu0 %1728
        %v1730 = vsel %vm829, %v1727, 0
        %v1732 = vsel %vm829, %v1729, 0
        %v1735 = vsel %vm829, %v1695, 0
        %v1738 = vsel %vm829, %v1697, 0
        %1740 = vmatprep.subr.mxu0 0.0
        %1741 = vmatpush1.xpose.msra.mxu0 %v1735
        %1742 = vmatprep.subr.mxu0 0.0
        %1743 = vmatpush1.xpose.msra.mxu0 %v1738
        %1744 = vmatprep.subr.mxu0 0.0
        %1745 = vmatpush1.xpose.msra.mxu0 0.0
        %1746 = vmatprep.subr.mxu0 0.0
        %1747 = vmatpush1.xpose.msra.mxu0 0.0
        %1748 = vmatprep.subr.mxu0 0.0
        %1749 = vmatpush1.xpose.msra.mxu0 0.0
        %1750 = vmatprep.subr.mxu0 0.0
        %1751 = vmatpush1.xpose.msra.mxu0 0.0
        %1752 = vmatprep.subr.mxu0 0.0
        %1753 = vmatpush1.xpose.msra.mxu0 0.0
        %1754 = vmatprep.subr.mxu0 0.0
        %1755 = vmatpush1.xpose.msra.mxu0 0.0
        %1756 = vmatprep.subr.mxu0 0.0
        %1757 = vmatpush1.xpose.msra.mxu0 0.0
        %1758 = vmatprep.subr.mxu0 0.0
        %1759 = vmatpush1.xpose.msra.mxu0 0.0
        %1760 = vmatprep.subr.mxu0 0.0
        %1761 = vmatpush1.xpose.msra.mxu0 0.0
        %1762 = vmatprep.subr.mxu0 0.0
        %1763 = vmatpush1.xpose.msra.mxu0 0.0
        %1764 = vmatprep.subr.mxu0 0.0
        %1765 = vmatpush1.xpose.msra.mxu0 0.0
        %1766 = vmatprep.subr.mxu0 0.0
        %1767 = vmatpush1.xpose.msra.mxu0 0.0
        %1768 = vmatprep.subr.mxu0 0.0
        %1769 = vmatpush1.xpose.msra.mxu0 0.0
        %1770 = vmatprep.subr.mxu0 0.0
        %1771 = vmatpush1.xpose.msra.mxu0 0.0
        %1772 = vmatprep.subr.mxu0 0.0
        %1773 = vmatpush1.xpose.msra.mxu0 0.0
        %1774 = vmatprep.subr.mxu0 0.0
        %1775 = vmatpush1.xpose.msra.mxu0 0.0
        %1776 = vmatprep.subr.mxu0 0.0
        %1777 = vmatpush1.xpose.msra.mxu0 0.0
        %1778 = vmatprep.subr.mxu0 0.0
        %1779 = vmatpush1.xpose.msra.mxu0 0.0
        %1780 = vmatprep.subr.mxu0 0.0
        %1781 = vmatpush1.xpose.msra.mxu0 0.0
        %1782 = vmatprep.subr.mxu0 0.0
        %1783 = vmatpush1.xpose.msra.mxu0 0.0
        %1784 = vmatprep.subr.mxu0 0.0
        %1785 = vmatpush1.xpose.msra.mxu0 0.0
        %1786 = vmatprep.subr.mxu0 0.0
        %1787 = vmatpush1.xpose.msra.mxu0 0.0
        %1788 = vmatprep.subr.mxu0 0.0
        %1789 = vmatpush1.xpose.msra.mxu0 0.0
        %1790 = vmatprep.subr.mxu0 0.0
        %1791 = vmatpush1.xpose.msra.mxu0 0.0
        %1792 = vmatprep.subr.mxu0 0.0
        %1793 = vmatpush1.xpose.msra.mxu0 0.0
        %1794 = vmatprep.subr.mxu0 0.0
        %1795 = vmatpush1.xpose.msra.mxu0 0.0
        %1796 = vmatprep.subr.mxu0 0.0
        %1797 = vmatpush1.xpose.msra.mxu0 0.0
        %1798 = vmatprep.subr.mxu0 0.0
        %1799 = vmatpush1.xpose.msra.mxu0 0.0
        %1800 = vmatprep.subr.mxu0 0.0
        %1801 = vmatpush1.xpose.msra.mxu0 0.0
        %1802 = vmatprep.subr.mxu0 0.0
        %1803 = vmatpush1.xpose.msra.mxu0 0.0
        %1804 = vmatprep.mubr.f32.mxu0 0.0
        %1805 = vmatmul.mubr.f32.gmra.mrb[0].mxu0 %v1730
        %v1806 = vpop.f32.mrb[0].mxu0
        %v1807 = vadd.f32 0.0, %v1806
        %v1808 = vpop.f32.mrb[0].mxu0
        %1809 = vmatprep.mubr.f32.mxu0 0.0
        %1810 = vmatmul.mubr.f32.gmra.mrb[0].mxu0 %v1732
        %v1811 = vpop.f32.mrb[0].mxu0
        %v1812 = vadd.f32 0.0, %v1811
        %v1813 = vpop.f32.mrb[0].mxu0
        %1814 = vdwg.mxu0
        %1815 = vrot.lane.b32.xlu0 %v551, 64
        %v1816 = vpop.permute.xlu0 %1815
        %1817 = vrot.lane.b32.xlu0 %v552, 64
        %v1818 = vpop.permute.xlu0 %1817
        %v1819 = vsel %vm829, %v1816, 0
        %v1821 = vsel %vm829, %v1818, 0
        %v1824 = vsel %vm829, %v1699, 0
        %v1827 = vsel %vm829, %v1701, 0
        %1829 = vmatprep.subr.mxu0 0.0
        %1830 = vmatpush1.xpose.msra.mxu0 %v1824
        %1831 = vmatprep.subr.mxu0 0.0
        %1832 = vmatpush1.xpose.msra.mxu0 %v1827
        %1833 = vmatprep.subr.mxu0 0.0
        %1834 = vmatpush1.xpose.msra.mxu0 0.0
        %1835 = vmatprep.subr.mxu0 0.0
        %1836 = vmatpush1.xpose.msra.mxu0 0.0
        %1837 = vmatprep.subr.mxu0 0.0
        %1838 = vmatpush1.xpose.msra.mxu0 0.0
        %1839 = vmatprep.subr.mxu0 0.0
        %1840 = vmatpush1.xpose.msra.mxu0 0.0
        %1841 = vmatprep.subr.mxu0 0.0
        %1842 = vmatpush1.xpose.msra.mxu0 0.0
        %1843 = vmatprep.subr.mxu0 0.0
        %1844 = vmatpush1.xpose.msra.mxu0 0.0
        %1845 = vmatprep.subr.mxu0 0.0
        %1846 = vmatpush1.xpose.msra.mxu0 0.0
        %1847 = vmatprep.subr.mxu0 0.0
        %1848 = vmatpush1.xpose.msra.mxu0 0.0
        %1849 = vmatprep.subr.mxu0 0.0
        %1850 = vmatpush1.xpose.msra.mxu0 0.0
        %1851 = vmatprep.subr.mxu0 0.0
        %1852 = vmatpush1.xpose.msra.mxu0 0.0
        %1853 = vmatprep.subr.mxu0 0.0
        %1854 = vmatpush1.xpose.msra.mxu0 0.0
        %1855 = vmatprep.subr.mxu0 0.0
        %1856 = vmatpush1.xpose.msra.mxu0 0.0
        %1857 = vmatprep.subr.mxu0 0.0
        %1858 = vmatpush1.xpose.msra.mxu0 0.0
        %1859 = vmatprep.subr.mxu0 0.0
        %1860 = vmatpush1.xpose.msra.mxu0 0.0
        %1861 = vmatprep.subr.mxu0 0.0
        %1862 = vmatpush1.xpose.msra.mxu0 0.0
        %1863 = vmatprep.subr.mxu0 0.0
        %1864 = vmatpush1.xpose.msra.mxu0 0.0
        %1865 = vmatprep.subr.mxu0 0.0
        %1866 = vmatpush1.xpose.msra.mxu0 0.0
        %1867 = vmatprep.subr.mxu0 0.0
        %1868 = vmatpush1.xpose.msra.mxu0 0.0
        %1869 = vmatprep.subr.mxu0 0.0
        %1870 = vmatpush1.xpose.msra.mxu0 0.0
        %1871 = vmatprep.subr.mxu0 0.0
        %1872 = vmatpush1.xpose.msra.mxu0 0.0
        %1873 = vmatprep.subr.mxu0 0.0
        %1874 = vmatpush1.xpose.msra.mxu0 0.0
        %1875 = vmatprep.subr.mxu0 0.0
        %1876 = vmatpush1.xpose.msra.mxu0 0.0
        %1877 = vmatprep.subr.mxu0 0.0
        %1878 = vmatpush1.xpose.msra.mxu0 0.0
        %1879 = vmatprep.subr.mxu0 0.0
        %1880 = vmatpush1.xpose.msra.mxu0 0.0
        %1881 = vmatprep.subr.mxu0 0.0
        %1882 = vmatpush1.xpose.msra.mxu0 0.0
        %1883 = vmatprep.subr.mxu0 0.0
        %1884 = vmatpush1.xpose.msra.mxu0 0.0
        %1885 = vmatprep.subr.mxu0 0.0
        %1886 = vmatpush1.xpose.msra.mxu0 0.0
        %1887 = vmatprep.subr.mxu0 0.0
        %1888 = vmatpush1.xpose.msra.mxu0 0.0
        %1889 = vmatprep.subr.mxu0 0.0
        %1890 = vmatpush1.xpose.msra.mxu0 0.0
        %1891 = vmatprep.subr.mxu0 0.0
        %1892 = vmatpush1.xpose.msra.mxu0 0.0
        %1893 = vmatprep.mubr.f32.mxu0 0.0
        %1894 = vmatmul.mubr.f32.gmra.mrb[0].mxu0 %v1819
        %v1895 = vpop.f32.mrb[0].mxu0
        %v1896 = vadd.f32 0.0, %v1895
        %v1897 = vpop.f32.mrb[0].mxu0
        %1898 = vmatprep.mubr.f32.mxu0 0.0
        %1899 = vmatmul.mubr.f32.gmra.mrb[0].mxu0 %v1821
        %v1900 = vpop.f32.mrb[0].mxu0
        %v1901 = vadd.f32 0.0, %v1900
        %v1902 = vpop.f32.mrb[0].mxu0
        %1903 = vdwg.mxu0
        %1904 = vrot.lane.b32.xlu0 %v553, 64
        %v1905 = vpop.permute.xlu0 %1904
        %1906 = vrot.lane.b32.xlu0 %v554, 64
        %v1907 = vpop.permute.xlu0 %1906
        %v1908 = vsel %vm829, %v1905, 0
        %v1910 = vsel %vm829, %v1907, 0
        %v1913 = vsel %vm829, %v1703, 0
        %v1916 = vsel %vm829, %v1705, 0
        %1918 = vmatprep.subr.mxu0 0.0
        %1919 = vmatpush1.xpose.msra.mxu0 %v1913
        %1920 = vmatprep.subr.mxu0 0.0
        %1921 = vmatpush1.xpose.msra.mxu0 %v1916
        %1922 = vmatprep.subr.mxu0 0.0
        %1923 = vmatpush1.xpose.msra.mxu0 0.0
        %1924 = vmatprep.subr.mxu0 0.0
        %1925 = vmatpush1.xpose.msra.mxu0 0.0
        %1926 = vmatprep.subr.mxu0 0.0
        %1927 = vmatpush1.xpose.msra.mxu0 0.0
        %1928 = vmatprep.subr.mxu0 0.0
        %1929 = vmatpush1.xpose.msra.mxu0 0.0
        %1930 = vmatprep.subr.mxu0 0.0
        %1931 = vmatpush1.xpose.msra.mxu0 0.0
        %1932 = vmatprep.subr.mxu0 0.0
        %1933 = vmatpush1.xpose.msra.mxu0 0.0
        %1934 = vmatprep.subr.mxu0 0.0
        %1935 = vmatpush1.xpose.msra.mxu0 0.0
        %1936 = vmatprep.subr.mxu0 0.0
        %1937 = vmatpush1.xpose.msra.mxu0 0.0
        %1938 = vmatprep.subr.mxu0 0.0
        %1939 = vmatpush1.xpose.msra.mxu0 0.0
        %1940 = vmatprep.subr.mxu0 0.0
        %1941 = vmatpush1.xpose.msra.mxu0 0.0
        %1942 = vmatprep.subr.mxu0 0.0
        %1943 = vmatpush1.xpose.msra.mxu0 0.0
        %1944 = vmatprep.subr.mxu0 0.0
        %1945 = vmatpush1.xpose.msra.mxu0 0.0
        %1946 = vmatprep.subr.mxu0 0.0
        %1947 = vmatpush1.xpose.msra.mxu0 0.0
        %1948 = vmatprep.subr.mxu0 0.0
        %1949 = vmatpush1.xpose.msra.mxu0 0.0
        %1950 = vmatprep.subr.mxu0 0.0
        %1951 = vmatpush1.xpose.msra.mxu0 0.0
        %1952 = vmatprep.subr.mxu0 0.0
        %1953 = vmatpush1.xpose.msra.mxu0 0.0
        %1954 = vmatprep.subr.mxu0 0.0
        %1955 = vmatpush1.xpose.msra.mxu0 0.0
        %1956 = vmatprep.subr.mxu0 0.0
        %1957 = vmatpush1.xpose.msra.mxu0 0.0
        %1958 = vmatprep.subr.mxu0 0.0
        %1959 = vmatpush1.xpose.msra.mxu0 0.0
        %1960 = vmatprep.subr.mxu0 0.0
        %1961 = vmatpush1.xpose.msra.mxu0 0.0
        %1962 = vmatprep.subr.mxu0 0.0
        %1963 = vmatpush1.xpose.msra.mxu0 0.0
        %1964 = vmatprep.subr.mxu0 0.0
        %1965 = vmatpush1.xpose.msra.mxu0 0.0
        %1966 = vmatprep.subr.mxu0 0.0
        %1967 = vmatpush1.xpose.msra.mxu0 0.0
        %1968 = vmatprep.subr.mxu0 0.0
        %1969 = vmatpush1.xpose.msra.mxu0 0.0
        %1970 = vmatprep.subr.mxu0 0.0
        %1971 = vmatpush1.xpose.msra.mxu0 0.0
        %1972 = vmatprep.subr.mxu0 0.0
        %1973 = vmatpush1.xpose.msra.mxu0 0.0
        %1974 = vmatprep.subr.mxu0 0.0
        %1975 = vmatpush1.xpose.msra.mxu0 0.0
        %1976 = vmatprep.subr.mxu0 0.0
        %1977 = vmatpush1.xpose.msra.mxu0 0.0
        %1978 = vmatprep.subr.mxu0 0.0
        %1979 = vmatpush1.xpose.msra.mxu0 0.0
        %1980 = vmatprep.subr.mxu0 0.0
        %1981 = vmatpush1.xpose.msra.mxu0 0.0
        %1982 = vmatprep.mubr.f32.mxu0 0.0
        %1983 = vmatmul.mubr.f32.gmra.mrb[0].mxu0 %v1908
        %v1984 = vpop.f32.mrb[0].mxu0
        %v1985 = vadd.f32 0.0, %v1984
        %v1986 = vpop.f32.mrb[0].mxu0
        %1987 = vmatprep.mubr.f32.mxu0 0.0
        %1988 = vmatmul.mubr.f32.gmra.mrb[0].mxu0 %v1910
        %v1989 = vpop.f32.mrb[0].mxu0
        %v1990 = vadd.f32 0.0, %v1989
        %v1991 = vpop.f32.mrb[0].mxu0
        %1992 = vdwg.mxu0
        %1993 = vrot.lane.b32.xlu0 %v555, 64
        %v1994 = vpop.permute.xlu0 %1993
        %1995 = vrot.lane.b32.xlu0 %v556, 64
        %v1996 = vpop.permute.xlu0 %1995
        %v1997 = vsel %vm829, %v1994, 0
        %v1999 = vsel %vm829, %v1996, 0
        %v2002 = vsel %vm829, %v1707, 0
        %v2005 = vsel %vm829, %v1709, 0
        %2007 = vmatprep.subr.mxu0 0.0
        %2008 = vmatpush1.xpose.msra.mxu0 %v2002
        %2009 = vmatprep.subr.mxu0 0.0
        %2010 = vmatpush1.xpose.msra.mxu0 %v2005
        %2011 = vmatprep.subr.mxu0 0.0
        %2012 = vmatpush1.xpose.msra.mxu0 0.0
        %2013 = vmatprep.subr.mxu0 0.0
        %2014 = vmatpush1.xpose.msra.mxu0 0.0
        %2015 = vmatprep.subr.mxu0 0.0
        %2016 = vmatpush1.xpose.msra.mxu0 0.0
        %2017 = vmatprep.subr.mxu0 0.0
        %2018 = vmatpush1.xpose.msra.mxu0 0.0
        %2019 = vmatprep.subr.mxu0 0.0
        %2020 = vmatpush1.xpose.msra.mxu0 0.0
        %2021 = vmatprep.subr.mxu0 0.0
        %2022 = vmatpush1.xpose.msra.mxu0 0.0
        %2023 = vmatprep.subr.mxu0 0.0
        %2024 = vmatpush1.xpose.msra.mxu0 0.0
        %2025 = vmatprep.subr.mxu0 0.0
        %2026 = vmatpush1.xpose.msra.mxu0 0.0
        %2027 = vmatprep.subr.mxu0 0.0
        %2028 = vmatpush1.xpose.msra.mxu0 0.0
        %2029 = vmatprep.subr.mxu0 0.0
        %2030 = vmatpush1.xpose.msra.mxu0 0.0
        %2031 = vmatprep.subr.mxu0 0.0
        %2032 = vmatpush1.xpose.msra.mxu0 0.0
        %2033 = vmatprep.subr.mxu0 0.0
        %2034 = vmatpush1.xpose.msra.mxu0 0.0
        %2035 = vmatprep.subr.mxu0 0.0
        %2036 = vmatpush1.xpose.msra.mxu0 0.0
        %2037 = vmatprep.subr.mxu0 0.0
        %2038 = vmatpush1.xpose.msra.mxu0 0.0
        %2039 = vmatprep.subr.mxu0 0.0
        %2040 = vmatpush1.xpose.msra.mxu0 0.0
        %2041 = vmatprep.subr.mxu0 0.0
        %2042 = vmatpush1.xpose.msra.mxu0 0.0
        %2043 = vmatprep.subr.mxu0 0.0
        %2044 = vmatpush1.xpose.msra.mxu0 0.0
        %2045 = vmatprep.subr.mxu0 0.0
        %2046 = vmatpush1.xpose.msra.mxu0 0.0
        %2047 = vmatprep.subr.mxu0 0.0
        %2048 = vmatpush1.xpose.msra.mxu0 0.0
        %2049 = vmatprep.subr.mxu0 0.0
        %2050 = vmatpush1.xpose.msra.mxu0 0.0
        %2051 = vmatprep.subr.mxu0 0.0
        %2052 = vmatpush1.xpose.msra.mxu0 0.0
        %2053 = vmatprep.subr.mxu0 0.0
        %2054 = vmatpush1.xpose.msra.mxu0 0.0
        %2055 = vmatprep.subr.mxu0 0.0
        %2056 = vmatpush1.xpose.msra.mxu0 0.0
        %2057 = vmatprep.subr.mxu0 0.0
        %2058 = vmatpush1.xpose.msra.mxu0 0.0
        %2059 = vmatprep.subr.mxu0 0.0
        %2060 = vmatpush1.xpose.msra.mxu0 0.0
        %2061 = vmatprep.subr.mxu0 0.0
        %2062 = vmatpush1.xpose.msra.mxu0 0.0
        %2063 = vmatprep.subr.mxu0 0.0
        %2064 = vmatpush1.xpose.msra.mxu0 0.0
        %2065 = vmatprep.subr.mxu0 0.0
        %2066 = vmatpush1.xpose.msra.mxu0 0.0
        %2067 = vmatprep.subr.mxu0 0.0
        %2068 = vmatpush1.xpose.msra.mxu0 0.0
        %2069 = vmatprep.subr.mxu0 0.0
        %2070 = vmatpush1.xpose.msra.mxu0 0.0
        %2071 = vmatprep.mubr.f32.mxu0 0.0
        %2072 = vmatmul.mubr.f32.gmra.mrb[0].mxu0 %v1997
        %v2073 = vpop.f32.mrb[0].mxu0
        %v2074 = vadd.f32 0.0, %v2073
        %v2075 = vpop.f32.mrb[0].mxu0
        %2076 = vmatprep.mubr.f32.mxu0 0.0
        %2077 = vmatmul.mubr.f32.gmra.mrb[0].mxu0 %v1999
        %v2078 = vpop.f32.mrb[0].mxu0
        %v2079 = vadd.f32 0.0, %v2078
        %v2080 = vpop.f32.mrb[0].mxu0
        %2081 = vdwg.mxu0
        %2082 = vrot.lane.b32.xlu0 %v557, 64
        %v2083 = vpop.permute.xlu0 %2082
        %2084 = vrot.lane.b32.xlu0 %v558, 64
        %v2085 = vpop.permute.xlu0 %2084
        %v2086 = vsel %vm829, %v2083, 0
        %v2088 = vsel %vm829, %v2085, 0
        %v2091 = vsel %vm829, %v1711, 0
        %v2094 = vsel %vm829, %v1713, 0
        %2096 = vmatprep.subr.mxu0 0.0
        %2097 = vmatpush1.xpose.msra.mxu0 %v2091
        %2098 = vmatprep.subr.mxu0 0.0
        %2099 = vmatpush1.xpose.msra.mxu0 %v2094
        %2100 = vmatprep.subr.mxu0 0.0
        %2101 = vmatpush1.xpose.msra.mxu0 0.0
        %2102 = vmatprep.subr.mxu0 0.0
        %2103 = vmatpush1.xpose.msra.mxu0 0.0
        %2104 = vmatprep.subr.mxu0 0.0
        %2105 = vmatpush1.xpose.msra.mxu0 0.0
        %2106 = vmatprep.subr.mxu0 0.0
        %2107 = vmatpush1.xpose.msra.mxu0 0.0
        %2108 = vmatprep.subr.mxu0 0.0
        %2109 = vmatpush1.xpose.msra.mxu0 0.0
        %2110 = vmatprep.subr.mxu0 0.0
        %2111 = vmatpush1.xpose.msra.mxu0 0.0
        %2112 = vmatprep.subr.mxu0 0.0
        %2113 = vmatpush1.xpose.msra.mxu0 0.0
        %2114 = vmatprep.subr.mxu0 0.0
        %2115 = vmatpush1.xpose.msra.mxu0 0.0
        %2116 = vmatprep.subr.mxu0 0.0
        %2117 = vmatpush1.xpose.msra.mxu0 0.0
        %2118 = vmatprep.subr.mxu0 0.0
        %2119 = vmatpush1.xpose.msra.mxu0 0.0
        %2120 = vmatprep.subr.mxu0 0.0
        %2121 = vmatpush1.xpose.msra.mxu0 0.0
        %2122 = vmatprep.subr.mxu0 0.0
        %2123 = vmatpush1.xpose.msra.mxu0 0.0
        %2124 = vmatprep.subr.mxu0 0.0
        %2125 = vmatpush1.xpose.msra.mxu0 0.0
        %2126 = vmatprep.subr.mxu0 0.0
        %2127 = vmatpush1.xpose.msra.mxu0 0.0
        %2128 = vmatprep.subr.mxu0 0.0
        %2129 = vmatpush1.xpose.msra.mxu0 0.0
        %2130 = vmatprep.subr.mxu0 0.0
        %2131 = vmatpush1.xpose.msra.mxu0 0.0
        %2132 = vmatprep.subr.mxu0 0.0
        %2133 = vmatpush1.xpose.msra.mxu0 0.0
        %2134 = vmatprep.subr.mxu0 0.0
        %2135 = vmatpush1.xpose.msra.mxu0 0.0
        %2136 = vmatprep.subr.mxu0 0.0
        %2137 = vmatpush1.xpose.msra.mxu0 0.0
        %2138 = vmatprep.subr.mxu0 0.0
        %2139 = vmatpush1.xpose.msra.mxu0 0.0
        %2140 = vmatprep.subr.mxu0 0.0
        %2141 = vmatpush1.xpose.msra.mxu0 0.0
        %2142 = vmatprep.subr.mxu0 0.0
        %2143 = vmatpush1.xpose.msra.mxu0 0.0
        %2144 = vmatprep.subr.mxu0 0.0
        %2145 = vmatpush1.xpose.msra.mxu0 0.0
        %2146 = vmatprep.subr.mxu0 0.0
        %2147 = vmatpush1.xpose.msra.mxu0 0.0
        %2148 = vmatprep.subr.mxu0 0.0
        %2149 = vmatpush1.xpose.msra.mxu0 0.0
        %2150 = vmatprep.subr.mxu0 0.0
        %2151 = vmatpush1.xpose.msra.mxu0 0.0
        %2152 = vmatprep.subr.mxu0 0.0
        %2153 = vmatpush1.xpose.msra.mxu0 0.0
        %2154 = vmatprep.subr.mxu0 0.0
        %2155 = vmatpush1.xpose.msra.mxu0 0.0
        %2156 = vmatprep.subr.mxu0 0.0
        %2157 = vmatpush1.xpose.msra.mxu0 0.0
        %2158 = vmatprep.subr.mxu0 0.0
        %2159 = vmatpush1.xpose.msra.mxu0 0.0
        %2160 = vmatprep.mubr.f32.mxu0 0.0
        %2161 = vmatmul.mubr.f32.gmra.mrb[0].mxu0 %v2086
        %v2162 = vpop.f32.mrb[0].mxu0
        %v2163 = vadd.f32 0.0, %v2162
        %v2164 = vpop.f32.mrb[0].mxu0
        %2165 = vmatprep.mubr.f32.mxu0 0.0
        %2166 = vmatmul.mubr.f32.gmra.mrb[0].mxu0 %v2088
        %v2167 = vpop.f32.mrb[0].mxu0
        %v2168 = vadd.f32 0.0, %v2167
        %v2169 = vpop.f32.mrb[0].mxu0
        %2170 = vdwg.mxu0
        %2171 = vrot.lane.b32.xlu0 %v559, 64
        %v2172 = vpop.permute.xlu0 %2171
        %2173 = vrot.lane.b32.xlu0 %v560, 64
        %v2174 = vpop.permute.xlu0 %2173
        %v2175 = vsel %vm829, %v2172, 0
        %v2177 = vsel %vm829, %v2174, 0
        %v2180 = vsel %vm829, %v1715, 0
        %v2183 = vsel %vm829, %v1717, 0
        %2185 = vmatprep.subr.mxu0 0.0
        %2186 = vmatpush1.xpose.msra.mxu0 %v2180
        %2187 = vmatprep.subr.mxu0 0.0
        %2188 = vmatpush1.xpose.msra.mxu0 %v2183
        %2189 = vmatprep.subr.mxu0 0.0
        %2190 = vmatpush1.xpose.msra.mxu0 0.0
        %2191 = vmatprep.subr.mxu0 0.0
        %2192 = vmatpush1.xpose.msra.mxu0 0.0
        %2193 = vmatprep.subr.mxu0 0.0
        %2194 = vmatpush1.xpose.msra.mxu0 0.0
        %2195 = vmatprep.subr.mxu0 0.0
        %2196 = vmatpush1.xpose.msra.mxu0 0.0
        %2197 = vmatprep.subr.mxu0 0.0
        %2198 = vmatpush1.xpose.msra.mxu0 0.0
        %2199 = vmatprep.subr.mxu0 0.0
        %2200 = vmatpush1.xpose.msra.mxu0 0.0
        %2201 = vmatprep.subr.mxu0 0.0
        %2202 = vmatpush1.xpose.msra.mxu0 0.0
        %2203 = vmatprep.subr.mxu0 0.0
        %2204 = vmatpush1.xpose.msra.mxu0 0.0
        %2205 = vmatprep.subr.mxu0 0.0
        %2206 = vmatpush1.xpose.msra.mxu0 0.0
        %2207 = vmatprep.subr.mxu0 0.0
        %2208 = vmatpush1.xpose.msra.mxu0 0.0
        %2209 = vmatprep.subr.mxu0 0.0
        %2210 = vmatpush1.xpose.msra.mxu0 0.0
        %2211 = vmatprep.subr.mxu0 0.0
        %2212 = vmatpush1.xpose.msra.mxu0 0.0
        %2213 = vmatprep.subr.mxu0 0.0
        %2214 = vmatpush1.xpose.msra.mxu0 0.0
        %2215 = vmatprep.subr.mxu0 0.0
        %2216 = vmatpush1.xpose.msra.mxu0 0.0
        %2217 = vmatprep.subr.mxu0 0.0
        %2218 = vmatpush1.xpose.msra.mxu0 0.0
        %2219 = vmatprep.subr.mxu0 0.0
        %2220 = vmatpush1.xpose.msra.mxu0 0.0
        %2221 = vmatprep.subr.mxu0 0.0
        %2222 = vmatpush1.xpose.msra.mxu0 0.0
        %2223 = vmatprep.subr.mxu0 0.0
        %2224 = vmatpush1.xpose.msra.mxu0 0.0
        %2225 = vmatprep.subr.mxu0 0.0
        %2226 = vmatpush1.xpose.msra.mxu0 0.0
        %2227 = vmatprep.subr.mxu0 0.0
        %2228 = vmatpush1.xpose.msra.mxu0 0.0
        %2229 = vmatprep.subr.mxu0 0.0
        %2230 = vmatpush1.xpose.msra.mxu0 0.0
        %2231 = vmatprep.subr.mxu0 0.0
        %2232 = vmatpush1.xpose.msra.mxu0 0.0
        %2233 = vmatprep.subr.mxu0 0.0
        %2234 = vmatpush1.xpose.msra.mxu0 0.0
        %2235 = vmatprep.subr.mxu0 0.0
        %2236 = vmatpush1.xpose.msra.mxu0 0.0
        %2237 = vmatprep.subr.mxu0 0.0
        %2238 = vmatpush1.xpose.msra.mxu0 0.0
        %2239 = vmatprep.subr.mxu0 0.0
        %2240 = vmatpush1.xpose.msra.mxu0 0.0
        %2241 = vmatprep.subr.mxu0 0.0
        %2242 = vmatpush1.xpose.msra.mxu0 0.0
        %2243 = vmatprep.subr.mxu0 0.0
        %2244 = vmatpush1.xpose.msra.mxu0 0.0
        %2245 = vmatprep.subr.mxu0 0.0
        %2246 = vmatpush1.xpose.msra.mxu0 0.0
        %2247 = vmatprep.subr.mxu0 0.0
        %2248 = vmatpush1.xpose.msra.mxu0 0.0
        %2249 = vmatprep.mubr.f32.mxu0 0.0
        %2250 = vmatmul.mubr.f32.gmra.mrb[0].mxu0 %v2175
        %v2251 = vpop.f32.mrb[0].mxu0
        %v2252 = vadd.f32 0.0, %v2251
        %v2253 = vpop.f32.mrb[0].mxu0
        %2254 = vmatprep.mubr.f32.mxu0 0.0
        %2255 = vmatmul.mubr.f32.gmra.mrb[0].mxu0 %v2177
        %v2256 = vpop.f32.mrb[0].mxu0
        %v2257 = vadd.f32 0.0, %v2256
        %v2258 = vpop.f32.mrb[0].mxu0
        %2259 = vdwg.mxu0
        %2260 = vrot.lane.b32.xlu0 %v561, 64
        %v2261 = vpop.permute.xlu0 %2260
        %2262 = vrot.lane.b32.xlu0 %v562, 64
        %v2263 = vpop.permute.xlu0 %2262
        %v2264 = vsel %vm829, %v2261, 0
        %v2266 = vsel %vm829, %v2263, 0
        %v2269 = vsel %vm829, %v1719, 0
        %v2272 = vsel %vm829, %v1721, 0
        %2274 = vmatprep.subr.mxu0 0.0
        %2275 = vmatpush1.xpose.msra.mxu0 %v2269
        %2276 = vmatprep.subr.mxu0 0.0
        %2277 = vmatpush1.xpose.msra.mxu0 %v2272
        %2278 = vmatprep.subr.mxu0 0.0
        %2279 = vmatpush1.xpose.msra.mxu0 0.0
        %2280 = vmatprep.subr.mxu0 0.0
        %2281 = vmatpush1.xpose.msra.mxu0 0.0
        %2282 = vmatprep.subr.mxu0 0.0
        %2283 = vmatpush1.xpose.msra.mxu0 0.0
        %2284 = vmatprep.subr.mxu0 0.0
        %2285 = vmatpush1.xpose.msra.mxu0 0.0
        %2286 = vmatprep.subr.mxu0 0.0
        %2287 = vmatpush1.xpose.msra.mxu0 0.0
        %2288 = vmatprep.subr.mxu0 0.0
        %2289 = vmatpush1.xpose.msra.mxu0 0.0
        %2290 = vmatprep.subr.mxu0 0.0
        %2291 = vmatpush1.xpose.msra.mxu0 0.0
        %2292 = vmatprep.subr.mxu0 0.0
        %2293 = vmatpush1.xpose.msra.mxu0 0.0
        %2294 = vmatprep.subr.mxu0 0.0
        %2295 = vmatpush1.xpose.msra.mxu0 0.0
        %2296 = vmatprep.subr.mxu0 0.0
        %2297 = vmatpush1.xpose.msra.mxu0 0.0
        %2298 = vmatprep.subr.mxu0 0.0
        %2299 = vmatpush1.xpose.msra.mxu0 0.0
        %2300 = vmatprep.subr.mxu0 0.0
        %2301 = vmatpush1.xpose.msra.mxu0 0.0
        %2302 = vmatprep.subr.mxu0 0.0
        %2303 = vmatpush1.xpose.msra.mxu0 0.0
        %2304 = vmatprep.subr.mxu0 0.0
        %2305 = vmatpush1.xpose.msra.mxu0 0.0
        %2306 = vmatprep.subr.mxu0 0.0
        %2307 = vmatpush1.xpose.msra.mxu0 0.0
        %2308 = vmatprep.subr.mxu0 0.0
        %2309 = vmatpush1.xpose.msra.mxu0 0.0
        %2310 = vmatprep.subr.mxu0 0.0
        %2311 = vmatpush1.xpose.msra.mxu0 0.0
        %2312 = vmatprep.subr.mxu0 0.0
        %2313 = vmatpush1.xpose.msra.mxu0 0.0
        %2314 = vmatprep.subr.mxu0 0.0
        %2315 = vmatpush1.xpose.msra.mxu0 0.0
        %2316 = vmatprep.subr.mxu0 0.0
        %2317 = vmatpush1.xpose.msra.mxu0 0.0
        %2318 = vmatprep.subr.mxu0 0.0
        %2319 = vmatpush1.xpose.msra.mxu0 0.0
        %2320 = vmatprep.subr.mxu0 0.0
        %2321 = vmatpush1.xpose.msra.mxu0 0.0
        %2322 = vmatprep.subr.mxu0 0.0
        %2323 = vmatpush1.xpose.msra.mxu0 0.0
        %2324 = vmatprep.subr.mxu0 0.0
        %2325 = vmatpush1.xpose.msra.mxu0 0.0
        %2326 = vmatprep.subr.mxu0 0.0
        %2327 = vmatpush1.xpose.msra.mxu0 0.0
        %2328 = vmatprep.subr.mxu0 0.0
        %2329 = vmatpush1.xpose.msra.mxu0 0.0
        %2330 = vmatprep.subr.mxu0 0.0
        %2331 = vmatpush1.xpose.msra.mxu0 0.0
        %2332 = vmatprep.subr.mxu0 0.0
        %2333 = vmatpush1.xpose.msra.mxu0 0.0
        %2334 = vmatprep.subr.mxu0 0.0
        %2335 = vmatpush1.xpose.msra.mxu0 0.0
        %2336 = vmatprep.subr.mxu0 0.0
        %2337 = vmatpush1.xpose.msra.mxu0 0.0
        %2338 = vmatprep.mubr.f32.mxu0 0.0
        %2339 = vmatmul.mubr.f32.gmra.mrb[0].mxu0 %v2264
        %v2340 = vpop.f32.mrb[0].mxu0
        %v2341 = vadd.f32 0.0, %v2340
        %v2342 = vpop.f32.mrb[0].mxu0
        %2343 = vmatprep.mubr.f32.mxu0 0.0
        %2344 = vmatmul.mubr.f32.gmra.mrb[0].mxu0 %v2266
        %v2345 = vpop.f32.mrb[0].mxu0
        %v2346 = vadd.f32 0.0, %v2345
        %v2347 = vpop.f32.mrb[0].mxu0
        %2348 = vdwg.mxu0
        %2349 = vrot.lane.b32.xlu0 %v563, 64
        %v2350 = vpop.permute.xlu0 %2349
        %2351 = vrot.lane.b32.xlu0 %v564, 64
        %v2352 = vpop.permute.xlu0 %2351
        %v2353 = vsel %vm829, %v2350, 0
        %v2355 = vsel %vm829, %v2352, 0
        %v2358 = vsel %vm829, %v1723, 0
        %v2361 = vsel %vm829, %v1725, 0
        %2363 = vmatprep.subr.mxu0 0.0
        %2364 = vmatpush1.xpose.msra.mxu0 %v2358
        %2365 = vmatprep.subr.mxu0 0.0
        %2366 = vmatpush1.xpose.msra.mxu0 %v2361
        %2367 = vmatprep.subr.mxu0 0.0
        %2368 = vmatpush1.xpose.msra.mxu0 0.0
        %2369 = vmatprep.subr.mxu0 0.0
        %2370 = vmatpush1.xpose.msra.mxu0 0.0
        %2371 = vmatprep.subr.mxu0 0.0
        %2372 = vmatpush1.xpose.msra.mxu0 0.0
        %2373 = vmatprep.subr.mxu0 0.0
        %2374 = vmatpush1.xpose.msra.mxu0 0.0
        %2375 = vmatprep.subr.mxu0 0.0
        %2376 = vmatpush1.xpose.msra.mxu0 0.0
        %2377 = vmatprep.subr.mxu0 0.0
        %2378 = vmatpush1.xpose.msra.mxu0 0.0
        %2379 = vmatprep.subr.mxu0 0.0
        %2380 = vmatpush1.xpose.msra.mxu0 0.0
        %2381 = vmatprep.subr.mxu0 0.0
        %2382 = vmatpush1.xpose.msra.mxu0 0.0
        %2383 = vmatprep.subr.mxu0 0.0
        %2384 = vmatpush1.xpose.msra.mxu0 0.0
        %2385 = vmatprep.subr.mxu0 0.0
        %2386 = vmatpush1.xpose.msra.mxu0 0.0
        %2387 = vmatprep.subr.mxu0 0.0
        %2388 = vmatpush1.xpose.msra.mxu0 0.0
        %2389 = vmatprep.subr.mxu0 0.0
        %2390 = vmatpush1.xpose.msra.mxu0 0.0
        %2391 = vmatprep.subr.mxu0 0.0
        %2392 = vmatpush1.xpose.msra.mxu0 0.0
        %2393 = vmatprep.subr.mxu0 0.0
        %2394 = vmatpush1.xpose.msra.mxu0 0.0
        %2395 = vmatprep.subr.mxu0 0.0
        %2396 = vmatpush1.xpose.msra.mxu0 0.0
        %2397 = vmatprep.subr.mxu0 0.0
        %2398 = vmatpush1.xpose.msra.mxu0 0.0
        %2399 = vmatprep.subr.mxu0 0.0
        %2400 = vmatpush1.xpose.msra.mxu0 0.0
        %2401 = vmatprep.subr.mxu0 0.0
        %2402 = vmatpush1.xpose.msra.mxu0 0.0
        %2403 = vmatprep.subr.mxu0 0.0
        %2404 = vmatpush1.xpose.msra.mxu0 0.0
        %2405 = vmatprep.subr.mxu0 0.0
        %2406 = vmatpush1.xpose.msra.mxu0 0.0
        %2407 = vmatprep.subr.mxu0 0.0
        %2408 = vmatpush1.xpose.msra.mxu0 0.0
        %2409 = vmatprep.subr.mxu0 0.0
        %2410 = vmatpush1.xpose.msra.mxu0 0.0
        %2411 = vmatprep.subr.mxu0 0.0
        %2412 = vmatpush1.xpose.msra.mxu0 0.0
        %2413 = vmatprep.subr.mxu0 0.0
        %2414 = vmatpush1.xpose.msra.mxu0 0.0
        %2415 = vmatprep.subr.mxu0 0.0
        %2416 = vmatpush1.xpose.msra.mxu0 0.0
        %2417 = vmatprep.subr.mxu0 0.0
        %2418 = vmatpush1.xpose.msra.mxu0 0.0
        %2419 = vmatprep.subr.mxu0 0.0
        %2420 = vmatpush1.xpose.msra.mxu0 0.0
        %2421 = vmatprep.subr.mxu0 0.0
        %2422 = vmatpush1.xpose.msra.mxu0 0.0
        %2423 = vmatprep.subr.mxu0 0.0
        %2424 = vmatpush1.xpose.msra.mxu0 0.0
        %2425 = vmatprep.subr.mxu0 0.0
        %2426 = vmatpush1.xpose.msra.mxu0 0.0
        %2427 = vmatprep.mubr.f32.mxu0 0.0
        %2428 = vmatmul.mubr.f32.gmra.mrb[0].mxu0 %v2353
        %v2429 = vpop.f32.mrb[0].mxu0
        %v2430 = vadd.f32 0.0, %v2429
        %v2431 = vpop.f32.mrb[0].mxu0
        %2432 = vmatprep.mubr.f32.mxu0 0.0
        %2433 = vmatmul.mubr.f32.gmra.mrb[0].mxu0 %v2355
        %v2434 = vpop.f32.mrb[0].mxu0
        %v2435 = vadd.f32 0.0, %v2434
        %v2436 = vpop.f32.mrb[0].mxu0
        %2437 = vdwg.mxu0
        %2438 = vrot.lane.b32.xlu0 %v549, 112
        %v2439 = vpop.permute.xlu0 %2438
        %2440 = vrot.lane.b32.xlu0 %v550, 112
        %v2441 = vpop.permute.xlu0 %2440
        %2442 = vrot.lane.b32.xlu0 %v551, 112
        %v2443 = vpop.permute.xlu0 %2442
        %2444 = vrot.lane.b32.xlu0 %v552, 112
        %v2445 = vpop.permute.xlu0 %2444
        %2446 = vrot.lane.b32.xlu0 %v553, 112
        %v2447 = vpop.permute.xlu0 %2446
        %2448 = vrot.lane.b32.xlu0 %v554, 112
        %v2449 = vpop.permute.xlu0 %2448
        %2450 = vrot.lane.b32.xlu0 %v555, 112
        %v2451 = vpop.permute.xlu0 %2450
        %2452 = vrot.lane.b32.xlu0 %v556, 112
        %v2453 = vpop.permute.xlu0 %2452
        %2454 = vrot.lane.b32.xlu0 %v557, 112
        %v2455 = vpop.permute.xlu0 %2454
        %2456 = vrot.lane.b32.xlu0 %v558, 112
        %v2457 = vpop.permute.xlu0 %2456
        %2458 = vrot.lane.b32.xlu0 %v559, 112
        %v2459 = vpop.permute.xlu0 %2458
        %2460 = vrot.lane.b32.xlu0 %v560, 112
        %v2461 = vpop.permute.xlu0 %2460
        %2462 = vrot.lane.b32.xlu0 %v561, 112
        %v2463 = vpop.permute.xlu0 %2462
        %2464 = vrot.lane.b32.xlu0 %v562, 112
        %v2465 = vpop.permute.xlu0 %2464
        %2466 = vrot.lane.b32.xlu0 %v563, 112
        %v2467 = vpop.permute.xlu0 %2466
        %2468 = vrot.lane.b32.xlu0 %v564, 112
        %v2469 = vpop.permute.xlu0 %2468
        %2486 = vxpose.xlu0.b32.start [1/16] %v2439, 128
        %2487 = vxpose.xlu0.b32.cont [2/16] %v2441, 128
        %2488 = vxpose.xlu0.b32.cont [3/16] 0.0, 128
        %2489 = vxpose.xlu0.b32.cont [4/16] 0.0, 128
        %2490 = vxpose.xlu0.b32.cont [5/16] 0.0, 128
        %2491 = vxpose.xlu0.b32.cont [6/16] 0.0, 128
        %2492 = vxpose.xlu0.b32.cont [7/16] 0.0, 128
        %2493 = vxpose.xlu0.b32.cont [8/16] 0.0, 128
        %2494 = vxpose.xlu0.b32.cont [9/16] 0.0, 128
        %2495 = vxpose.xlu0.b32.cont [10/16] 0.0, 128
        %2496 = vxpose.xlu0.b32.cont [11/16] 0.0, 128
        %2497 = vxpose.xlu0.b32.cont [12/16] 0.0, 128
        %2498 = vxpose.xlu0.b32.cont [13/16] 0.0, 128
        %2499 = vxpose.xlu0.b32.cont [14/16] 0.0, 128
        %2500 = vxpose.xlu0.b32.cont [15/16] 0.0, 128
        %2501 = vxpose.xlu0.b32.end [16/16] 0.0, 128
        %v2502 = vpop.trf.xlu0
        %v2503 = vpop.trf.xlu0
        %v2504 = vpop.trf.xlu0
        %v2505 = vpop.trf.xlu0
        %v2506 = vpop.trf.xlu0
        %v2507 = vpop.trf.xlu0
        %v2508 = vpop.trf.xlu0
        %v2509 = vpop.trf.xlu0
        %v2510 = vpop.trf.xlu0
        %v2511 = vpop.trf.xlu0
        %v2512 = vpop.trf.xlu0
        %v2513 = vpop.trf.xlu0
        %v2514 = vpop.trf.xlu0
        %v2515 = vpop.trf.xlu0
        %v2516 = vpop.trf.xlu0
        %v2517 = vpop.trf.xlu0
        %2518 = vxpose.xlu0.b32.start [1/16] %v2443, 128
        %2519 = vxpose.xlu0.b32.cont [2/16] %v2445, 128
        %2520 = vxpose.xlu0.b32.cont [3/16] 0.0, 128
        %2521 = vxpose.xlu0.b32.cont [4/16] 0.0, 128
        %2522 = vxpose.xlu0.b32.cont [5/16] 0.0, 128
        %2523 = vxpose.xlu0.b32.cont [6/16] 0.0, 128
        %2524 = vxpose.xlu0.b32.cont [7/16] 0.0, 128
        %2525 = vxpose.xlu0.b32.cont [8/16] 0.0, 128
        %2526 = vxpose.xlu0.b32.cont [9/16] 0.0, 128
        %2527 = vxpose.xlu0.b32.cont [10/16] 0.0, 128
        %2528 = vxpose.xlu0.b32.cont [11/16] 0.0, 128
        %2529 = vxpose.xlu0.b32.cont [12/16] 0.0, 128
        %2530 = vxpose.xlu0.b32.cont [13/16] 0.0, 128
        %2531 = vxpose.xlu0.b32.cont [14/16] 0.0, 128
        %2532 = vxpose.xlu0.b32.cont [15/16] 0.0, 128
        %2533 = vxpose.xlu0.b32.end [16/16] 0.0, 128
        %v2534 = vpop.trf.xlu0
        %v2535 = vpop.trf.xlu0
        %v2536 = vpop.trf.xlu0
        %v2537 = vpop.trf.xlu0
        %v2538 = vpop.trf.xlu0
        %v2539 = vpop.trf.xlu0
        %v2540 = vpop.trf.xlu0
        %v2541 = vpop.trf.xlu0
        %v2542 = vpop.trf.xlu0
        %v2543 = vpop.trf.xlu0
        %v2544 = vpop.trf.xlu0
        %v2545 = vpop.trf.xlu0
        %v2546 = vpop.trf.xlu0
        %v2547 = vpop.trf.xlu0
        %v2548 = vpop.trf.xlu0
        %v2549 = vpop.trf.xlu0
        %2550 = vxpose.xlu0.b32.start [1/16] %v2447, 128
        %2551 = vxpose.xlu0.b32.cont [2/16] %v2449, 128
        %2552 = vxpose.xlu0.b32.cont [3/16] 0.0, 128
        %2553 = vxpose.xlu0.b32.cont [4/16] 0.0, 128
        %2554 = vxpose.xlu0.b32.cont [5/16] 0.0, 128
        %2555 = vxpose.xlu0.b32.cont [6/16] 0.0, 128
        %2556 = vxpose.xlu0.b32.cont [7/16] 0.0, 128
        %2557 = vxpose.xlu0.b32.cont [8/16] 0.0, 128
        %2558 = vxpose.xlu0.b32.cont [9/16] 0.0, 128
        %2559 = vxpose.xlu0.b32.cont [10/16] 0.0, 128
        %2560 = vxpose.xlu0.b32.cont [11/16] 0.0, 128
        %2561 = vxpose.xlu0.b32.cont [12/16] 0.0, 128
        %2562 = vxpose.xlu0.b32.cont [13/16] 0.0, 128
        %2563 = vxpose.xlu0.b32.cont [14/16] 0.0, 128
        %2564 = vxpose.xlu0.b32.cont [15/16] 0.0, 128
        %2565 = vxpose.xlu0.b32.end [16/16] 0.0, 128
        %v2566 = vpop.trf.xlu0
        %v2567 = vpop.trf.xlu0
        %v2568 = vpop.trf.xlu0
        %v2569 = vpop.trf.xlu0
        %v2570 = vpop.trf.xlu0
        %v2571 = vpop.trf.xlu0
        %v2572 = vpop.trf.xlu0
        %v2573 = vpop.trf.xlu0
        %v2574 = vpop.trf.xlu0
        %v2575 = vpop.trf.xlu0
        %v2576 = vpop.trf.xlu0
        %v2577 = vpop.trf.xlu0
        %v2578 = vpop.trf.xlu0
        %v2579 = vpop.trf.xlu0
        %v2580 = vpop.trf.xlu0
        %v2581 = vpop.trf.xlu0
        %2582 = vxpose.xlu0.b32.start [1/16] %v2451, 128
        %2583 = vxpose.xlu0.b32.cont [2/16] %v2453, 128
        %2584 = vxpose.xlu0.b32.cont [3/16] 0.0, 128
        %2585 = vxpose.xlu0.b32.cont [4/16] 0.0, 128
        %2586 = vxpose.xlu0.b32.cont [5/16] 0.0, 128
        %2587 = vxpose.xlu0.b32.cont [6/16] 0.0, 128
        %2588 = vxpose.xlu0.b32.cont [7/16] 0.0, 128
        %2589 = vxpose.xlu0.b32.cont [8/16] 0.0, 128
        %2590 = vxpose.xlu0.b32.cont [9/16] 0.0, 128
        %2591 = vxpose.xlu0.b32.cont [10/16] 0.0, 128
        %2592 = vxpose.xlu0.b32.cont [11/16] 0.0, 128
        %2593 = vxpose.xlu0.b32.cont [12/16] 0.0, 128
        %2594 = vxpose.xlu0.b32.cont [13/16] 0.0, 128
        %2595 = vxpose.xlu0.b32.cont [14/16] 0.0, 128
        %2596 = vxpose.xlu0.b32.cont [15/16] 0.0, 128
        %2597 = vxpose.xlu0.b32.end [16/16] 0.0, 128
        %v2598 = vpop.trf.xlu0
        %v2599 = vpop.trf.xlu0
        %v2600 = vpop.trf.xlu0
        %v2601 = vpop.trf.xlu0
        %v2602 = vpop.trf.xlu0
        %v2603 = vpop.trf.xlu0
        %v2604 = vpop.trf.xlu0
        %v2605 = vpop.trf.xlu0
        %v2606 = vpop.trf.xlu0
        %v2607 = vpop.trf.xlu0
        %v2608 = vpop.trf.xlu0
        %v2609 = vpop.trf.xlu0
        %v2610 = vpop.trf.xlu0
        %v2611 = vpop.trf.xlu0
        %v2612 = vpop.trf.xlu0
        %v2613 = vpop.trf.xlu0
        %2614 = vxpose.xlu0.b32.start [1/16] %v2455, 128
        %2615 = vxpose.xlu0.b32.cont [2/16] %v2457, 128
        %2616 = vxpose.xlu0.b32.cont [3/16] 0.0, 128
        %2617 = vxpose.xlu0.b32.cont [4/16] 0.0, 128
        %2618 = vxpose.xlu0.b32.cont [5/16] 0.0, 128
        %2619 = vxpose.xlu0.b32.cont [6/16] 0.0, 128
        %2620 = vxpose.xlu0.b32.cont [7/16] 0.0, 128
        %2621 = vxpose.xlu0.b32.cont [8/16] 0.0, 128
        %2622 = vxpose.xlu0.b32.cont [9/16] 0.0, 128
        %2623 = vxpose.xlu0.b32.cont [10/16] 0.0, 128
        %2624 = vxpose.xlu0.b32.cont [11/16] 0.0, 128
        %2625 = vxpose.xlu0.b32.cont [12/16] 0.0, 128
        %2626 = vxpose.xlu0.b32.cont [13/16] 0.0, 128
        %2627 = vxpose.xlu0.b32.cont [14/16] 0.0, 128
        %2628 = vxpose.xlu0.b32.cont [15/16] 0.0, 128
        %2629 = vxpose.xlu0.b32.end [16/16] 0.0, 128
        %v2630 = vpop.trf.xlu0
        %v2631 = vpop.trf.xlu0
        %v2632 = vpop.trf.xlu0
        %v2633 = vpop.trf.xlu0
        %v2634 = vpop.trf.xlu0
        %v2635 = vpop.trf.xlu0
        %v2636 = vpop.trf.xlu0
        %v2637 = vpop.trf.xlu0
        %v2638 = vpop.trf.xlu0
        %v2639 = vpop.trf.xlu0
        %v2640 = vpop.trf.xlu0
        %v2641 = vpop.trf.xlu0
        %v2642 = vpop.trf.xlu0
        %v2643 = vpop.trf.xlu0
        %v2644 = vpop.trf.xlu0
        %v2645 = vpop.trf.xlu0
        %2646 = vxpose.xlu0.b32.start [1/16] %v2459, 128
        %2647 = vxpose.xlu0.b32.cont [2/16] %v2461, 128
        %2648 = vxpose.xlu0.b32.cont [3/16] 0.0, 128
        %2649 = vxpose.xlu0.b32.cont [4/16] 0.0, 128
        %2650 = vxpose.xlu0.b32.cont [5/16] 0.0, 128
        %2651 = vxpose.xlu0.b32.cont [6/16] 0.0, 128
        %2652 = vxpose.xlu0.b32.cont [7/16] 0.0, 128
        %2653 = vxpose.xlu0.b32.cont [8/16] 0.0, 128
        %2654 = vxpose.xlu0.b32.cont [9/16] 0.0, 128
        %2655 = vxpose.xlu0.b32.cont [10/16] 0.0, 128
        %2656 = vxpose.xlu0.b32.cont [11/16] 0.0, 128
        %2657 = vxpose.xlu0.b32.cont [12/16] 0.0, 128
        %2658 = vxpose.xlu0.b32.cont [13/16] 0.0, 128
        %2659 = vxpose.xlu0.b32.cont [14/16] 0.0, 128
        %2660 = vxpose.xlu0.b32.cont [15/16] 0.0, 128
        %2661 = vxpose.xlu0.b32.end [16/16] 0.0, 128
        %v2662 = vpop.trf.xlu0
        %v2663 = vpop.trf.xlu0
        %v2664 = vpop.trf.xlu0
        %v2665 = vpop.trf.xlu0
        %v2666 = vpop.trf.xlu0
        %v2667 = vpop.trf.xlu0
        %v2668 = vpop.trf.xlu0
        %v2669 = vpop.trf.xlu0
        %v2670 = vpop.trf.xlu0
        %v2671 = vpop.trf.xlu0
        %v2672 = vpop.trf.xlu0
        %v2673 = vpop.trf.xlu0
        %v2674 = vpop.trf.xlu0
        %v2675 = vpop.trf.xlu0
        %v2676 = vpop.trf.xlu0
        %v2677 = vpop.trf.xlu0
        %2678 = vxpose.xlu0.b32.start [1/16] %v2463, 128
        %2679 = vxpose.xlu0.b32.cont [2/16] %v2465, 128
        %2680 = vxpose.xlu0.b32.cont [3/16] 0.0, 128
        %2681 = vxpose.xlu0.b32.cont [4/16] 0.0, 128
        %2682 = vxpose.xlu0.b32.cont [5/16] 0.0, 128
        %2683 = vxpose.xlu0.b32.cont [6/16] 0.0, 128
        %2684 = vxpose.xlu0.b32.cont [7/16] 0.0, 128
        %2685 = vxpose.xlu0.b32.cont [8/16] 0.0, 128
        %2686 = vxpose.xlu0.b32.cont [9/16] 0.0, 128
        %2687 = vxpose.xlu0.b32.cont [10/16] 0.0, 128
        %2688 = vxpose.xlu0.b32.cont [11/16] 0.0, 128
        %2689 = vxpose.xlu0.b32.cont [12/16] 0.0, 128
        %2690 = vxpose.xlu0.b32.cont [13/16] 0.0, 128
        %2691 = vxpose.xlu0.b32.cont [14/16] 0.0, 128
        %2692 = vxpose.xlu0.b32.cont [15/16] 0.0, 128
        %2693 = vxpose.xlu0.b32.end [16/16] 0.0, 128
        %v2694 = vpop.trf.xlu0
        %v2695 = vpop.trf.xlu0
        %v2696 = vpop.trf.xlu0
        %v2697 = vpop.trf.xlu0
        %v2698 = vpop.trf.xlu0
        %v2699 = vpop.trf.xlu0
        %v2700 = vpop.trf.xlu0
        %v2701 = vpop.trf.xlu0
        %v2702 = vpop.trf.xlu0
        %v2703 = vpop.trf.xlu0
        %v2704 = vpop.trf.xlu0
        %v2705 = vpop.trf.xlu0
        %v2706 = vpop.trf.xlu0
        %v2707 = vpop.trf.xlu0
        %v2708 = vpop.trf.xlu0
        %v2709 = vpop.trf.xlu0
        %2710 = vxpose.xlu0.b32.start [1/16] %v2467, 128
        %2711 = vxpose.xlu0.b32.cont [2/16] %v2469, 128
        %2712 = vxpose.xlu0.b32.cont [3/16] 0.0, 128
        %2713 = vxpose.xlu0.b32.cont [4/16] 0.0, 128
        %2714 = vxpose.xlu0.b32.cont [5/16] 0.0, 128
        %2715 = vxpose.xlu0.b32.cont [6/16] 0.0, 128
        %2716 = vxpose.xlu0.b32.cont [7/16] 0.0, 128
        %2717 = vxpose.xlu0.b32.cont [8/16] 0.0, 128
        %2718 = vxpose.xlu0.b32.cont [9/16] 0.0, 128
        %2719 = vxpose.xlu0.b32.cont [10/16] 0.0, 128
        %2720 = vxpose.xlu0.b32.cont [11/16] 0.0, 128
        %2721 = vxpose.xlu0.b32.cont [12/16] 0.0, 128
        %2722 = vxpose.xlu0.b32.cont [13/16] 0.0, 128
        %2723 = vxpose.xlu0.b32.cont [14/16] 0.0, 128
        %2724 = vxpose.xlu0.b32.cont [15/16] 0.0, 128
        %2725 = vxpose.xlu0.b32.end [16/16] 0.0, 128
        %v2726 = vpop.trf.xlu0
        %v2727 = vpop.trf.xlu0
        %v2728 = vpop.trf.xlu0
        %v2729 = vpop.trf.xlu0
        %v2730 = vpop.trf.xlu0
        %v2731 = vpop.trf.xlu0
        %v2732 = vpop.trf.xlu0
        %v2733 = vpop.trf.xlu0
        %v2734 = vpop.trf.xlu0
        %v2735 = vpop.trf.xlu0
        %v2736 = vpop.trf.xlu0
        %v2737 = vpop.trf.xlu0
        %v2738 = vpop.trf.xlu0
        %v2739 = vpop.trf.xlu0
        %v2740 = vpop.trf.xlu0
        %v2741 = vpop.trf.xlu0
        %2742 = vrot.lane.b32.xlu0 %v549, 80
        %v2743 = vpop.permute.xlu0 %2742
        %2744 = vrot.lane.b32.xlu0 %v550, 80
        %v2745 = vpop.permute.xlu0 %2744
        %v2749 = vsel %vm829, %v2502, 0
        %v2752 = vsel %vm829, %v2503, 0
        %2754 = vmatprep.subr.mxu0 0.0
        %2755 = vmatpush1.msra.mxu0 %v2743
        %2756 = vmatprep.subr.mxu0 0.0
        %2757 = vmatpush1.msra.mxu0 %v2745
        %2758 = vmatprep.subr.mxu0 0.0
        %2759 = vmatpush1.msra.mxu0 0.0
        %2760 = vmatprep.subr.mxu0 0.0
        %2761 = vmatpush1.msra.mxu0 0.0
        %2762 = vmatprep.subr.mxu0 0.0
        %2763 = vmatpush1.msra.mxu0 0.0
        %2764 = vmatprep.subr.mxu0 0.0
        %2765 = vmatpush1.msra.mxu0 0.0
        %2766 = vmatprep.subr.mxu0 0.0
        %2767 = vmatpush1.msra.mxu0 0.0
        %2768 = vmatprep.subr.mxu0 0.0
        %2769 = vmatpush1.msra.mxu0 0.0
        %2770 = vmatprep.subr.mxu0 0.0
        %2771 = vmatpush1.msra.mxu0 0.0
        %2772 = vmatprep.subr.mxu0 0.0
        %2773 = vmatpush1.msra.mxu0 0.0
        %2774 = vmatprep.subr.mxu0 0.0
        %2775 = vmatpush1.msra.mxu0 0.0
        %2776 = vmatprep.subr.mxu0 0.0
        %2777 = vmatpush1.msra.mxu0 0.0
        %2778 = vmatprep.subr.mxu0 0.0
        %2779 = vmatpush1.msra.mxu0 0.0
        %2780 = vmatprep.subr.mxu0 0.0
        %2781 = vmatpush1.msra.mxu0 0.0
        %2782 = vmatprep.subr.mxu0 0.0
        %2783 = vmatpush1.msra.mxu0 0.0
        %2784 = vmatprep.subr.mxu0 0.0
        %2785 = vmatpush1.msra.mxu0 0.0
        %2786 = vmatprep.subr.mxu0 0.0
        %2787 = vmatpush1.msra.mxu0 0.0
        %2788 = vmatprep.subr.mxu0 0.0
        %2789 = vmatpush1.msra.mxu0 0.0
        %2790 = vmatprep.subr.mxu0 0.0
        %2791 = vmatpush1.msra.mxu0 0.0
        %2792 = vmatprep.subr.mxu0 0.0
        %2793 = vmatpush1.msra.mxu0 0.0
        %2794 = vmatprep.subr.mxu0 0.0
        %2795 = vmatpush1.msra.mxu0 0.0
        %2796 = vmatprep.subr.mxu0 0.0
        %2797 = vmatpush1.msra.mxu0 0.0
        %2798 = vmatprep.subr.mxu0 0.0
        %2799 = vmatpush1.msra.mxu0 0.0
        %2800 = vmatprep.subr.mxu0 0.0
        %2801 = vmatpush1.msra.mxu0 0.0
        %2802 = vmatprep.subr.mxu0 0.0
        %2803 = vmatpush1.msra.mxu0 0.0
        %2804 = vmatprep.subr.mxu0 0.0
        %2805 = vmatpush1.msra.mxu0 0.0
        %2806 = vmatprep.subr.mxu0 0.0
        %2807 = vmatpush1.msra.mxu0 0.0
        %2808 = vmatprep.subr.mxu0 0.0
        %2809 = vmatpush1.msra.mxu0 0.0
        %2810 = vmatprep.subr.mxu0 0.0
        %2811 = vmatpush1.msra.mxu0 0.0
        %2812 = vmatprep.subr.mxu0 0.0
        %2813 = vmatpush1.msra.mxu0 0.0
        %2814 = vmatprep.subr.mxu0 0.0
        %2815 = vmatpush1.msra.mxu0 0.0
        %2816 = vmatprep.subr.mxu0 0.0
        %2817 = vmatpush1.msra.mxu0 0.0
        %2818 = vmatprep.mubr.f32.mxu0 0.0
        %2819 = vmatmul.mubr.f32.gmra.mrb[0].mxu0 %v2749
        %v2820 = vpop.f32.mrb[0].mxu0
        %v2821 = vadd.f32 0.0, %v2820
        %v2822 = vpop.f32.mrb[0].mxu0
        %2823 = vmatprep.mubr.f32.mxu0 0.0
        %2824 = vmatmul.mubr.f32.gmra.mrb[0].mxu0 %v2752
        %v2825 = vpop.f32.mrb[0].mxu0
        %v2826 = vadd.f32 0.0, %v2825
        %v2827 = vpop.f32.mrb[0].mxu0
        %2828 = vdwg.mxu0
        %2829 = vrot.lane.b32.xlu0 %v551, 80
        %v2830 = vpop.permute.xlu0 %2829
        %2831 = vrot.lane.b32.xlu0 %v552, 80
        %v2832 = vpop.permute.xlu0 %2831
        %v2836 = vsel %vm829, %v2534, 0
        %v2839 = vsel %vm829, %v2535, 0
        %2841 = vmatprep.subr.mxu0 0.0
        %2842 = vmatpush1.msra.mxu0 %v2830
        %2843 = vmatprep.subr.mxu0 0.0
        %2844 = vmatpush1.msra.mxu0 %v2832
        %2845 = vmatprep.subr.mxu0 0.0
        %2846 = vmatpush1.msra.mxu0 0.0
        %2847 = vmatprep.subr.mxu0 0.0
        %2848 = vmatpush1.msra.mxu0 0.0
        %2849 = vmatprep.subr.mxu0 0.0
        %2850 = vmatpush1.msra.mxu0 0.0
        %2851 = vmatprep.subr.mxu0 0.0
        %2852 = vmatpush1.msra.mxu0 0.0
        %2853 = vmatprep.subr.mxu0 0.0
        %2854 = vmatpush1.msra.mxu0 0.0
        %2855 = vmatprep.subr.mxu0 0.0
        %2856 = vmatpush1.msra.mxu0 0.0
        %2857 = vmatprep.subr.mxu0 0.0
        %2858 = vmatpush1.msra.mxu0 0.0
        %2859 = vmatprep.subr.mxu0 0.0
        %2860 = vmatpush1.msra.mxu0 0.0
        %2861 = vmatprep.subr.mxu0 0.0
        %2862 = vmatpush1.msra.mxu0 0.0
        %2863 = vmatprep.subr.mxu0 0.0
        %2864 = vmatpush1.msra.mxu0 0.0
        %2865 = vmatprep.subr.mxu0 0.0
        %2866 = vmatpush1.msra.mxu0 0.0
        %2867 = vmatprep.subr.mxu0 0.0
        %2868 = vmatpush1.msra.mxu0 0.0
        %2869 = vmatprep.subr.mxu0 0.0
        %2870 = vmatpush1.msra.mxu0 0.0
        %2871 = vmatprep.subr.mxu0 0.0
        %2872 = vmatpush1.msra.mxu0 0.0
        %2873 = vmatprep.subr.mxu0 0.0
        %2874 = vmatpush1.msra.mxu0 0.0
        %2875 = vmatprep.subr.mxu0 0.0
        %2876 = vmatpush1.msra.mxu0 0.0
        %2877 = vmatprep.subr.mxu0 0.0
        %2878 = vmatpush1.msra.mxu0 0.0
        %2879 = vmatprep.subr.mxu0 0.0
        %2880 = vmatpush1.msra.mxu0 0.0
        %2881 = vmatprep.subr.mxu0 0.0
        %2882 = vmatpush1.msra.mxu0 0.0
        %2883 = vmatprep.subr.mxu0 0.0
        %2884 = vmatpush1.msra.mxu0 0.0
        %2885 = vmatprep.subr.mxu0 0.0
        %2886 = vmatpush1.msra.mxu0 0.0
        %2887 = vmatprep.subr.mxu0 0.0
        %2888 = vmatpush1.msra.mxu0 0.0
        %2889 = vmatprep.subr.mxu0 0.0
        %2890 = vmatpush1.msra.mxu0 0.0
        %2891 = vmatprep.subr.mxu0 0.0
        %2892 = vmatpush1.msra.mxu0 0.0
        %2893 = vmatprep.subr.mxu0 0.0
        %2894 = vmatpush1.msra.mxu0 0.0
        %2895 = vmatprep.subr.mxu0 0.0
        %2896 = vmatpush1.msra.mxu0 0.0
        %2897 = vmatprep.subr.mxu0 0.0
        %2898 = vmatpush1.msra.mxu0 0.0
        %2899 = vmatprep.subr.mxu0 0.0
        %2900 = vmatpush1.msra.mxu0 0.0
        %2901 = vmatprep.subr.mxu0 0.0
        %2902 = vmatpush1.msra.mxu0 0.0
        %2903 = vmatprep.subr.mxu0 0.0
        %2904 = vmatpush1.msra.mxu0 0.0
        %2905 = vmatprep.mubr.f32.mxu0 0.0
        %2906 = vmatmul.mubr.f32.gmra.mrb[0].mxu0 %v2836
        %v2907 = vpop.f32.mrb[0].mxu0
        %v2908 = vadd.f32 0.0, %v2907
        %v2909 = vpop.f32.mrb[0].mxu0
        %2910 = vmatprep.mubr.f32.mxu0 0.0
        %2911 = vmatmul.mubr.f32.gmra.mrb[0].mxu0 %v2839
        %v2912 = vpop.f32.mrb[0].mxu0
        %v2913 = vadd.f32 0.0, %v2912
        %v2914 = vpop.f32.mrb[0].mxu0
        %2915 = vdwg.mxu0
        %2916 = vrot.lane.b32.xlu0 %v553, 80
        %v2917 = vpop.permute.xlu0 %2916
        %2918 = vrot.lane.b32.xlu0 %v554, 80
        %v2919 = vpop.permute.xlu0 %2918
        %v2923 = vsel %vm829, %v2566, 0
        %v2926 = vsel %vm829, %v2567, 0
        %2928 = vmatprep.subr.mxu0 0.0
        %2929 = vmatpush1.msra.mxu0 %v2917
        %2930 = vmatprep.subr.mxu0 0.0
        %2931 = vmatpush1.msra.mxu0 %v2919
        %2932 = vmatprep.subr.mxu0 0.0
        %2933 = vmatpush1.msra.mxu0 0.0
        %2934 = vmatprep.subr.mxu0 0.0
        %2935 = vmatpush1.msra.mxu0 0.0
        %2936 = vmatprep.subr.mxu0 0.0
        %2937 = vmatpush1.msra.mxu0 0.0
        %2938 = vmatprep.subr.mxu0 0.0
        %2939 = vmatpush1.msra.mxu0 0.0
        %2940 = vmatprep.subr.mxu0 0.0
        %2941 = vmatpush1.msra.mxu0 0.0
        %2942 = vmatprep.subr.mxu0 0.0
        %2943 = vmatpush1.msra.mxu0 0.0
        %2944 = vmatprep.subr.mxu0 0.0
        %2945 = vmatpush1.msra.mxu0 0.0
        %2946 = vmatprep.subr.mxu0 0.0
        %2947 = vmatpush1.msra.mxu0 0.0
        %2948 = vmatprep.subr.mxu0 0.0
        %2949 = vmatpush1.msra.mxu0 0.0
        %2950 = vmatprep.subr.mxu0 0.0
        %2951 = vmatpush1.msra.mxu0 0.0
        %2952 = vmatprep.subr.mxu0 0.0
        %2953 = vmatpush1.msra.mxu0 0.0
        %2954 = vmatprep.subr.mxu0 0.0
        %2955 = vmatpush1.msra.mxu0 0.0
        %2956 = vmatprep.subr.mxu0 0.0
        %2957 = vmatpush1.msra.mxu0 0.0
        %2958 = vmatprep.subr.mxu0 0.0
        %2959 = vmatpush1.msra.mxu0 0.0
        %2960 = vmatprep.subr.mxu0 0.0
        %2961 = vmatpush1.msra.mxu0 0.0
        %2962 = vmatprep.subr.mxu0 0.0
        %2963 = vmatpush1.msra.mxu0 0.0
        %2964 = vmatprep.subr.mxu0 0.0
        %2965 = vmatpush1.msra.mxu0 0.0
        %2966 = vmatprep.subr.mxu0 0.0
        %2967 = vmatpush1.msra.mxu0 0.0
        %2968 = vmatprep.subr.mxu0 0.0
        %2969 = vmatpush1.msra.mxu0 0.0
        %2970 = vmatprep.subr.mxu0 0.0
        %2971 = vmatpush1.msra.mxu0 0.0
        %2972 = vmatprep.subr.mxu0 0.0
        %2973 = vmatpush1.msra.mxu0 0.0
        %2974 = vmatprep.subr.mxu0 0.0
        %2975 = vmatpush1.msra.mxu0 0.0
        %2976 = vmatprep.subr.mxu0 0.0
        %2977 = vmatpush1.msra.mxu0 0.0
        %2978 = vmatprep.subr.mxu0 0.0
        %2979 = vmatpush1.msra.mxu0 0.0
        %2980 = vmatprep.subr.mxu0 0.0
        %2981 = vmatpush1.msra.mxu0 0.0
        %2982 = vmatprep.subr.mxu0 0.0
        %2983 = vmatpush1.msra.mxu0 0.0
        %2984 = vmatprep.subr.mxu0 0.0
        %2985 = vmatpush1.msra.mxu0 0.0
        %2986 = vmatprep.subr.mxu0 0.0
        %2987 = vmatpush1.msra.mxu0 0.0
        %2988 = vmatprep.subr.mxu0 0.0
        %2989 = vmatpush1.msra.mxu0 0.0
        %2990 = vmatprep.subr.mxu0 0.0
        %2991 = vmatpush1.msra.mxu0 0.0
        %2992 = vmatprep.mubr.f32.mxu0 0.0
        %2993 = vmatmul.mubr.f32.gmra.mrb[0].mxu0 %v2923
        %v2994 = vpop.f32.mrb[0].mxu0
        %v2995 = vadd.f32 0.0, %v2994
        %v2996 = vpop.f32.mrb[0].mxu0
        %2997 = vmatprep.mubr.f32.mxu0 0.0
        %2998 = vmatmul.mubr.f32.gmra.mrb[0].mxu0 %v2926
        %v2999 = vpop.f32.mrb[0].mxu0
        %v3000 = vadd.f32 0.0, %v2999
        %v3001 = vpop.f32.mrb[0].mxu0
        %3002 = vdwg.mxu0
        %3003 = vrot.lane.b32.xlu0 %v555, 80
        %v3004 = vpop.permute.xlu0 %3003
        %3005 = vrot.lane.b32.xlu0 %v556, 80
        %v3006 = vpop.permute.xlu0 %3005
        %v3010 = vsel %vm829, %v2598, 0
        %v3013 = vsel %vm829, %v2599, 0
        %3015 = vmatprep.subr.mxu0 0.0
        %3016 = vmatpush1.msra.mxu0 %v3004
        %3017 = vmatprep.subr.mxu0 0.0
        %3018 = vmatpush1.msra.mxu0 %v3006
        %3019 = vmatprep.subr.mxu0 0.0
        %3020 = vmatpush1.msra.mxu0 0.0
        %3021 = vmatprep.subr.mxu0 0.0
        %3022 = vmatpush1.msra.mxu0 0.0
        %3023 = vmatprep.subr.mxu0 0.0
        %3024 = vmatpush1.msra.mxu0 0.0
        %3025 = vmatprep.subr.mxu0 0.0
        %3026 = vmatpush1.msra.mxu0 0.0
        %3027 = vmatprep.subr.mxu0 0.0
        %3028 = vmatpush1.msra.mxu0 0.0
        %3029 = vmatprep.subr.mxu0 0.0
        %3030 = vmatpush1.msra.mxu0 0.0
        %3031 = vmatprep.subr.mxu0 0.0
        %3032 = vmatpush1.msra.mxu0 0.0
        %3033 = vmatprep.subr.mxu0 0.0
        %3034 = vmatpush1.msra.mxu0 0.0
        %3035 = vmatprep.subr.mxu0 0.0
        %3036 = vmatpush1.msra.mxu0 0.0
        %3037 = vmatprep.subr.mxu0 0.0
        %3038 = vmatpush1.msra.mxu0 0.0
        %3039 = vmatprep.subr.mxu0 0.0
        %3040 = vmatpush1.msra.mxu0 0.0
        %3041 = vmatprep.subr.mxu0 0.0
        %3042 = vmatpush1.msra.mxu0 0.0
        %3043 = vmatprep.subr.mxu0 0.0
        %3044 = vmatpush1.msra.mxu0 0.0
        %3045 = vmatprep.subr.mxu0 0.0
        %3046 = vmatpush1.msra.mxu0 0.0
        %3047 = vmatprep.subr.mxu0 0.0
        %3048 = vmatpush1.msra.mxu0 0.0
        %3049 = vmatprep.subr.mxu0 0.0
        %3050 = vmatpush1.msra.mxu0 0.0
        %3051 = vmatprep.subr.mxu0 0.0
        %3052 = vmatpush1.msra.mxu0 0.0
        %3053 = vmatprep.subr.mxu0 0.0
        %3054 = vmatpush1.msra.mxu0 0.0
        %3055 = vmatprep.subr.mxu0 0.0
        %3056 = vmatpush1.msra.mxu0 0.0
        %3057 = vmatprep.subr.mxu0 0.0
        %3058 = vmatpush1.msra.mxu0 0.0
        %3059 = vmatprep.subr.mxu0 0.0
        %3060 = vmatpush1.msra.mxu0 0.0
        %3061 = vmatprep.subr.mxu0 0.0
        %3062 = vmatpush1.msra.mxu0 0.0
        %3063 = vmatprep.subr.mxu0 0.0
        %3064 = vmatpush1.msra.mxu0 0.0
        %3065 = vmatprep.subr.mxu0 0.0
        %3066 = vmatpush1.msra.mxu0 0.0
        %3067 = vmatprep.subr.mxu0 0.0
        %3068 = vmatpush1.msra.mxu0 0.0
        %3069 = vmatprep.subr.mxu0 0.0
        %3070 = vmatpush1.msra.mxu0 0.0
        %3071 = vmatprep.subr.mxu0 0.0
        %3072 = vmatpush1.msra.mxu0 0.0
        %3073 = vmatprep.subr.mxu0 0.0
        %3074 = vmatpush1.msra.mxu0 0.0
        %3075 = vmatprep.subr.mxu0 0.0
        %3076 = vmatpush1.msra.mxu0 0.0
        %3077 = vmatprep.subr.mxu0 0.0
        %3078 = vmatpush1.msra.mxu0 0.0
        %3079 = vmatprep.mubr.f32.mxu0 0.0
        %3080 = vmatmul.mubr.f32.gmra.mrb[0].mxu0 %v3010
        %v3081 = vpop.f32.mrb[0].mxu0
        %v3082 = vadd.f32 0.0, %v3081
        %v3083 = vpop.f32.mrb[0].mxu0
        %3084 = vmatprep.mubr.f32.mxu0 0.0
        %3085 = vmatmul.mubr.f32.gmra.mrb[0].mxu0 %v3013
        %v3086 = vpop.f32.mrb[0].mxu0
        %v3087 = vadd.f32 0.0, %v3086
        %v3088 = vpop.f32.mrb[0].mxu0
        %3089 = vdwg.mxu0
        %3090 = vrot.lane.b32.xlu0 %v557, 80
        %v3091 = vpop.permute.xlu0 %3090
        %3092 = vrot.lane.b32.xlu0 %v558, 80
        %v3093 = vpop.permute.xlu0 %3092
        %v3097 = vsel %vm829, %v2630, 0
        %v3100 = vsel %vm829, %v2631, 0
        %3102 = vmatprep.subr.mxu0 0.0
        %3103 = vmatpush1.msra.mxu0 %v3091
        %3104 = vmatprep.subr.mxu0 0.0
        %3105 = vmatpush1.msra.mxu0 %v3093
        %3106 = vmatprep.subr.mxu0 0.0
        %3107 = vmatpush1.msra.mxu0 0.0
        %3108 = vmatprep.subr.mxu0 0.0
        %3109 = vmatpush1.msra.mxu0 0.0
        %3110 = vmatprep.subr.mxu0 0.0
        %3111 = vmatpush1.msra.mxu0 0.0
        %3112 = vmatprep.subr.mxu0 0.0
        %3113 = vmatpush1.msra.mxu0 0.0
        %3114 = vmatprep.subr.mxu0 0.0
        %3115 = vmatpush1.msra.mxu0 0.0
        %3116 = vmatprep.subr.mxu0 0.0
        %3117 = vmatpush1.msra.mxu0 0.0
        %3118 = vmatprep.subr.mxu0 0.0
        %3119 = vmatpush1.msra.mxu0 0.0
        %3120 = vmatprep.subr.mxu0 0.0
        %3121 = vmatpush1.msra.mxu0 0.0
        %3122 = vmatprep.subr.mxu0 0.0
        %3123 = vmatpush1.msra.mxu0 0.0
        %3124 = vmatprep.subr.mxu0 0.0
        %3125 = vmatpush1.msra.mxu0 0.0
        %3126 = vmatprep.subr.mxu0 0.0
        %3127 = vmatpush1.msra.mxu0 0.0
        %3128 = vmatprep.subr.mxu0 0.0
        %3129 = vmatpush1.msra.mxu0 0.0
        %3130 = vmatprep.subr.mxu0 0.0
        %3131 = vmatpush1.msra.mxu0 0.0
        %3132 = vmatprep.subr.mxu0 0.0
        %3133 = vmatpush1.msra.mxu0 0.0
        %3134 = vmatprep.subr.mxu0 0.0
        %3135 = vmatpush1.msra.mxu0 0.0
        %3136 = vmatprep.subr.mxu0 0.0
        %3137 = vmatpush1.msra.mxu0 0.0
        %3138 = vmatprep.subr.mxu0 0.0
        %3139 = vmatpush1.msra.mxu0 0.0
        %3140 = vmatprep.subr.mxu0 0.0
        %3141 = vmatpush1.msra.mxu0 0.0
        %3142 = vmatprep.subr.mxu0 0.0
        %3143 = vmatpush1.msra.mxu0 0.0
        %3144 = vmatprep.subr.mxu0 0.0
        %3145 = vmatpush1.msra.mxu0 0.0
        %3146 = vmatprep.subr.mxu0 0.0
        %3147 = vmatpush1.msra.mxu0 0.0
        %3148 = vmatprep.subr.mxu0 0.0
        %3149 = vmatpush1.msra.mxu0 0.0
        %3150 = vmatprep.subr.mxu0 0.0
        %3151 = vmatpush1.msra.mxu0 0.0
        %3152 = vmatprep.subr.mxu0 0.0
        %3153 = vmatpush1.msra.mxu0 0.0
        %3154 = vmatprep.subr.mxu0 0.0
        %3155 = vmatpush1.msra.mxu0 0.0
        %3156 = vmatprep.subr.mxu0 0.0
        %3157 = vmatpush1.msra.mxu0 0.0
        %3158 = vmatprep.subr.mxu0 0.0
        %3159 = vmatpush1.msra.mxu0 0.0
        %3160 = vmatprep.subr.mxu0 0.0
        %3161 = vmatpush1.msra.mxu0 0.0
        %3162 = vmatprep.subr.mxu0 0.0
        %3163 = vmatpush1.msra.mxu0 0.0
        %3164 = vmatprep.subr.mxu0 0.0
        %3165 = vmatpush1.msra.mxu0 0.0
        %3166 = vmatprep.mubr.f32.mxu0 0.0
        %3167 = vmatmul.mubr.f32.gmra.mrb[0].mxu0 %v3097
        %v3168 = vpop.f32.mrb[0].mxu0
        %v3169 = vadd.f32 0.0, %v3168
        %v3170 = vpop.f32.mrb[0].mxu0
        %3171 = vmatprep.mubr.f32.mxu0 0.0
        %3172 = vmatmul.mubr.f32.gmra.mrb[0].mxu0 %v3100
        %v3173 = vpop.f32.mrb[0].mxu0
        %v3174 = vadd.f32 0.0, %v3173
        %v3175 = vpop.f32.mrb[0].mxu0
        %3176 = vdwg.mxu0
        %3177 = vrot.lane.b32.xlu0 %v559, 80
        %v3178 = vpop.permute.xlu0 %3177
        %3179 = vrot.lane.b32.xlu0 %v560, 80
        %v3180 = vpop.permute.xlu0 %3179
        %v3184 = vsel %vm829, %v2662, 0
        %v3187 = vsel %vm829, %v2663, 0
        %3189 = vmatprep.subr.mxu0 0.0
        %3190 = vmatpush1.msra.mxu0 %v3178
        %3191 = vmatprep.subr.mxu0 0.0
        %3192 = vmatpush1.msra.mxu0 %v3180
        %3193 = vmatprep.subr.mxu0 0.0
        %3194 = vmatpush1.msra.mxu0 0.0
        %3195 = vmatprep.subr.mxu0 0.0
        %3196 = vmatpush1.msra.mxu0 0.0
        %3197 = vmatprep.subr.mxu0 0.0
        %3198 = vmatpush1.msra.mxu0 0.0
        %3199 = vmatprep.subr.mxu0 0.0
        %3200 = vmatpush1.msra.mxu0 0.0
        %3201 = vmatprep.subr.mxu0 0.0
        %3202 = vmatpush1.msra.mxu0 0.0
        %3203 = vmatprep.subr.mxu0 0.0
        %3204 = vmatpush1.msra.mxu0 0.0
        %3205 = vmatprep.subr.mxu0 0.0
        %3206 = vmatpush1.msra.mxu0 0.0
        %3207 = vmatprep.subr.mxu0 0.0
        %3208 = vmatpush1.msra.mxu0 0.0
        %3209 = vmatprep.subr.mxu0 0.0
        %3210 = vmatpush1.msra.mxu0 0.0
        %3211 = vmatprep.subr.mxu0 0.0
        %3212 = vmatpush1.msra.mxu0 0.0
        %3213 = vmatprep.subr.mxu0 0.0
        %3214 = vmatpush1.msra.mxu0 0.0
        %3215 = vmatprep.subr.mxu0 0.0
        %3216 = vmatpush1.msra.mxu0 0.0
        %3217 = vmatprep.subr.mxu0 0.0
        %3218 = vmatpush1.msra.mxu0 0.0
        %3219 = vmatprep.subr.mxu0 0.0
        %3220 = vmatpush1.msra.mxu0 0.0
        %3221 = vmatprep.subr.mxu0 0.0
        %3222 = vmatpush1.msra.mxu0 0.0
        %3223 = vmatprep.subr.mxu0 0.0
        %3224 = vmatpush1.msra.mxu0 0.0
        %3225 = vmatprep.subr.mxu0 0.0
        %3226 = vmatpush1.msra.mxu0 0.0
        %3227 = vmatprep.subr.mxu0 0.0
        %3228 = vmatpush1.msra.mxu0 0.0
        %3229 = vmatprep.subr.mxu0 0.0
        %3230 = vmatpush1.msra.mxu0 0.0
        %3231 = vmatprep.subr.mxu0 0.0
        %3232 = vmatpush1.msra.mxu0 0.0
        %3233 = vmatprep.subr.mxu0 0.0
        %3234 = vmatpush1.msra.mxu0 0.0
        %3235 = vmatprep.subr.mxu0 0.0
        %3236 = vmatpush1.msra.mxu0 0.0
        %3237 = vmatprep.subr.mxu0 0.0
        %3238 = vmatpush1.msra.mxu0 0.0
        %3239 = vmatprep.subr.mxu0 0.0
        %3240 = vmatpush1.msra.mxu0 0.0
        %3241 = vmatprep.subr.mxu0 0.0
        %3242 = vmatpush1.msra.mxu0 0.0
        %3243 = vmatprep.subr.mxu0 0.0
        %3244 = vmatpush1.msra.mxu0 0.0
        %3245 = vmatprep.subr.mxu0 0.0
        %3246 = vmatpush1.msra.mxu0 0.0
        %3247 = vmatprep.subr.mxu0 0.0
        %3248 = vmatpush1.msra.mxu0 0.0
        %3249 = vmatprep.subr.mxu0 0.0
        %3250 = vmatpush1.msra.mxu0 0.0
        %3251 = vmatprep.subr.mxu0 0.0
        %3252 = vmatpush1.msra.mxu0 0.0
        %3253 = vmatprep.mubr.f32.mxu0 0.0
        %3254 = vmatmul.mubr.f32.gmra.mrb[0].mxu0 %v3184
        %v3255 = vpop.f32.mrb[0].mxu0
        %v3256 = vadd.f32 0.0, %v3255
        %v3257 = vpop.f32.mrb[0].mxu0
        %3258 = vmatprep.mubr.f32.mxu0 0.0
        %3259 = vmatmul.mubr.f32.gmra.mrb[0].mxu0 %v3187
        %v3260 = vpop.f32.mrb[0].mxu0
        %v3261 = vadd.f32 0.0, %v3260
        %v3262 = vpop.f32.mrb[0].mxu0
        %3263 = vdwg.mxu0
        %3264 = vrot.lane.b32.xlu0 %v561, 80
        %v3265 = vpop.permute.xlu0 %3264
        %3266 = vrot.lane.b32.xlu0 %v562, 80
        %v3267 = vpop.permute.xlu0 %3266
        %v3271 = vsel %vm829, %v2694, 0
        %v3274 = vsel %vm829, %v2695, 0
        %3276 = vmatprep.subr.mxu0 0.0
        %3277 = vmatpush1.msra.mxu0 %v3265
        %3278 = vmatprep.subr.mxu0 0.0
        %3279 = vmatpush1.msra.mxu0 %v3267
        %3280 = vmatprep.subr.mxu0 0.0
        %3281 = vmatpush1.msra.mxu0 0.0
        %3282 = vmatprep.subr.mxu0 0.0
        %3283 = vmatpush1.msra.mxu0 0.0
        %3284 = vmatprep.subr.mxu0 0.0
        %3285 = vmatpush1.msra.mxu0 0.0
        %3286 = vmatprep.subr.mxu0 0.0
        %3287 = vmatpush1.msra.mxu0 0.0
        %3288 = vmatprep.subr.mxu0 0.0
        %3289 = vmatpush1.msra.mxu0 0.0
        %3290 = vmatprep.subr.mxu0 0.0
        %3291 = vmatpush1.msra.mxu0 0.0
        %3292 = vmatprep.subr.mxu0 0.0
        %3293 = vmatpush1.msra.mxu0 0.0
        %3294 = vmatprep.subr.mxu0 0.0
        %3295 = vmatpush1.msra.mxu0 0.0
        %3296 = vmatprep.subr.mxu0 0.0
        %3297 = vmatpush1.msra.mxu0 0.0
        %3298 = vmatprep.subr.mxu0 0.0
        %3299 = vmatpush1.msra.mxu0 0.0
        %3300 = vmatprep.subr.mxu0 0.0
        %3301 = vmatpush1.msra.mxu0 0.0
        %3302 = vmatprep.subr.mxu0 0.0
        %3303 = vmatpush1.msra.mxu0 0.0
        %3304 = vmatprep.subr.mxu0 0.0
        %3305 = vmatpush1.msra.mxu0 0.0
        %3306 = vmatprep.subr.mxu0 0.0
        %3307 = vmatpush1.msra.mxu0 0.0
        %3308 = vmatprep.subr.mxu0 0.0
        %3309 = vmatpush1.msra.mxu0 0.0
        %3310 = vmatprep.subr.mxu0 0.0
        %3311 = vmatpush1.msra.mxu0 0.0
        %3312 = vmatprep.subr.mxu0 0.0
        %3313 = vmatpush1.msra.mxu0 0.0
        %3314 = vmatprep.subr.mxu0 0.0
        %3315 = vmatpush1.msra.mxu0 0.0
        %3316 = vmatprep.subr.mxu0 0.0
        %3317 = vmatpush1.msra.mxu0 0.0
        %3318 = vmatprep.subr.mxu0 0.0
        %3319 = vmatpush1.msra.mxu0 0.0
        %3320 = vmatprep.subr.mxu0 0.0
        %3321 = vmatpush1.msra.mxu0 0.0
        %3322 = vmatprep.subr.mxu0 0.0
        %3323 = vmatpush1.msra.mxu0 0.0
        %3324 = vmatprep.subr.mxu0 0.0
        %3325 = vmatpush1.msra.mxu0 0.0
        %3326 = vmatprep.subr.mxu0 0.0
        %3327 = vmatpush1.msra.mxu0 0.0
        %3328 = vmatprep.subr.mxu0 0.0
        %3329 = vmatpush1.msra.mxu0 0.0
        %3330 = vmatprep.subr.mxu0 0.0
        %3331 = vmatpush1.msra.mxu0 0.0
        %3332 = vmatprep.subr.mxu0 0.0
        %3333 = vmatpush1.msra.mxu0 0.0
        %3334 = vmatprep.subr.mxu0 0.0
        %3335 = vmatpush1.msra.mxu0 0.0
        %3336 = vmatprep.subr.mxu0 0.0
        %3337 = vmatpush1.msra.mxu0 0.0
        %3338 = vmatprep.subr.mxu0 0.0
        %3339 = vmatpush1.msra.mxu0 0.0
        %3340 = vmatprep.mubr.f32.mxu0 0.0
        %3341 = vmatmul.mubr.f32.gmra.mrb[0].mxu0 %v3271
        %v3342 = vpop.f32.mrb[0].mxu0
        %v3343 = vadd.f32 0.0, %v3342
        %v3344 = vpop.f32.mrb[0].mxu0
        %3345 = vmatprep.mubr.f32.mxu0 0.0
        %3346 = vmatmul.mubr.f32.gmra.mrb[0].mxu0 %v3274
        %v3347 = vpop.f32.mrb[0].mxu0
        %v3348 = vadd.f32 0.0, %v3347
        %v3349 = vpop.f32.mrb[0].mxu0
        %3350 = vdwg.mxu0
        %3351 = vrot.lane.b32.xlu0 %v563, 80
        %v3352 = vpop.permute.xlu0 %3351
        %3353 = vrot.lane.b32.xlu0 %v564, 80
        %v3354 = vpop.permute.xlu0 %3353
        %v3358 = vsel %vm829, %v2726, 0
        %v3361 = vsel %vm829, %v2727, 0
        %3363 = vmatprep.subr.mxu0 0.0
        %3364 = vmatpush1.msra.mxu0 %v3352
        %3365 = vmatprep.subr.mxu0 0.0
        %3366 = vmatpush1.msra.mxu0 %v3354
        %3367 = vmatprep.subr.mxu0 0.0
        %3368 = vmatpush1.msra.mxu0 0.0
        %3369 = vmatprep.subr.mxu0 0.0
        %3370 = vmatpush1.msra.mxu0 0.0
        %3371 = vmatprep.subr.mxu0 0.0
        %3372 = vmatpush1.msra.mxu0 0.0
        %3373 = vmatprep.subr.mxu0 0.0
        %3374 = vmatpush1.msra.mxu0 0.0
        %3375 = vmatprep.subr.mxu0 0.0
        %3376 = vmatpush1.msra.mxu0 0.0
        %3377 = vmatprep.subr.mxu0 0.0
        %3378 = vmatpush1.msra.mxu0 0.0
        %3379 = vmatprep.subr.mxu0 0.0
        %3380 = vmatpush1.msra.mxu0 0.0
        %3381 = vmatprep.subr.mxu0 0.0
        %3382 = vmatpush1.msra.mxu0 0.0
        %3383 = vmatprep.subr.mxu0 0.0
        %3384 = vmatpush1.msra.mxu0 0.0
        %3385 = vmatprep.subr.mxu0 0.0
        %3386 = vmatpush1.msra.mxu0 0.0
        %3387 = vmatprep.subr.mxu0 0.0
        %3388 = vmatpush1.msra.mxu0 0.0
        %3389 = vmatprep.subr.mxu0 0.0
        %3390 = vmatpush1.msra.mxu0 0.0
        %3391 = vmatprep.subr.mxu0 0.0
        %3392 = vmatpush1.msra.mxu0 0.0
        %3393 = vmatprep.subr.mxu0 0.0
        %3394 = vmatpush1.msra.mxu0 0.0
        %3395 = vmatprep.subr.mxu0 0.0
        %3396 = vmatpush1.msra.mxu0 0.0
        %3397 = vmatprep.subr.mxu0 0.0
        %3398 = vmatpush1.msra.mxu0 0.0
        %3399 = vmatprep.subr.mxu0 0.0
        %3400 = vmatpush1.msra.mxu0 0.0
        %3401 = vmatprep.subr.mxu0 0.0
        %3402 = vmatpush1.msra.mxu0 0.0
        %3403 = vmatprep.subr.mxu0 0.0
        %3404 = vmatpush1.msra.mxu0 0.0
        %3405 = vmatprep.subr.mxu0 0.0
        %3406 = vmatpush1.msra.mxu0 0.0
        %3407 = vmatprep.subr.mxu0 0.0
        %3408 = vmatpush1.msra.mxu0 0.0
        %3409 = vmatprep.subr.mxu0 0.0
        %3410 = vmatpush1.msra.mxu0 0.0
        %3411 = vmatprep.subr.mxu0 0.0
        %3412 = vmatpush1.msra.mxu0 0.0
        %3413 = vmatprep.subr.mxu0 0.0
        %3414 = vmatpush1.msra.mxu0 0.0
        %3415 = vmatprep.subr.mxu0 0.0
        %3416 = vmatpush1.msra.mxu0 0.0
        %3417 = vmatprep.subr.mxu0 0.0
        %3418 = vmatpush1.msra.mxu0 0.0
        %3419 = vmatprep.subr.mxu0 0.0
        %3420 = vmatpush1.msra.mxu0 0.0
        %3421 = vmatprep.subr.mxu0 0.0
        %3422 = vmatpush1.msra.mxu0 0.0
        %3423 = vmatprep.subr.mxu0 0.0
        %3424 = vmatpush1.msra.mxu0 0.0
        %3425 = vmatprep.subr.mxu0 0.0
        %3426 = vmatpush1.msra.mxu0 0.0
        %3427 = vmatprep.mubr.f32.mxu0 0.0
        %3428 = vmatmul.mubr.f32.gmra.mrb[0].mxu0 %v3358
        %v3429 = vpop.f32.mrb[0].mxu0
        %v3430 = vadd.f32 0.0, %v3429
        %v3431 = vpop.f32.mrb[0].mxu0
        %3432 = vmatprep.mubr.f32.mxu0 0.0
        %3433 = vmatmul.mubr.f32.gmra.mrb[0].mxu0 %v3361
        %v3434 = vpop.f32.mrb[0].mxu0
        %v3435 = vadd.f32 0.0, %v3434
        %v3436 = vpop.f32.mrb[0].mxu0
        %3437 = vdwg.mxu0
        %v3438 = vmul.f32 %v2821, 0.088388346
        %v3439 = vmul.f32 %v2826, 0.088388346
        %v3440 = vmul.f32 %v2908, 0.088388346
        %v3441 = vmul.f32 %v2913, 0.088388346
        %v3442 = vmul.f32 %v2995, 0.088388346
        %v3443 = vmul.f32 %v3000, 0.088388346
        %v3444 = vmul.f32 %v3082, 0.088388346
        %v3445 = vmul.f32 %v3087, 0.088388346
        %v3446 = vmul.f32 %v3169, 0.088388346
        %v3447 = vmul.f32 %v3174, 0.088388346
        %v3448 = vmul.f32 %v3256, 0.088388346
        %v3449 = vmul.f32 %v3261, 0.088388346
        %v3450 = vmul.f32 %v3343, 0.088388346
        %v3451 = vmul.f32 %v3348, 0.088388346
        %v3452 = vmul.f32 %v3430, 0.088388346
        %v3453 = vmul.f32 %v3435, 0.088388346
        %v3454 = vsel %vm829, %v3438, -inf
        %3455 = vmax.xlane.f32.xlu0 %v3454
        %v3456 = vpop.xlane.xlu0 %3455
        %v3457 = vsel %vm829, %v3439, -inf
        %3458 = vmax.xlane.f32.xlu0 %v3457
        %v3459 = vpop.xlane.xlu0 %3458
        %v3460 = vsel %vm829, %v3440, -inf
        %3461 = vmax.xlane.f32.xlu0 %v3460
        %v3462 = vpop.xlane.xlu0 %3461
        %v3463 = vsel %vm829, %v3441, -inf
        %3464 = vmax.xlane.f32.xlu0 %v3463
        %v3465 = vpop.xlane.xlu0 %3464
        %v3466 = vsel %vm829, %v3442, -inf
        %3467 = vmax.xlane.f32.xlu0 %v3466
        %v3468 = vpop.xlane.xlu0 %3467
        %v3469 = vsel %vm829, %v3443, -inf
        %3470 = vmax.xlane.f32.xlu0 %v3469
        %v3471 = vpop.xlane.xlu0 %3470
        %v3472 = vsel %vm829, %v3444, -inf
        %3473 = vmax.xlane.f32.xlu0 %v3472
        %v3474 = vpop.xlane.xlu0 %3473
        %v3475 = vsel %vm829, %v3445, -inf
        %3476 = vmax.xlane.f32.xlu0 %v3475
        %v3477 = vpop.xlane.xlu0 %3476
        %v3478 = vsel %vm829, %v3446, -inf
        %3479 = vmax.xlane.f32.xlu0 %v3478
        %v3480 = vpop.xlane.xlu0 %3479
        %v3481 = vsel %vm829, %v3447, -inf
        %3482 = vmax.xlane.f32.xlu0 %v3481
        %v3483 = vpop.xlane.xlu0 %3482
        %v3484 = vsel %vm829, %v3448, -inf
        %3485 = vmax.xlane.f32.xlu0 %v3484
        %v3486 = vpop.xlane.xlu0 %3485
        %v3487 = vsel %vm829, %v3449, -inf
        %3488 = vmax.xlane.f32.xlu0 %v3487
        %v3489 = vpop.xlane.xlu0 %3488
        %v3490 = vsel %vm829, %v3450, -inf
        %3491 = vmax.xlane.f32.xlu0 %v3490
        %v3492 = vpop.xlane.xlu0 %3491
        %v3493 = vsel %vm829, %v3451, -inf
        %3494 = vmax.xlane.f32.xlu0 %v3493
        %v3495 = vpop.xlane.xlu0 %3494
        %v3496 = vsel %vm829, %v3452, -inf
        %3497 = vmax.xlane.f32.xlu0 %v3496
        %v3498 = vpop.xlane.xlu0 %3497
        %v3499 = vsel %vm829, %v3453, -inf
        %3500 = vmax.xlane.f32.xlu0 %v3499
        %v3501 = vpop.xlane.xlu0 %3500
        %v3502 = vsub.f32 %v3438, %v3456
        %v3503 = vsub.f32 %v3439, %v3459
        %v3504 = vsub.f32 %v3440, %v3462
        %v3505 = vsub.f32 %v3441, %v3465
        %v3506 = vsub.f32 %v3442, %v3468
        %v3507 = vsub.f32 %v3443, %v3471
        %v3508 = vsub.f32 %v3444, %v3474
        %v3509 = vsub.f32 %v3445, %v3477
        %v3510 = vsub.f32 %v3446, %v3480
        %v3511 = vsub.f32 %v3447, %v3483
        %v3512 = vsub.f32 %v3448, %v3486
        %v3513 = vsub.f32 %v3449, %v3489
        %v3514 = vsub.f32 %v3450, %v3492
        %v3515 = vsub.f32 %v3451, %v3495
        %v3516 = vsub.f32 %v3452, %v3498
        %v3517 = vsub.f32 %v3453, %v3501
        %v3518 = vmul.f32 %v3502, 1.442695
        %v3519 = vpow.pop %v3518
        %v3520 = vmul.f32 %v3503, 1.442695
        %v3521 = vpow.pop %v3520
        %v3522 = vmul.f32 %v3504, 1.442695
        %v3523 = vpow.pop %v3522
        %v3524 = vmul.f32 %v3505, 1.442695
        %v3525 = vpow.pop %v3524
        %v3526 = vmul.f32 %v3506, 1.442695
        %v3527 = vpow.pop %v3526
        %v3528 = vmul.f32 %v3507, 1.442695
        %v3529 = vpow.pop %v3528
        %v3530 = vmul.f32 %v3508, 1.442695
        %v3531 = vpow.pop %v3530
        %v3532 = vmul.f32 %v3509, 1.442695
        %v3533 = vpow.pop %v3532
        %v3534 = vmul.f32 %v3510, 1.442695
        %v3535 = vpow.pop %v3534
        %v3536 = vmul.f32 %v3511, 1.442695
        %v3537 = vpow.pop %v3536
        %v3538 = vmul.f32 %v3512, 1.442695
        %v3539 = vpow.pop %v3538
        %v3540 = vmul.f32 %v3513, 1.442695
        %v3541 = vpow.pop %v3540
        %v3542 = vmul.f32 %v3514, 1.442695
        %v3543 = vpow.pop %v3542
        %v3544 = vmul.f32 %v3515, 1.442695
        %v3545 = vpow.pop %v3544
        %v3546 = vmul.f32 %v3516, 1.442695
        %v3547 = vpow.pop %v3546
        %v3548 = vmul.f32 %v3517, 1.442695
        %v3549 = vpow.pop %v3548
        %v3550 = vsel %vm829, %v3519, 0.0
        %3551 = vadd.xlane.f32.xlu0 %v3550
        %v3552 = vpop.xlane.xlu0 %3551
        %v3553 = vsel %vm829, %v3521, 0.0
        %3554 = vadd.xlane.f32.xlu0 %v3553
        %v3555 = vpop.xlane.xlu0 %3554
        %v3556 = vsel %vm829, %v3523, 0.0
        %3557 = vadd.xlane.f32.xlu0 %v3556
        %v3558 = vpop.xlane.xlu0 %3557
        %v3559 = vsel %vm829, %v3525, 0.0
        %3560 = vadd.xlane.f32.xlu0 %v3559
        %v3561 = vpop.xlane.xlu0 %3560
        %v3562 = vsel %vm829, %v3527, 0.0
        %3563 = vadd.xlane.f32.xlu0 %v3562
        %v3564 = vpop.xlane.xlu0 %3563
        %v3565 = vsel %vm829, %v3529, 0.0
        %3566 = vadd.xlane.f32.xlu0 %v3565
        %v3567 = vpop.xlane.xlu0 %3566
        %v3568 = vsel %vm829, %v3531, 0.0
        %3569 = vadd.xlane.f32.xlu0 %v3568
        %v3570 = vpop.xlane.xlu0 %3569
        %v3571 = vsel %vm829, %v3533, 0.0
        %3572 = vadd.xlane.f32.xlu0 %v3571
        %v3573 = vpop.xlane.xlu0 %3572
        %v3574 = vsel %vm829, %v3535, 0.0
        %3575 = vadd.xlane.f32.xlu0 %v3574
        %v3576 = vpop.xlane.xlu0 %3575
        %v3577 = vsel %vm829, %v3537, 0.0
        %3578 = vadd.xlane.f32.xlu0 %v3577
        %v3579 = vpop.xlane.xlu0 %3578
        %v3580 = vsel %vm829, %v3539, 0.0
        %3581 = vadd.xlane.f32.xlu0 %v3580
        %v3582 = vpop.xlane.xlu0 %3581
        %v3583 = vsel %vm829, %v3541, 0.0
        %3584 = vadd.xlane.f32.xlu0 %v3583
        %v3585 = vpop.xlane.xlu0 %3584
        %v3586 = vsel %vm829, %v3543, 0.0
        %3587 = vadd.xlane.f32.xlu0 %v3586
        %v3588 = vpop.xlane.xlu0 %3587
        %v3589 = vsel %vm829, %v3545, 0.0
        %3590 = vadd.xlane.f32.xlu0 %v3589
        %v3591 = vpop.xlane.xlu0 %3590
        %v3592 = vsel %vm829, %v3547, 0.0
        %3593 = vadd.xlane.f32.xlu0 %v3592
        %v3594 = vpop.xlane.xlu0 %3593
        %v3595 = vsel %vm829, %v3549, 0.0
        %3596 = vadd.xlane.f32.xlu0 %v3595
        %v3597 = vpop.xlane.xlu0 %3596
        %v3598 = vrcp.pop %v3552
        %v3599 = vmul.f32 %v3519, %v3598
        %v3600 = vrcp.pop %v3555
        %v3601 = vmul.f32 %v3521, %v3600
        %v3602 = vrcp.pop %v3558
        %v3603 = vmul.f32 %v3523, %v3602
        %v3604 = vrcp.pop %v3561
        %v3605 = vmul.f32 %v3525, %v3604
        %v3606 = vrcp.pop %v3564
        %v3607 = vmul.f32 %v3527, %v3606
        %v3608 = vrcp.pop %v3567
        %v3609 = vmul.f32 %v3529, %v3608
        %v3610 = vrcp.pop %v3570
        %v3611 = vmul.f32 %v3531, %v3610
        %v3612 = vrcp.pop %v3573
        %v3613 = vmul.f32 %v3533, %v3612
        %v3614 = vrcp.pop %v3576
        %v3615 = vmul.f32 %v3535, %v3614
        %v3616 = vrcp.pop %v3579
        %v3617 = vmul.f32 %v3537, %v3616
        %v3618 = vrcp.pop %v3582
        %v3619 = vmul.f32 %v3539, %v3618
        %v3620 = vrcp.pop %v3585
        %v3621 = vmul.f32 %v3541, %v3620
        %v3622 = vrcp.pop %v3588
        %v3623 = vmul.f32 %v3543, %v3622
        %v3624 = vrcp.pop %v3591
        %v3625 = vmul.f32 %v3545, %v3624
        %v3626 = vrcp.pop %v3594
        %v3627 = vmul.f32 %v3547, %v3626
        %v3628 = vrcp.pop %v3597
        %v3629 = vmul.f32 %v3549, %v3628
        %3630 = vrot.lane.b32.xlu0 %v549, 48
        %v3631 = vpop.permute.xlu0 %3630
        %3632 = vrot.lane.b32.xlu0 %v550, 48
        %v3633 = vpop.permute.xlu0 %3632
        %v3634 = vsel %vm829, %v3631, 0
        %v3636 = vsel %vm829, %v3633, 0
        %v3639 = vsel %vm829, %v3599, 0
        %v3642 = vsel %vm829, %v3601, 0
        %3644 = vmatprep.subr.mxu0 0.0
        %3645 = vmatpush1.xpose.msra.mxu0 %v3639
        %3646 = vmatprep.subr.mxu0 0.0
        %3647 = vmatpush1.xpose.msra.mxu0 %v3642
        %3648 = vmatprep.subr.mxu0 0.0
        %3649 = vmatpush1.xpose.msra.mxu0 0.0
        %3650 = vmatprep.subr.mxu0 0.0
        %3651 = vmatpush1.xpose.msra.mxu0 0.0
        %3652 = vmatprep.subr.mxu0 0.0
        %3653 = vmatpush1.xpose.msra.mxu0 0.0
        %3654 = vmatprep.subr.mxu0 0.0
        %3655 = vmatpush1.xpose.msra.mxu0 0.0
        %3656 = vmatprep.subr.mxu0 0.0
        %3657 = vmatpush1.xpose.msra.mxu0 0.0
        %3658 = vmatprep.subr.mxu0 0.0
        %3659 = vmatpush1.xpose.msra.mxu0 0.0
        %3660 = vmatprep.subr.mxu0 0.0
        %3661 = vmatpush1.xpose.msra.mxu0 0.0
        %3662 = vmatprep.subr.mxu0 0.0
        %3663 = vmatpush1.xpose.msra.mxu0 0.0
        %3664 = vmatprep.subr.mxu0 0.0
        %3665 = vmatpush1.xpose.msra.mxu0 0.0
        %3666 = vmatprep.subr.mxu0 0.0
        %3667 = vmatpush1.xpose.msra.mxu0 0.0
        %3668 = vmatprep.subr.mxu0 0.0
        %3669 = vmatpush1.xpose.msra.mxu0 0.0
        %3670 = vmatprep.subr.mxu0 0.0
        %3671 = vmatpush1.xpose.msra.mxu0 0.0
        %3672 = vmatprep.subr.mxu0 0.0
        %3673 = vmatpush1.xpose.msra.mxu0 0.0
        %3674 = vmatprep.subr.mxu0 0.0
        %3675 = vmatpush1.xpose.msra.mxu0 0.0
        %3676 = vmatprep.subr.mxu0 0.0
        %3677 = vmatpush1.xpose.msra.mxu0 0.0
        %3678 = vmatprep.subr.mxu0 0.0
        %3679 = vmatpush1.xpose.msra.mxu0 0.0
        %3680 = vmatprep.subr.mxu0 0.0
        %3681 = vmatpush1.xpose.msra.mxu0 0.0
        %3682 = vmatprep.subr.mxu0 0.0
        %3683 = vmatpush1.xpose.msra.mxu0 0.0
        %3684 = vmatprep.subr.mxu0 0.0
        %3685 = vmatpush1.xpose.msra.mxu0 0.0
        %3686 = vmatprep.subr.mxu0 0.0
        %3687 = vmatpush1.xpose.msra.mxu0 0.0
        %3688 = vmatprep.subr.mxu0 0.0
        %3689 = vmatpush1.xpose.msra.mxu0 0.0
        %3690 = vmatprep.subr.mxu0 0.0
        %3691 = vmatpush1.xpose.msra.mxu0 0.0
        %3692 = vmatprep.subr.mxu0 0.0
        %3693 = vmatpush1.xpose.msra.mxu0 0.0
        %3694 = vmatprep.subr.mxu0 0.0
        %3695 = vmatpush1.xpose.msra.mxu0 0.0
        %3696 = vmatprep.subr.mxu0 0.0
        %3697 = vmatpush1.xpose.msra.mxu0 0.0
        %3698 = vmatprep.subr.mxu0 0.0
        %3699 = vmatpush1.xpose.msra.mxu0 0.0
        %3700 = vmatprep.subr.mxu0 0.0
        %3701 = vmatpush1.xpose.msra.mxu0 0.0
        %3702 = vmatprep.subr.mxu0 0.0
        %3703 = vmatpush1.xpose.msra.mxu0 0.0
        %3704 = vmatprep.subr.mxu0 0.0
        %3705 = vmatpush1.xpose.msra.mxu0 0.0
        %3706 = vmatprep.subr.mxu0 0.0
        %3707 = vmatpush1.xpose.msra.mxu0 0.0
        %3708 = vmatprep.mubr.f32.mxu0 0.0
        %3709 = vmatmul.mubr.f32.gmra.mrb[0].mxu0 %v3634
        %v3710 = vpop.f32.mrb[0].mxu0
        %v3711 = vadd.f32 0.0, %v3710
        %v3712 = vpop.f32.mrb[0].mxu0
        %3713 = vmatprep.mubr.f32.mxu0 0.0
        %3714 = vmatmul.mubr.f32.gmra.mrb[0].mxu0 %v3636
        %v3715 = vpop.f32.mrb[0].mxu0
        %v3716 = vadd.f32 0.0, %v3715
        %v3717 = vpop.f32.mrb[0].mxu0
        %3718 = vdwg.mxu0
        %3719 = vrot.lane.b32.xlu0 %v551, 48
        %v3720 = vpop.permute.xlu0 %3719
        %3721 = vrot.lane.b32.xlu0 %v552, 48
        %v3722 = vpop.permute.xlu0 %3721
        %v3723 = vsel %vm829, %v3720, 0
        %v3725 = vsel %vm829, %v3722, 0
        %v3728 = vsel %vm829, %v3603, 0
        %v3731 = vsel %vm829, %v3605, 0
        %3733 = vmatprep.subr.mxu0 0.0
        %3734 = vmatpush1.xpose.msra.mxu0 %v3728
        %3735 = vmatprep.subr.mxu0 0.0
        %3736 = vmatpush1.xpose.msra.mxu0 %v3731
        %3737 = vmatprep.subr.mxu0 0.0
        %3738 = vmatpush1.xpose.msra.mxu0 0.0
        %3739 = vmatprep.subr.mxu0 0.0
        %3740 = vmatpush1.xpose.msra.mxu0 0.0
        %3741 = vmatprep.subr.mxu0 0.0
        %3742 = vmatpush1.xpose.msra.mxu0 0.0
        %3743 = vmatprep.subr.mxu0 0.0
        %3744 = vmatpush1.xpose.msra.mxu0 0.0
        %3745 = vmatprep.subr.mxu0 0.0
        %3746 = vmatpush1.xpose.msra.mxu0 0.0
        %3747 = vmatprep.subr.mxu0 0.0
        %3748 = vmatpush1.xpose.msra.mxu0 0.0
        %3749 = vmatprep.subr.mxu0 0.0
        %3750 = vmatpush1.xpose.msra.mxu0 0.0
        %3751 = vmatprep.subr.mxu0 0.0
        %3752 = vmatpush1.xpose.msra.mxu0 0.0
        %3753 = vmatprep.subr.mxu0 0.0
        %3754 = vmatpush1.xpose.msra.mxu0 0.0
        %3755 = vmatprep.subr.mxu0 0.0
        %3756 = vmatpush1.xpose.msra.mxu0 0.0
        %3757 = vmatprep.subr.mxu0 0.0
        %3758 = vmatpush1.xpose.msra.mxu0 0.0
        %3759 = vmatprep.subr.mxu0 0.0
        %3760 = vmatpush1.xpose.msra.mxu0 0.0
        %3761 = vmatprep.subr.mxu0 0.0
        %3762 = vmatpush1.xpose.msra.mxu0 0.0
        %3763 = vmatprep.subr.mxu0 0.0
        %3764 = vmatpush1.xpose.msra.mxu0 0.0
        %3765 = vmatprep.subr.mxu0 0.0
        %3766 = vmatpush1.xpose.msra.mxu0 0.0
        %3767 = vmatprep.subr.mxu0 0.0
        %3768 = vmatpush1.xpose.msra.mxu0 0.0
        %3769 = vmatprep.subr.mxu0 0.0
        %3770 = vmatpush1.xpose.msra.mxu0 0.0
        %3771 = vmatprep.subr.mxu0 0.0
        %3772 = vmatpush1.xpose.msra.mxu0 0.0
        %3773 = vmatprep.subr.mxu0 0.0
        %3774 = vmatpush1.xpose.msra.mxu0 0.0
        %3775 = vmatprep.subr.mxu0 0.0
        %3776 = vmatpush1.xpose.msra.mxu0 0.0
        %3777 = vmatprep.subr.mxu0 0.0
        %3778 = vmatpush1.xpose.msra.mxu0 0.0
        %3779 = vmatprep.subr.mxu0 0.0
        %3780 = vmatpush1.xpose.msra.mxu0 0.0
        %3781 = vmatprep.subr.mxu0 0.0
        %3782 = vmatpush1.xpose.msra.mxu0 0.0
        %3783 = vmatprep.subr.mxu0 0.0
        %3784 = vmatpush1.xpose.msra.mxu0 0.0
        %3785 = vmatprep.subr.mxu0 0.0
        %3786 = vmatpush1.xpose.msra.mxu0 0.0
        %3787 = vmatprep.subr.mxu0 0.0
        %3788 = vmatpush1.xpose.msra.mxu0 0.0
        %3789 = vmatprep.subr.mxu0 0.0
        %3790 = vmatpush1.xpose.msra.mxu0 0.0
        %3791 = vmatprep.subr.mxu0 0.0
        %3792 = vmatpush1.xpose.msra.mxu0 0.0
        %3793 = vmatprep.subr.mxu0 0.0
        %3794 = vmatpush1.xpose.msra.mxu0 0.0
        %3795 = vmatprep.subr.mxu0 0.0
        %3796 = vmatpush1.xpose.msra.mxu0 0.0
        %3797 = vmatprep.mubr.f32.mxu0 0.0
        %3798 = vmatmul.mubr.f32.gmra.mrb[0].mxu0 %v3723
        %v3799 = vpop.f32.mrb[0].mxu0
        %v3800 = vadd.f32 0.0, %v3799
        %v3801 = vpop.f32.mrb[0].mxu0
        %3802 = vmatprep.mubr.f32.mxu0 0.0
        %3803 = vmatmul.mubr.f32.gmra.mrb[0].mxu0 %v3725
        %v3804 = vpop.f32.mrb[0].mxu0
        %v3805 = vadd.f32 0.0, %v3804
        %v3806 = vpop.f32.mrb[0].mxu0
        %3807 = vdwg.mxu0
        %3808 = vrot.lane.b32.xlu0 %v553, 48
        %v3809 = vpop.permute.xlu0 %3808
        %3810 = vrot.lane.b32.xlu0 %v554, 48
        %v3811 = vpop.permute.xlu0 %3810
        %v3812 = vsel %vm829, %v3809, 0
        %v3814 = vsel %vm829, %v3811, 0
        %v3817 = vsel %vm829, %v3607, 0
        %v3820 = vsel %vm829, %v3609, 0
        %3822 = vmatprep.subr.mxu0 0.0
        %3823 = vmatpush1.xpose.msra.mxu0 %v3817
        %3824 = vmatprep.subr.mxu0 0.0
        %3825 = vmatpush1.xpose.msra.mxu0 %v3820
        %3826 = vmatprep.subr.mxu0 0.0
        %3827 = vmatpush1.xpose.msra.mxu0 0.0
        %3828 = vmatprep.subr.mxu0 0.0
        %3829 = vmatpush1.xpose.msra.mxu0 0.0
        %3830 = vmatprep.subr.mxu0 0.0
        %3831 = vmatpush1.xpose.msra.mxu0 0.0
        %3832 = vmatprep.subr.mxu0 0.0
        %3833 = vmatpush1.xpose.msra.mxu0 0.0
        %3834 = vmatprep.subr.mxu0 0.0
        %3835 = vmatpush1.xpose.msra.mxu0 0.0
        %3836 = vmatprep.subr.mxu0 0.0
        %3837 = vmatpush1.xpose.msra.mxu0 0.0
        %3838 = vmatprep.subr.mxu0 0.0
        %3839 = vmatpush1.xpose.msra.mxu0 0.0
        %3840 = vmatprep.subr.mxu0 0.0
        %3841 = vmatpush1.xpose.msra.mxu0 0.0
        %3842 = vmatprep.subr.mxu0 0.0
        %3843 = vmatpush1.xpose.msra.mxu0 0.0
        %3844 = vmatprep.subr.mxu0 0.0
        %3845 = vmatpush1.xpose.msra.mxu0 0.0
        %3846 = vmatprep.subr.mxu0 0.0
        %3847 = vmatpush1.xpose.msra.mxu0 0.0
        %3848 = vmatprep.subr.mxu0 0.0
        %3849 = vmatpush1.xpose.msra.mxu0 0.0
        %3850 = vmatprep.subr.mxu0 0.0
        %3851 = vmatpush1.xpose.msra.mxu0 0.0
        %3852 = vmatprep.subr.mxu0 0.0
        %3853 = vmatpush1.xpose.msra.mxu0 0.0
        %3854 = vmatprep.subr.mxu0 0.0
        %3855 = vmatpush1.xpose.msra.mxu0 0.0
        %3856 = vmatprep.subr.mxu0 0.0
        %3857 = vmatpush1.xpose.msra.mxu0 0.0
        %3858 = vmatprep.subr.mxu0 0.0
        %3859 = vmatpush1.xpose.msra.mxu0 0.0
        %3860 = vmatprep.subr.mxu0 0.0
        %3861 = vmatpush1.xpose.msra.mxu0 0.0
        %3862 = vmatprep.subr.mxu0 0.0
        %3863 = vmatpush1.xpose.msra.mxu0 0.0
        %3864 = vmatprep.subr.mxu0 0.0
        %3865 = vmatpush1.xpose.msra.mxu0 0.0
        %3866 = vmatprep.subr.mxu0 0.0
        %3867 = vmatpush1.xpose.msra.mxu0 0.0
        %3868 = vmatprep.subr.mxu0 0.0
        %3869 = vmatpush1.xpose.msra.mxu0 0.0
        %3870 = vmatprep.subr.mxu0 0.0
        %3871 = vmatpush1.xpose.msra.mxu0 0.0
        %3872 = vmatprep.subr.mxu0 0.0
        %3873 = vmatpush1.xpose.msra.mxu0 0.0
        %3874 = vmatprep.subr.mxu0 0.0
        %3875 = vmatpush1.xpose.msra.mxu0 0.0
        %3876 = vmatprep.subr.mxu0 0.0
        %3877 = vmatpush1.xpose.msra.mxu0 0.0
        %3878 = vmatprep.subr.mxu0 0.0
        %3879 = vmatpush1.xpose.msra.mxu0 0.0
        %3880 = vmatprep.subr.mxu0 0.0
        %3881 = vmatpush1.xpose.msra.mxu0 0.0
        %3882 = vmatprep.subr.mxu0 0.0
        %3883 = vmatpush1.xpose.msra.mxu0 0.0
        %3884 = vmatprep.subr.mxu0 0.0
        %3885 = vmatpush1.xpose.msra.mxu0 0.0
        %3886 = vmatprep.mubr.f32.mxu0 0.0
        %3887 = vmatmul.mubr.f32.gmra.mrb[0].mxu0 %v3812
        %v3888 = vpop.f32.mrb[0].mxu0
        %v3889 = vadd.f32 0.0, %v3888
        %v3890 = vpop.f32.mrb[0].mxu0
        %3891 = vmatprep.mubr.f32.mxu0 0.0
        %3892 = vmatmul.mubr.f32.gmra.mrb[0].mxu0 %v3814
        %v3893 = vpop.f32.mrb[0].mxu0
        %v3894 = vadd.f32 0.0, %v3893
        %v3895 = vpop.f32.mrb[0].mxu0
        %3896 = vdwg.mxu0
        %3897 = vrot.lane.b32.xlu0 %v555, 48
        %v3898 = vpop.permute.xlu0 %3897
        %3899 = vrot.lane.b32.xlu0 %v556, 48
        %v3900 = vpop.permute.xlu0 %3899
        %v3901 = vsel %vm829, %v3898, 0
        %v3903 = vsel %vm829, %v3900, 0
        %v3906 = vsel %vm829, %v3611, 0
        %v3909 = vsel %vm829, %v3613, 0
        %3911 = vmatprep.subr.mxu0 0.0
        %3912 = vmatpush1.xpose.msra.mxu0 %v3906
        %3913 = vmatprep.subr.mxu0 0.0
        %3914 = vmatpush1.xpose.msra.mxu0 %v3909
        %3915 = vmatprep.subr.mxu0 0.0
        %3916 = vmatpush1.xpose.msra.mxu0 0.0
        %3917 = vmatprep.subr.mxu0 0.0
        %3918 = vmatpush1.xpose.msra.mxu0 0.0
        %3919 = vmatprep.subr.mxu0 0.0
        %3920 = vmatpush1.xpose.msra.mxu0 0.0
        %3921 = vmatprep.subr.mxu0 0.0
        %3922 = vmatpush1.xpose.msra.mxu0 0.0
        %3923 = vmatprep.subr.mxu0 0.0
        %3924 = vmatpush1.xpose.msra.mxu0 0.0
        %3925 = vmatprep.subr.mxu0 0.0
        %3926 = vmatpush1.xpose.msra.mxu0 0.0
        %3927 = vmatprep.subr.mxu0 0.0
        %3928 = vmatpush1.xpose.msra.mxu0 0.0
        %3929 = vmatprep.subr.mxu0 0.0
        %3930 = vmatpush1.xpose.msra.mxu0 0.0
        %3931 = vmatprep.subr.mxu0 0.0
        %3932 = vmatpush1.xpose.msra.mxu0 0.0
        %3933 = vmatprep.subr.mxu0 0.0
        %3934 = vmatpush1.xpose.msra.mxu0 0.0
        %3935 = vmatprep.subr.mxu0 0.0
        %3936 = vmatpush1.xpose.msra.mxu0 0.0
        %3937 = vmatprep.subr.mxu0 0.0
        %3938 = vmatpush1.xpose.msra.mxu0 0.0
        %3939 = vmatprep.subr.mxu0 0.0
        %3940 = vmatpush1.xpose.msra.mxu0 0.0
        %3941 = vmatprep.subr.mxu0 0.0
        %3942 = vmatpush1.xpose.msra.mxu0 0.0
        %3943 = vmatprep.subr.mxu0 0.0
        %3944 = vmatpush1.xpose.msra.mxu0 0.0
        %3945 = vmatprep.subr.mxu0 0.0
        %3946 = vmatpush1.xpose.msra.mxu0 0.0
        %3947 = vmatprep.subr.mxu0 0.0
        %3948 = vmatpush1.xpose.msra.mxu0 0.0
        %3949 = vmatprep.subr.mxu0 0.0
        %3950 = vmatpush1.xpose.msra.mxu0 0.0
        %3951 = vmatprep.subr.mxu0 0.0
        %3952 = vmatpush1.xpose.msra.mxu0 0.0
        %3953 = vmatprep.subr.mxu0 0.0
        %3954 = vmatpush1.xpose.msra.mxu0 0.0
        %3955 = vmatprep.subr.mxu0 0.0
        %3956 = vmatpush1.xpose.msra.mxu0 0.0
        %3957 = vmatprep.subr.mxu0 0.0
        %3958 = vmatpush1.xpose.msra.mxu0 0.0
        %3959 = vmatprep.subr.mxu0 0.0
        %3960 = vmatpush1.xpose.msra.mxu0 0.0
        %3961 = vmatprep.subr.mxu0 0.0
        %3962 = vmatpush1.xpose.msra.mxu0 0.0
        %3963 = vmatprep.subr.mxu0 0.0
        %3964 = vmatpush1.xpose.msra.mxu0 0.0
        %3965 = vmatprep.subr.mxu0 0.0
        %3966 = vmatpush1.xpose.msra.mxu0 0.0
        %3967 = vmatprep.subr.mxu0 0.0
        %3968 = vmatpush1.xpose.msra.mxu0 0.0
        %3969 = vmatprep.subr.mxu0 0.0
        %3970 = vmatpush1.xpose.msra.mxu0 0.0
        %3971 = vmatprep.subr.mxu0 0.0
        %3972 = vmatpush1.xpose.msra.mxu0 0.0
        %3973 = vmatprep.subr.mxu0 0.0
        %3974 = vmatpush1.xpose.msra.mxu0 0.0
        %3975 = vmatprep.mubr.f32.mxu0 0.0
        %3976 = vmatmul.mubr.f32.gmra.mrb[0].mxu0 %v3901
        %v3977 = vpop.f32.mrb[0].mxu0
        %v3978 = vadd.f32 0.0, %v3977
        %v3979 = vpop.f32.mrb[0].mxu0
        %3980 = vmatprep.mubr.f32.mxu0 0.0
        %3981 = vmatmul.mubr.f32.gmra.mrb[0].mxu0 %v3903
        %v3982 = vpop.f32.mrb[0].mxu0
        %v3983 = vadd.f32 0.0, %v3982
        %v3984 = vpop.f32.mrb[0].mxu0
        %3985 = vdwg.mxu0
        %3986 = vrot.lane.b32.xlu0 %v557, 48
        %v3987 = vpop.permute.xlu0 %3986
        %3988 = vrot.lane.b32.xlu0 %v558, 48
        %v3989 = vpop.permute.xlu0 %3988
        %v3990 = vsel %vm829, %v3987, 0
        %v3992 = vsel %vm829, %v3989, 0
        %v3995 = vsel %vm829, %v3615, 0
        %v3998 = vsel %vm829, %v3617, 0
        %4000 = vmatprep.subr.mxu0 0.0
        %4001 = vmatpush1.xpose.msra.mxu0 %v3995
        %4002 = vmatprep.subr.mxu0 0.0
        %4003 = vmatpush1.xpose.msra.mxu0 %v3998
        %4004 = vmatprep.subr.mxu0 0.0
        %4005 = vmatpush1.xpose.msra.mxu0 0.0
        %4006 = vmatprep.subr.mxu0 0.0
        %4007 = vmatpush1.xpose.msra.mxu0 0.0
        %4008 = vmatprep.subr.mxu0 0.0
        %4009 = vmatpush1.xpose.msra.mxu0 0.0
        %4010 = vmatprep.subr.mxu0 0.0
        %4011 = vmatpush1.xpose.msra.mxu0 0.0
        %4012 = vmatprep.subr.mxu0 0.0
        %4013 = vmatpush1.xpose.msra.mxu0 0.0
        %4014 = vmatprep.subr.mxu0 0.0
        %4015 = vmatpush1.xpose.msra.mxu0 0.0
        %4016 = vmatprep.subr.mxu0 0.0
        %4017 = vmatpush1.xpose.msra.mxu0 0.0
        %4018 = vmatprep.subr.mxu0 0.0
        %4019 = vmatpush1.xpose.msra.mxu0 0.0
        %4020 = vmatprep.subr.mxu0 0.0
        %4021 = vmatpush1.xpose.msra.mxu0 0.0
        %4022 = vmatprep.subr.mxu0 0.0
        %4023 = vmatpush1.xpose.msra.mxu0 0.0
        %4024 = vmatprep.subr.mxu0 0.0
        %4025 = vmatpush1.xpose.msra.mxu0 0.0
        %4026 = vmatprep.subr.mxu0 0.0
        %4027 = vmatpush1.xpose.msra.mxu0 0.0
        %4028 = vmatprep.subr.mxu0 0.0
        %4029 = vmatpush1.xpose.msra.mxu0 0.0
        %4030 = vmatprep.subr.mxu0 0.0
        %4031 = vmatpush1.xpose.msra.mxu0 0.0
        %4032 = vmatprep.subr.mxu0 0.0
        %4033 = vmatpush1.xpose.msra.mxu0 0.0
        %4034 = vmatprep.subr.mxu0 0.0
        %4035 = vmatpush1.xpose.msra.mxu0 0.0
        %4036 = vmatprep.subr.mxu0 0.0
        %4037 = vmatpush1.xpose.msra.mxu0 0.0
        %4038 = vmatprep.subr.mxu0 0.0
        %4039 = vmatpush1.xpose.msra.mxu0 0.0
        %4040 = vmatprep.subr.mxu0 0.0
        %4041 = vmatpush1.xpose.msra.mxu0 0.0
        %4042 = vmatprep.subr.mxu0 0.0
        %4043 = vmatpush1.xpose.msra.mxu0 0.0
        %4044 = vmatprep.subr.mxu0 0.0
        %4045 = vmatpush1.xpose.msra.mxu0 0.0
        %4046 = vmatprep.subr.mxu0 0.0
        %4047 = vmatpush1.xpose.msra.mxu0 0.0
        %4048 = vmatprep.subr.mxu0 0.0
        %4049 = vmatpush1.xpose.msra.mxu0 0.0
        %4050 = vmatprep.subr.mxu0 0.0
        %4051 = vmatpush1.xpose.msra.mxu0 0.0
        %4052 = vmatprep.subr.mxu0 0.0
        %4053 = vmatpush1.xpose.msra.mxu0 0.0
        %4054 = vmatprep.subr.mxu0 0.0
        %4055 = vmatpush1.xpose.msra.mxu0 0.0
        %4056 = vmatprep.subr.mxu0 0.0
        %4057 = vmatpush1.xpose.msra.mxu0 0.0
        %4058 = vmatprep.subr.mxu0 0.0
        %4059 = vmatpush1.xpose.msra.mxu0 0.0
        %4060 = vmatprep.subr.mxu0 0.0
        %4061 = vmatpush1.xpose.msra.mxu0 0.0
        %4062 = vmatprep.subr.mxu0 0.0
        %4063 = vmatpush1.xpose.msra.mxu0 0.0
        %4064 = vmatprep.mubr.f32.mxu0 0.0
        %4065 = vmatmul.mubr.f32.gmra.mrb[0].mxu0 %v3990
        %v4066 = vpop.f32.mrb[0].mxu0
        %v4067 = vadd.f32 0.0, %v4066
        %v4068 = vpop.f32.mrb[0].mxu0
        %4069 = vmatprep.mubr.f32.mxu0 0.0
        %4070 = vmatmul.mubr.f32.gmra.mrb[0].mxu0 %v3992
        %v4071 = vpop.f32.mrb[0].mxu0
        %v4072 = vadd.f32 0.0, %v4071
        %v4073 = vpop.f32.mrb[0].mxu0
        %4074 = vdwg.mxu0
        %4075 = vrot.lane.b32.xlu0 %v559, 48
        %v4076 = vpop.permute.xlu0 %4075
        %4077 = vrot.lane.b32.xlu0 %v560, 48
        %v4078 = vpop.permute.xlu0 %4077
        %v4079 = vsel %vm829, %v4076, 0
        %v4081 = vsel %vm829, %v4078, 0
        %v4084 = vsel %vm829, %v3619, 0
        %v4087 = vsel %vm829, %v3621, 0
        %4089 = vmatprep.subr.mxu0 0.0
        %4090 = vmatpush1.xpose.msra.mxu0 %v4084
        %4091 = vmatprep.subr.mxu0 0.0
        %4092 = vmatpush1.xpose.msra.mxu0 %v4087
        %4093 = vmatprep.subr.mxu0 0.0
        %4094 = vmatpush1.xpose.msra.mxu0 0.0
        %4095 = vmatprep.subr.mxu0 0.0
        %4096 = vmatpush1.xpose.msra.mxu0 0.0
        %4097 = vmatprep.subr.mxu0 0.0
        %4098 = vmatpush1.xpose.msra.mxu0 0.0
        %4099 = vmatprep.subr.mxu0 0.0
        %4100 = vmatpush1.xpose.msra.mxu0 0.0
        %4101 = vmatprep.subr.mxu0 0.0
        %4102 = vmatpush1.xpose.msra.mxu0 0.0
        %4103 = vmatprep.subr.mxu0 0.0
        %4104 = vmatpush1.xpose.msra.mxu0 0.0
        %4105 = vmatprep.subr.mxu0 0.0
        %4106 = vmatpush1.xpose.msra.mxu0 0.0
        %4107 = vmatprep.subr.mxu0 0.0
        %4108 = vmatpush1.xpose.msra.mxu0 0.0
        %4109 = vmatprep.subr.mxu0 0.0
        %4110 = vmatpush1.xpose.msra.mxu0 0.0
        %4111 = vmatprep.subr.mxu0 0.0
        %4112 = vmatpush1.xpose.msra.mxu0 0.0
        %4113 = vmatprep.subr.mxu0 0.0
        %4114 = vmatpush1.xpose.msra.mxu0 0.0
        %4115 = vmatprep.subr.mxu0 0.0
        %4116 = vmatpush1.xpose.msra.mxu0 0.0
        %4117 = vmatprep.subr.mxu0 0.0
        %4118 = vmatpush1.xpose.msra.mxu0 0.0
        %4119 = vmatprep.subr.mxu0 0.0
        %4120 = vmatpush1.xpose.msra.mxu0 0.0
        %4121 = vmatprep.subr.mxu0 0.0
        %4122 = vmatpush1.xpose.msra.mxu0 0.0
        %4123 = vmatprep.subr.mxu0 0.0
        %4124 = vmatpush1.xpose.msra.mxu0 0.0
        %4125 = vmatprep.subr.mxu0 0.0
        %4126 = vmatpush1.xpose.msra.mxu0 0.0
        %4127 = vmatprep.subr.mxu0 0.0
        %4128 = vmatpush1.xpose.msra.mxu0 0.0
        %4129 = vmatprep.subr.mxu0 0.0
        %4130 = vmatpush1.xpose.msra.mxu0 0.0
        %4131 = vmatprep.subr.mxu0 0.0
        %4132 = vmatpush1.xpose.msra.mxu0 0.0
        %4133 = vmatprep.subr.mxu0 0.0
        %4134 = vmatpush1.xpose.msra.mxu0 0.0
        %4135 = vmatprep.subr.mxu0 0.0
        %4136 = vmatpush1.xpose.msra.mxu0 0.0
        %4137 = vmatprep.subr.mxu0 0.0
        %4138 = vmatpush1.xpose.msra.mxu0 0.0
        %4139 = vmatprep.subr.mxu0 0.0
        %4140 = vmatpush1.xpose.msra.mxu0 0.0
        %4141 = vmatprep.subr.mxu0 0.0
        %4142 = vmatpush1.xpose.msra.mxu0 0.0
        %4143 = vmatprep.subr.mxu0 0.0
        %4144 = vmatpush1.xpose.msra.mxu0 0.0
        %4145 = vmatprep.subr.mxu0 0.0
        %4146 = vmatpush1.xpose.msra.mxu0 0.0
        %4147 = vmatprep.subr.mxu0 0.0
        %4148 = vmatpush1.xpose.msra.mxu0 0.0
        %4149 = vmatprep.subr.mxu0 0.0
        %4150 = vmatpush1.xpose.msra.mxu0 0.0
        %4151 = vmatprep.subr.mxu0 0.0
        %4152 = vmatpush1.xpose.msra.mxu0 0.0
        %4153 = vmatprep.mubr.f32.mxu0 0.0
        %4154 = vmatmul.mubr.f32.gmra.mrb[0].mxu0 %v4079
        %v4155 = vpop.f32.mrb[0].mxu0
        %v4156 = vadd.f32 0.0, %v4155
        %v4157 = vpop.f32.mrb[0].mxu0
        %4158 = vmatprep.mubr.f32.mxu0 0.0
        %4159 = vmatmul.mubr.f32.gmra.mrb[0].mxu0 %v4081
        %v4160 = vpop.f32.mrb[0].mxu0
        %v4161 = vadd.f32 0.0, %v4160
        %v4162 = vpop.f32.mrb[0].mxu0
        %4163 = vdwg.mxu0
        %4164 = vrot.lane.b32.xlu0 %v561, 48
        %v4165 = vpop.permute.xlu0 %4164
        %4166 = vrot.lane.b32.xlu0 %v562, 48
        %v4167 = vpop.permute.xlu0 %4166
        %v4168 = vsel %vm829, %v4165, 0
        %v4170 = vsel %vm829, %v4167, 0
        %v4173 = vsel %vm829, %v3623, 0
        %v4176 = vsel %vm829, %v3625, 0
        %4178 = vmatprep.subr.mxu0 0.0
        %4179 = vmatpush1.xpose.msra.mxu0 %v4173
        %4180 = vmatprep.subr.mxu0 0.0
        %4181 = vmatpush1.xpose.msra.mxu0 %v4176
        %4182 = vmatprep.subr.mxu0 0.0
        %4183 = vmatpush1.xpose.msra.mxu0 0.0
        %4184 = vmatprep.subr.mxu0 0.0
        %4185 = vmatpush1.xpose.msra.mxu0 0.0
        %4186 = vmatprep.subr.mxu0 0.0
        %4187 = vmatpush1.xpose.msra.mxu0 0.0
        %4188 = vmatprep.subr.mxu0 0.0
        %4189 = vmatpush1.xpose.msra.mxu0 0.0
        %4190 = vmatprep.subr.mxu0 0.0
        %4191 = vmatpush1.xpose.msra.mxu0 0.0
        %4192 = vmatprep.subr.mxu0 0.0
        %4193 = vmatpush1.xpose.msra.mxu0 0.0
        %4194 = vmatprep.subr.mxu0 0.0
        %4195 = vmatpush1.xpose.msra.mxu0 0.0
        %4196 = vmatprep.subr.mxu0 0.0
        %4197 = vmatpush1.xpose.msra.mxu0 0.0
        %4198 = vmatprep.subr.mxu0 0.0
        %4199 = vmatpush1.xpose.msra.mxu0 0.0
        %4200 = vmatprep.subr.mxu0 0.0
        %4201 = vmatpush1.xpose.msra.mxu0 0.0
        %4202 = vmatprep.subr.mxu0 0.0
        %4203 = vmatpush1.xpose.msra.mxu0 0.0
        %4204 = vmatprep.subr.mxu0 0.0
        %4205 = vmatpush1.xpose.msra.mxu0 0.0
        %4206 = vmatprep.subr.mxu0 0.0
        %4207 = vmatpush1.xpose.msra.mxu0 0.0
        %4208 = vmatprep.subr.mxu0 0.0
        %4209 = vmatpush1.xpose.msra.mxu0 0.0
        %4210 = vmatprep.subr.mxu0 0.0
        %4211 = vmatpush1.xpose.msra.mxu0 0.0
        %4212 = vmatprep.subr.mxu0 0.0
        %4213 = vmatpush1.xpose.msra.mxu0 0.0
        %4214 = vmatprep.subr.mxu0 0.0
        %4215 = vmatpush1.xpose.msra.mxu0 0.0
        %4216 = vmatprep.subr.mxu0 0.0
        %4217 = vmatpush1.xpose.msra.mxu0 0.0
        %4218 = vmatprep.subr.mxu0 0.0
        %4219 = vmatpush1.xpose.msra.mxu0 0.0
        %4220 = vmatprep.subr.mxu0 0.0
        %4221 = vmatpush1.xpose.msra.mxu0 0.0
        %4222 = vmatprep.subr.mxu0 0.0
        %4223 = vmatpush1.xpose.msra.mxu0 0.0
        %4224 = vmatprep.subr.mxu0 0.0
        %4225 = vmatpush1.xpose.msra.mxu0 0.0
        %4226 = vmatprep.subr.mxu0 0.0
        %4227 = vmatpush1.xpose.msra.mxu0 0.0
        %4228 = vmatprep.subr.mxu0 0.0
        %4229 = vmatpush1.xpose.msra.mxu0 0.0
        %4230 = vmatprep.subr.mxu0 0.0
        %4231 = vmatpush1.xpose.msra.mxu0 0.0
        %4232 = vmatprep.subr.mxu0 0.0
        %4233 = vmatpush1.xpose.msra.mxu0 0.0
        %4234 = vmatprep.subr.mxu0 0.0
        %4235 = vmatpush1.xpose.msra.mxu0 0.0
        %4236 = vmatprep.subr.mxu0 0.0
        %4237 = vmatpush1.xpose.msra.mxu0 0.0
        %4238 = vmatprep.subr.mxu0 0.0
        %4239 = vmatpush1.xpose.msra.mxu0 0.0
        %4240 = vmatprep.subr.mxu0 0.0
        %4241 = vmatpush1.xpose.msra.mxu0 0.0
        %4242 = vmatprep.mubr.f32.mxu0 0.0
        %4243 = vmatmul.mubr.f32.gmra.mrb[0].mxu0 %v4168
        %v4244 = vpop.f32.mrb[0].mxu0
        %v4245 = vadd.f32 0.0, %v4244
        %v4246 = vpop.f32.mrb[0].mxu0
        %4247 = vmatprep.mubr.f32.mxu0 0.0
        %4248 = vmatmul.mubr.f32.gmra.mrb[0].mxu0 %v4170
        %v4249 = vpop.f32.mrb[0].mxu0
        %v4250 = vadd.f32 0.0, %v4249
        %v4251 = vpop.f32.mrb[0].mxu0
        %4252 = vdwg.mxu0
        %4253 = vrot.lane.b32.xlu0 %v563, 48
        %v4254 = vpop.permute.xlu0 %4253
        %4255 = vrot.lane.b32.xlu0 %v564, 48
        %v4256 = vpop.permute.xlu0 %4255
        %v4257 = vsel %vm829, %v4254, 0
        %v4259 = vsel %vm829, %v4256, 0
        %v4262 = vsel %vm829, %v3627, 0
        %v4265 = vsel %vm829, %v3629, 0
        %4267 = vmatprep.subr.mxu0 0.0
        %4268 = vmatpush1.xpose.msra.mxu0 %v4262
        %4269 = vmatprep.subr.mxu0 0.0
        %4270 = vmatpush1.xpose.msra.mxu0 %v4265
        %4271 = vmatprep.subr.mxu0 0.0
        %4272 = vmatpush1.xpose.msra.mxu0 0.0
        %4273 = vmatprep.subr.mxu0 0.0
        %4274 = vmatpush1.xpose.msra.mxu0 0.0
        %4275 = vmatprep.subr.mxu0 0.0
        %4276 = vmatpush1.xpose.msra.mxu0 0.0
        %4277 = vmatprep.subr.mxu0 0.0
        %4278 = vmatpush1.xpose.msra.mxu0 0.0
        %4279 = vmatprep.subr.mxu0 0.0
        %4280 = vmatpush1.xpose.msra.mxu0 0.0
        %4281 = vmatprep.subr.mxu0 0.0
        %4282 = vmatpush1.xpose.msra.mxu0 0.0
        %4283 = vmatprep.subr.mxu0 0.0
        %4284 = vmatpush1.xpose.msra.mxu0 0.0
        %4285 = vmatprep.subr.mxu0 0.0
        %4286 = vmatpush1.xpose.msra.mxu0 0.0
        %4287 = vmatprep.subr.mxu0 0.0
        %4288 = vmatpush1.xpose.msra.mxu0 0.0
        %4289 = vmatprep.subr.mxu0 0.0
        %4290 = vmatpush1.xpose.msra.mxu0 0.0
        %4291 = vmatprep.subr.mxu0 0.0
        %4292 = vmatpush1.xpose.msra.mxu0 0.0
        %4293 = vmatprep.subr.mxu0 0.0
        %4294 = vmatpush1.xpose.msra.mxu0 0.0
        %4295 = vmatprep.subr.mxu0 0.0
        %4296 = vmatpush1.xpose.msra.mxu0 0.0
        %4297 = vmatprep.subr.mxu0 0.0
        %4298 = vmatpush1.xpose.msra.mxu0 0.0
        %4299 = vmatprep.subr.mxu0 0.0
        %4300 = vmatpush1.xpose.msra.mxu0 0.0
        %4301 = vmatprep.subr.mxu0 0.0
        %4302 = vmatpush1.xpose.msra.mxu0 0.0
        %4303 = vmatprep.subr.mxu0 0.0
        %4304 = vmatpush1.xpose.msra.mxu0 0.0
        %4305 = vmatprep.subr.mxu0 0.0
        %4306 = vmatpush1.xpose.msra.mxu0 0.0
        %4307 = vmatprep.subr.mxu0 0.0
        %4308 = vmatpush1.xpose.msra.mxu0 0.0
        %4309 = vmatprep.subr.mxu0 0.0
        %4310 = vmatpush1.xpose.msra.mxu0 0.0
        %4311 = vmatprep.subr.mxu0 0.0
        %4312 = vmatpush1.xpose.msra.mxu0 0.0
        %4313 = vmatprep.subr.mxu0 0.0
        %4314 = vmatpush1.xpose.msra.mxu0 0.0
        %4315 = vmatprep.subr.mxu0 0.0
        %4316 = vmatpush1.xpose.msra.mxu0 0.0
        %4317 = vmatprep.subr.mxu0 0.0
        %4318 = vmatpush1.xpose.msra.mxu0 0.0
        %4319 = vmatprep.subr.mxu0 0.0
        %4320 = vmatpush1.xpose.msra.mxu0 0.0
        %4321 = vmatprep.subr.mxu0 0.0
        %4322 = vmatpush1.xpose.msra.mxu0 0.0
        %4323 = vmatprep.subr.mxu0 0.0
        %4324 = vmatpush1.xpose.msra.mxu0 0.0
        %4325 = vmatprep.subr.mxu0 0.0
        %4326 = vmatpush1.xpose.msra.mxu0 0.0
        %4327 = vmatprep.subr.mxu0 0.0
        %4328 = vmatpush1.xpose.msra.mxu0 0.0
        %4329 = vmatprep.subr.mxu0 0.0
        %4330 = vmatpush1.xpose.msra.mxu0 0.0
        %4331 = vmatprep.mubr.f32.mxu0 0.0
        %4332 = vmatmul.mubr.f32.gmra.mrb[0].mxu0 %v4257
        %v4333 = vpop.f32.mrb[0].mxu0
        %v4334 = vadd.f32 0.0, %v4333
        %v4335 = vpop.f32.mrb[0].mxu0
        %4336 = vmatprep.mubr.f32.mxu0 0.0
        %4337 = vmatmul.mubr.f32.gmra.mrb[0].mxu0 %v4259
        %v4338 = vpop.f32.mrb[0].mxu0
        %v4339 = vadd.f32 0.0, %v4338
        %v4340 = vpop.f32.mrb[0].mxu0
        %4341 = vdwg.mxu0
        %4358 = vrot.lane.b32.xlu0 %v3711, 16
        %v4359 = vpop.permute.xlu0 %4358
        %4360 = vrot.lane.b32.xlu0 %v3716, 16
        %v4361 = vpop.permute.xlu0 %4360
        %4362 = vrot.lane.b32.xlu0 %v3800, 16
        %v4363 = vpop.permute.xlu0 %4362
        %4364 = vrot.lane.b32.xlu0 %v3805, 16
        %v4365 = vpop.permute.xlu0 %4364
        %4366 = vrot.lane.b32.xlu0 %v3889, 16
        %v4367 = vpop.permute.xlu0 %4366
        %4368 = vrot.lane.b32.xlu0 %v3894, 16
        %v4369 = vpop.permute.xlu0 %4368
        %4370 = vrot.lane.b32.xlu0 %v3978, 16
        %v4371 = vpop.permute.xlu0 %4370
        %4372 = vrot.lane.b32.xlu0 %v3983, 16
        %v4373 = vpop.permute.xlu0 %4372
        %4374 = vrot.lane.b32.xlu0 %v4067, 16
        %v4375 = vpop.permute.xlu0 %4374
        %4376 = vrot.lane.b32.xlu0 %v4072, 16
        %v4377 = vpop.permute.xlu0 %4376
        %4378 = vrot.lane.b32.xlu0 %v4156, 16
        %v4379 = vpop.permute.xlu0 %4378
        %4380 = vrot.lane.b32.xlu0 %v4161, 16
        %v4381 = vpop.permute.xlu0 %4380
        %4382 = vrot.lane.b32.xlu0 %v4245, 16
        %v4383 = vpop.permute.xlu0 %4382
        %4384 = vrot.lane.b32.xlu0 %v4250, 16
        %v4385 = vpop.permute.xlu0 %4384
        %4386 = vrot.lane.b32.xlu0 %v4334, 16
        %v4387 = vpop.permute.xlu0 %4386
        %4388 = vrot.lane.b32.xlu0 %v4339, 16
        %v4389 = vpop.permute.xlu0 %4388
        %v4406 = vsel %vm829, %v1807, %v4359
        %v4407 = vsel %vm829, %v1812, %v4361
        %v4408 = vsel %vm829, %v1896, %v4363
        %v4409 = vsel %vm829, %v1901, %v4365
        %v4410 = vsel %vm829, %v1985, %v4367
        %v4411 = vsel %vm829, %v1990, %v4369
        %v4412 = vsel %vm829, %v2074, %v4371
        %v4413 = vsel %vm829, %v2079, %v4373
        %v4414 = vsel %vm829, %v2163, %v4375
        %v4415 = vsel %vm829, %v2168, %v4377
        %v4416 = vsel %vm829, %v2252, %v4379
        %v4417 = vsel %vm829, %v2257, %v4381
        %v4418 = vsel %vm829, %v2341, %v4383
        %v4419 = vsel %vm829, %v2346, %v4385
        %v4420 = vsel %vm829, %v2430, %v4387
        %v4421 = vsel %vm829, %v2435, %v4389
        %v4422 = vld [vmem:[#allocation7] sm:$0xff]
        %v4423 = vld [vmem:[#allocation7 + $0x8] sm:$0xff]
        %v4424 = vld [vmem:[#allocation7 + $0x10] sm:$0xff]
        %v4425 = vld [vmem:[#allocation7 + $0x18] sm:$0xff]
        %v4426 = vld [vmem:[%s4] sm:$0x1]
        %v4427 = vlaneseq
        %v4428 = vshrl.u32 %v4427, 7
        %v4429 = vsub.s32 0, %v4428
        %v4430 = vrot.slane %v4426, %v4429
        %v4432 = vsel %vm318, %v4406, 0
        %v4435 = vsel %vm318, %v4407, 0
        %v4438 = vsel %vm318, %v4408, 0
        %v4441 = vsel %vm318, %v4409, 0
        %v4444 = vsel %vm318, %v4410, 0
        %v4447 = vsel %vm318, %v4411, 0
        %v4450 = vsel %vm318, %v4412, 0
        %v4453 = vsel %vm318, %v4413, 0
        %v4456 = vsel %vm318, %v4414, 0
        %v4459 = vsel %vm318, %v4415, 0
        %v4462 = vsel %vm318, %v4416, 0
        %v4465 = vsel %vm318, %v4417, 0
        %v4468 = vsel %vm318, %v4418, 0
        %v4471 = vsel %vm318, %v4419, 0
        %v4474 = vsel %vm318, %v4420, 0
        %v4477 = vsel %vm318, %v4421, 0
        %4479 = vmatprep.subr.mxu0 0.0
        %4480 = vmatpush1.msra.mxu0 %v4422
        %4481 = vmatprep.subr.mxu0 0.0
        %4482 = vmatpush1.msra.mxu0 %v4423
        %4483 = vmatprep.subr.mxu0 0.0
        %4484 = vmatpush1.msra.mxu0 %v4424
        %4485 = vmatprep.subr.mxu0 0.0
        %4486 = vmatpush1.msra.mxu0 %v4425
        %4487 = vmatprep.subr.mxu0 0.0
        %4488 = vmatpush1.msra.mxu0 0.0
        %4489 = vmatprep.subr.mxu0 0.0
        %4490 = vmatpush1.msra.mxu0 0.0
        %4491 = vmatprep.subr.mxu0 0.0
        %4492 = vmatpush1.msra.mxu0 0.0
        %4493 = vmatprep.subr.mxu0 0.0
        %4494 = vmatpush1.msra.mxu0 0.0
        %4495 = vmatprep.subr.mxu0 0.0
        %4496 = vmatpush1.msra.mxu0 0.0
        %4497 = vmatprep.subr.mxu0 0.0
        %4498 = vmatpush1.msra.mxu0 0.0
        %4499 = vmatprep.subr.mxu0 0.0
        %4500 = vmatpush1.msra.mxu0 0.0
        %4501 = vmatprep.subr.mxu0 0.0
        %4502 = vmatpush1.msra.mxu0 0.0
        %4503 = vmatprep.subr.mxu0 0.0
        %4504 = vmatpush1.msra.mxu0 0.0
        %4505 = vmatprep.subr.mxu0 0.0
        %4506 = vmatpush1.msra.mxu0 0.0
        %4507 = vmatprep.subr.mxu0 0.0
        %4508 = vmatpush1.msra.mxu0 0.0
        %4509 = vmatprep.subr.mxu0 0.0
        %4510 = vmatpush1.msra.mxu0 0.0
        %4511 = vmatprep.subr.mxu0 0.0
        %4512 = vmatpush1.msra.mxu0 0.0
        %4513 = vmatprep.subr.mxu0 0.0
        %4514 = vmatpush1.msra.mxu0 0.0
        %4515 = vmatprep.subr.mxu0 0.0
        %4516 = vmatpush1.msra.mxu0 0.0
        %4517 = vmatprep.subr.mxu0 0.0
        %4518 = vmatpush1.msra.mxu0 0.0
        %4519 = vmatprep.subr.mxu0 0.0
        %4520 = vmatpush1.msra.mxu0 0.0
        %4521 = vmatprep.subr.mxu0 0.0
        %4522 = vmatpush1.msra.mxu0 0.0
        %4523 = vmatprep.subr.mxu0 0.0
        %4524 = vmatpush1.msra.mxu0 0.0
        %4525 = vmatprep.subr.mxu0 0.0
        %4526 = vmatpush1.msra.mxu0 0.0
        %4527 = vmatprep.subr.mxu0 0.0
        %4528 = vmatpush1.msra.mxu0 0.0
        %4529 = vmatprep.subr.mxu0 0.0
        %4530 = vmatpush1.msra.mxu0 0.0
        %4531 = vmatprep.subr.mxu0 0.0
        %4532 = vmatpush1.msra.mxu0 0.0
        %4533 = vmatprep.subr.mxu0 0.0
        %4534 = vmatpush1.msra.mxu0 0.0
        %4535 = vmatprep.subr.mxu0 0.0
        %4536 = vmatpush1.msra.mxu0 0.0
        %4537 = vmatprep.subr.mxu0 0.0
        %4538 = vmatpush1.msra.mxu0 0.0
        %4539 = vmatprep.subr.mxu0 0.0
        %4540 = vmatpush1.msra.mxu0 0.0
        %4541 = vmatprep.subr.mxu0 0.0
        %4542 = vmatpush1.msra.mxu0 0.0
        %4543 = vmatprep.mubr.f32.mxu0 0.0
        %4544 = vmatmul.mubr.f32.gmra.mrb[0].mxu0 %v4432
        %v4545 = vpop.f32.mrb[0].mxu0
        %v4546 = vadd.f32 %v4430, %v4545
        %v4547 = vpop.f32.mrb[0].mxu0
        %4548 = vmatprep.mubr.f32.mxu0 0.0
        %4549 = vmatmul.mubr.f32.gmra.mrb[0].mxu0 %v4435
        %v4550 = vpop.f32.mrb[0].mxu0
        %v4551 = vadd.f32 %v4430, %v4550
        %v4552 = vpop.f32.mrb[0].mxu0
        %4553 = vmatprep.mubr.f32.mxu0 0.0
        %4554 = vmatmul.mubr.f32.gmra.mrb[0].mxu0 %v4438
        %v4555 = vpop.f32.mrb[0].mxu0
        %v4556 = vadd.f32 %v4430, %v4555
        %v4557 = vpop.f32.mrb[0].mxu0
        %4558 = vmatprep.mubr.f32.mxu0 0.0
        %4559 = vmatmul.mubr.f32.gmra.mrb[0].mxu0 %v4441
        %v4560 = vpop.f32.mrb[0].mxu0
        %v4561 = vadd.f32 %v4430, %v4560
        %v4562 = vpop.f32.mrb[0].mxu0
        %4563 = vmatprep.mubr.f32.mxu0 0.0
        %4564 = vmatmul.mubr.f32.gmra.mrb[0].mxu0 %v4444
        %v4565 = vpop.f32.mrb[0].mxu0
        %v4566 = vadd.f32 %v4430, %v4565
        %v4567 = vpop.f32.mrb[0].mxu0
        %4568 = vmatprep.mubr.f32.mxu0 0.0
        %4569 = vmatmul.mubr.f32.gmra.mrb[0].mxu0 %v4447
        %v4570 = vpop.f32.mrb[0].mxu0
        %v4571 = vadd.f32 %v4430, %v4570
        %v4572 = vpop.f32.mrb[0].mxu0
        %4573 = vmatprep.mubr.f32.mxu0 0.0
        %4574 = vmatmul.mubr.f32.gmra.mrb[0].mxu0 %v4450
        %v4575 = vpop.f32.mrb[0].mxu0
        %v4576 = vadd.f32 %v4430, %v4575
        %v4577 = vpop.f32.mrb[0].mxu0
        %4578 = vmatprep.mubr.f32.mxu0 0.0
        %4579 = vmatmul.mubr.f32.gmra.mrb[0].mxu0 %v4453
        %v4580 = vpop.f32.mrb[0].mxu0
        %v4581 = vadd.f32 %v4430, %v4580
        %v4582 = vpop.f32.mrb[0].mxu0
        %4583 = vmatprep.mubr.f32.mxu0 0.0
        %4584 = vmatmul.mubr.f32.gmra.mrb[0].mxu0 %v4456
        %v4585 = vpop.f32.mrb[0].mxu0
        %v4586 = vadd.f32 %v4430, %v4585
        %v4587 = vpop.f32.mrb[0].mxu0
        %4588 = vmatprep.mubr.f32.mxu0 0.0
        %4589 = vmatmul.mubr.f32.gmra.mrb[0].mxu0 %v4459
        %v4590 = vpop.f32.mrb[0].mxu0
        %v4591 = vadd.f32 %v4430, %v4590
        %v4592 = vpop.f32.mrb[0].mxu0
        %4593 = vmatprep.mubr.f32.mxu0 0.0
        %4594 = vmatmul.mubr.f32.gmra.mrb[0].mxu0 %v4462
        %v4595 = vpop.f32.mrb[0].mxu0
        %v4596 = vadd.f32 %v4430, %v4595
        %v4597 = vpop.f32.mrb[0].mxu0
        %4598 = vmatprep.mubr.f32.mxu0 0.0
        %4599 = vmatmul.mubr.f32.gmra.mrb[0].mxu0 %v4465
        %v4600 = vpop.f32.mrb[0].mxu0
        %v4601 = vadd.f32 %v4430, %v4600
        %v4602 = vpop.f32.mrb[0].mxu0
        %4603 = vmatprep.mubr.f32.mxu0 0.0
        %4604 = vmatmul.mubr.f32.gmra.mrb[0].mxu0 %v4468
        %v4605 = vpop.f32.mrb[0].mxu0
        %v4606 = vadd.f32 %v4430, %v4605
        %v4607 = vpop.f32.mrb[0].mxu0
        %4608 = vmatprep.mubr.f32.mxu0 0.0
        %4609 = vmatmul.mubr.f32.gmra.mrb[0].mxu0 %v4471
        %v4610 = vpop.f32.mrb[0].mxu0
        %v4611 = vadd.f32 %v4430, %v4610
        %v4612 = vpop.f32.mrb[0].mxu0
        %4613 = vmatprep.mubr.f32.mxu0 0.0
        %4614 = vmatmul.mubr.f32.gmra.mrb[0].mxu0 %v4474
        %v4615 = vpop.f32.mrb[0].mxu0
        %v4616 = vadd.f32 %v4430, %v4615
        %v4617 = vpop.f32.mrb[0].mxu0
        %4618 = vmatprep.mubr.f32.mxu0 0.0
        %4619 = vmatmul.mubr.f32.gmra.mrb[0].mxu0 %v4477
        %v4620 = vpop.f32.mrb[0].mxu0
        %v4621 = vadd.f32 %v4430, %v4620
        %v4622 = vpop.f32.mrb[0].mxu0
        %4623 = vdwg.mxu0
        %vm4624 = vcmp.ge.f32.partialorder %v4546, 0.0
        %vm4625 = vcmp.ge.f32.partialorder %v4551, 0.0
        %vm4626 = vcmp.ge.f32.partialorder %v4556, 0.0
        %vm4627 = vcmp.ge.f32.partialorder %v4561, 0.0
        %vm4628 = vcmp.ge.f32.partialorder %v4566, 0.0
        %vm4629 = vcmp.ge.f32.partialorder %v4571, 0.0
        %vm4630 = vcmp.ge.f32.partialorder %v4576, 0.0
        %vm4631 = vcmp.ge.f32.partialorder %v4581, 0.0
        %vm4632 = vcmp.ge.f32.partialorder %v4586, 0.0
        %vm4633 = vcmp.ge.f32.partialorder %v4591, 0.0
        %vm4634 = vcmp.ge.f32.partialorder %v4596, 0.0
        %vm4635 = vcmp.ge.f32.partialorder %v4601, 0.0
        %vm4636 = vcmp.ge.f32.partialorder %v4606, 0.0
        %vm4637 = vcmp.ge.f32.partialorder %v4611, 0.0
        %vm4638 = vcmp.ge.f32.partialorder %v4616, 0.0
        %vm4639 = vcmp.ge.f32.partialorder %v4621, 0.0
        %v4640 = vld [vmem:[%s4 + $0x1] sm:$0x1]
        %v4641 = vlaneseq
        %v4642 = vshrl.u32 %v4641, 7
        %v4643 = vsub.s32 0, %v4642
        %v4644 = vrot.slane %v4640, %v4643
        %v4645 = vmul.f32 %v4644, %v4546
        %v4646 = vmul.f32 %v4644, %v4551
        %v4647 = vmul.f32 %v4644, %v4556
        %v4648 = vmul.f32 %v4644, %v4561
        %v4649 = vmul.f32 %v4644, %v4566
        %v4650 = vmul.f32 %v4644, %v4571
        %v4651 = vmul.f32 %v4644, %v4576
        %v4652 = vmul.f32 %v4644, %v4581
        %v4653 = vmul.f32 %v4644, %v4586
        %v4654 = vmul.f32 %v4644, %v4591
        %v4655 = vmul.f32 %v4644, %v4596
        %v4656 = vmul.f32 %v4644, %v4601
        %v4657 = vmul.f32 %v4644, %v4606
        %v4658 = vmul.f32 %v4644, %v4611
        %v4659 = vmul.f32 %v4644, %v4616
        %v4660 = vmul.f32 %v4644, %v4621
        %v4661 = vsel %vm4624, %v4546, %v4645
        %v4662 = vsel %vm4625, %v4551, %v4646
        %v4663 = vsel %vm4626, %v4556, %v4647
        %v4664 = vsel %vm4627, %v4561, %v4648
        %v4665 = vsel %vm4628, %v4566, %v4649
        %v4666 = vsel %vm4629, %v4571, %v4650
        %v4667 = vsel %vm4630, %v4576, %v4651
        %v4668 = vsel %vm4631, %v4581, %v4652
        %v4669 = vsel %vm4632, %v4586, %v4653
        %v4670 = vsel %vm4633, %v4591, %v4654
        %v4671 = vsel %vm4634, %v4596, %v4655
        %v4672 = vsel %vm4635, %v4601, %v4656
        %v4673 = vsel %vm4636, %v4606, %v4657
        %v4674 = vsel %vm4637, %v4611, %v4658
        %v4675 = vsel %vm4638, %v4616, %v4659
        %v4676 = vsel %vm4639, %v4621, %v4660
        %v4677 = vadd.f32 %v293, %v4661
        %v4678 = vadd.f32 %v294, %v4662
        %v4679 = vadd.f32 %v295, %v4663
        %v4680 = vadd.f32 %v296, %v4664
        %v4681 = vadd.f32 %v297, %v4665
        %v4682 = vadd.f32 %v298, %v4666
        %v4683 = vadd.f32 %v299, %v4667
        %v4684 = vadd.f32 %v300, %v4668
        %v4685 = vadd.f32 %v301, %v4669
        %v4686 = vadd.f32 %v302, %v4670
        %v4687 = vadd.f32 %v303, %v4671
        %v4688 = vadd.f32 %v304, %v4672
        %v4689 = vadd.f32 %v305, %v4673
        %v4690 = vadd.f32 %v306, %v4674
        %v4691 = vadd.f32 %v307, %v4675
        %v4692 = vadd.f32 %v308, %v4676
        %4693 = vst.msk [vmem:[%s290] sm:$0xff] %vm318, %v4677
        %4694 = vst.msk [vmem:[%s290 + $0x8] sm:$0xff] %vm318, %v4678
        %4695 = vst.msk [vmem:[%s290 + $0x10] sm:$0xff] %vm318, %v4679
        %4696 = vst.msk [vmem:[%s290 + $0x18] sm:$0xff] %vm318, %v4680
        %4697 = vst.msk [vmem:[%s290 + $0x20] sm:$0xff] %vm318, %v4681
        %4698 = vst.msk [vmem:[%s290 + $0x28] sm:$0xff] %vm318, %v4682
        %4699 = vst.msk [vmem:[%s290 + $0x30] sm:$0xff] %vm318, %v4683
        %4700 = vst.msk [vmem:[%s290 + $0x38] sm:$0xff] %vm318, %v4684
        %4701 = vst.msk [vmem:[%s290 + $0x40] sm:$0xff] %vm318, %v4685
        %4702 = vst.msk [vmem:[%s290 + $0x48] sm:$0xff] %vm318, %v4686
        %4703 = vst.msk [vmem:[%s290 + $0x50] sm:$0xff] %vm318, %v4687
        %4704 = vst.msk [vmem:[%s290 + $0x58] sm:$0xff] %vm318, %v4688
        %4705 = vst.msk [vmem:[%s290 + $0x60] sm:$0xff] %vm318, %v4689
        %4706 = vst.msk [vmem:[%s290 + $0x68] sm:$0xff] %vm318, %v4690
        %4707 = vst.msk [vmem:[%s290 + $0x70] sm:$0xff] %vm318, %v4691
        %4708 = vst.msk [vmem:[%s290 + $0x78] sm:$0xff] %vm318, %v4692
        %s4709 = sand.u32 %s157, 1
        %s4710 = scalar_lea.sflag [#allocation4], %s4709
        %s4711 = sand.u32 %s157, 1
        %s4712 = smul.addr %s4711, 128
        %s4713 = scalar_lea.vmem [#allocation8], %s4712
        // Predicated region
        $region53: #{tpu_custom_call.1} parent=39 // pred_check
          %p4714 = pneg %p167
        $region54: #{tpu_custom_call.1} parent=39 // pred_check_branch
          %4716 = sbr.rel (%p4714) target = $region56
        $region55: #{tpu_custom_call.1} parent=39 // pred_region
          %s4717 = smul.u32 8, %s28
          %s4719 = ssub.s32 2048, 2048
          %4720 = vsyncadd %s4710, %s4719
          %s4721 = smul.addr %s4717, 2
          %s4722 = smul.addr %s27, 16
          %s4723 = sadd.s32 %s4721, %s4722
          %s4724 = smul.addr %s4723, 128
          %s4725 = scalar_lea.hbm %s5, %s4724
          %s4726 = sshll.u32 %s4713, 4
          %s4727 = int_to_ptr.vmem [resolvable:$true] %s4726
          %4732 = dma.vmem_to_hbm [thread:$0]  %s4727, 2048, %s4725, %s4710, 128, 128, 8
        $region56: #{tpu_custom_call.1} parent=39 // pred_fallthru
          _
      $region40: #{tpu_custom_call.1} parent=5 // pred_fallthru
        _
      %p4733 = scmp.le.s32.totalorder 2, %s18
      // Predicated region
      $region57: #{tpu_custom_call.1} parent=5 // pred_check
        %p4734 = pneg %p4733
      $region58: #{tpu_custom_call.1} parent=5 // pred_check_branch
        %4736 = sbr.rel (%p4734) target = $region60
      $region59: #{tpu_custom_call.1} parent=5 // pred_region
        %s4737 = ssub.s32 %s18, 2
        // Predicated region
        $region61: #{tpu_custom_call.1} parent=59 // pred_check
          %p4738 = pneg %p173
        $region62: #{tpu_custom_call.1} parent=59 // pred_check_branch
          %4740 = sbr.rel (%p4738) target = $region64
        $region63: #{tpu_custom_call.1} parent=59 // pred_region
          %s4741 = sand.u32 %s158, 1
          %s4742 = scalar_lea.sflag [#allocation4], %s4741
          %s4743 = sand.u32 %s158, 1
          %s4744 = smul.addr %s4743, 128
          %s4745 = scalar_lea.vmem [#allocation8], %s4744
          %4746 = dma.done %s4742, 2048
        $region64: #{tpu_custom_call.1} parent=59 // pred_fallthru
          _
      $region60: #{tpu_custom_call.1} parent=5 // pred_fallthru
        _
    $region6: #{tpu_custom_call.1} parent=1 // loop_footer
      %s22 = sadd.s32 1, %s18
    $region7: #{tpu_custom_call.1} parent=1 // loop_footer_branch
      %17 = sbr.rel target = $region3
    $region8: #{tpu_custom_call.1} parent=1 // loop_exit
      _
    %4747 = vsyncpa [#allocation3], 1
    %s4748 = scalar_lea.sflag [#allocation3], 1
    %4749 = vsyncpa %s4748, 1
    %4750 = vsyncpa [#allocation6], 1
    %4751 = vsyncpa [#allocation4], 1
    %s4752 = scalar_lea.sflag [#allocation4], 1
    %4753 = vsyncpa %s4752, 1

</llo_original>
